<compile_context>
chip_gen: v7x
topology: tpu7x:2x2x1
jax: 0.10.0
libtpu: 0.0.40
codegen_flags: <defaults>
</compile_context>

<pallas_src>
import jax
import jax.numpy as jnp
from jax.experimental import pallas as pl
from jax.experimental.pallas import tpu as pltpu


# ---------------------------------------------------------------------------
# Kernel
# ---------------------------------------------------------------------------
def _head_kernel(x_ref, masks_ref, sm_ref, tm_ref,
                 w_ref, wtc_ref, b_ref, cw_ref, cb_ref,
                 ems_ref, fcs_ref):
    """One grid step = TN batch rows: mask pooling + the M per-mask heads."""
    num_masks = masks_ref.shape[1]

    # mask_bn (eval affine) with the forward()'s *20 folded into scale/shift.
    # Done in f32 on the VPU (v5e has no bf16 VPU); cast to bf16 for the MXU.
    m32 = masks_ref[...].astype(jnp.float32) * sm_ref[...] + tm_ref[...]   # (TN, M, HW)
    mb = m32.astype(jnp.bfloat16)
    xb = x_ref[...].astype(jnp.bfloat16)                                   # (TN, HW, C)

    # Row sums of the preprocessed masks (exact m_bn channel-shift correction).
    msum = jnp.sum(m32, axis=-1)                                           # (TN, M)

    # pooled[n, m, c] = sum_hw masks'[n,m,hw] * x[n,hw,c]    (raw x: the m_bn
    # channel scale lives in w_ref, its shift in the msum*wtc term below).
    pooled = jnp.einsum("nmh,nhc->nmc", mb, xb,
                        preferred_element_type=jnp.float32)                # (TN, M, C)

    for m in range(num_masks):                       # static unroll, small M
        p_m = pooled[:, m, :].astype(jnp.bfloat16)                         # (TN, C)
        # dropout (eval) = identity; dimred Linear + BN1d folded into w/b.
        em = jnp.dot(p_m, w_ref[m], preferred_element_type=jnp.float32)    # (TN, F)
        em = em + msum[:, m:m + 1] * wtc_ref[m:m + 1, :] + b_ref[m:m + 1, :]
        ems_ref[m] = em
        # classifier: logits = em @ m_W[m]^T + m_b[m]^T
        logits = jnp.dot(em.astype(jnp.bfloat16), cw_ref[m],
                         preferred_element_type=jnp.float32)               # (TN, K)
        fcs_ref[m] = logits + cb_ref[m:m + 1, :]


# ---------------------------------------------------------------------------
# Host-side folds + pallas_call wrapper
# ---------------------------------------------------------------------------
def _round_up(v, m):
    return ((v + m - 1) // m) * m


def _fold_params(params):
    """Exact eval-mode folds + bf16 weight casts, done once on the host."""
    f32 = jnp.float32
    fc_w = params["fc_w"].astype(f32)                   # (M, F, C)
    dbn_s = params["dbn_scale"].astype(f32)             # (M, F)
    dbn_t = params["dbn_shift"].astype(f32)             # (M, F)
    mbn_s = params["mbn_scale"].astype(f32)             # (C,)
    mbn_t = params["mbn_shift"].astype(f32)             # (C,)

    # em = dbn_s * ( sum_c fc_w * (s_c*P + t_c*msum) + fc_b ) + dbn_t
    w_eff = fc_w * dbn_s[:, :, None] * mbn_s[None, None, :]                # (M, F, C)
    w_eff = jnp.transpose(w_eff, (0, 2, 1)).astype(jnp.bfloat16)           # (M, C, F)
    wtc = dbn_s * jnp.einsum("mfc,c->mf", fc_w, mbn_t)                     # (M, F)
    b_eff = dbn_s * params["fc_b"].astype(f32) + dbn_t                     # (M, F)

    # mask_bn eval affine with the *20 from _preprocess_masks folded in.
    sm = (20.0 * params["mask_scale"].astype(f32)).reshape(1, -1, 1)       # (1, M, 1)
    tm = (20.0 * params["mask_shift"].astype(f32)).reshape(1, -1, 1)       # (1, M, 1)

    clf_w = jnp.transpose(params["clf_w"].astype(f32), (0, 2, 1))          # (M, F, K)
    clf_w = clf_w.astype(jnp.bfloat16)
    clf_b = params["clf_b"].astype(f32)                                    # (M, K)
    return sm, tm, w_eff, wtc, b_eff, clf_w, clf_b


def _pick_tile_n(n, hw, c, x_itemsize):
    """Batch tile: VMEM-aware (the (tn, HW, C) x block is double-buffered) and
    pipeline-aware (>= 2 grid steps whenever the batch allows it)."""
    x_budget = 16 << 20                                 # double-buffered x-block budget
    tn = (x_budget // (2 * hw * c * x_itemsize)) // 8 * 8
    tn = max(8, min(256, tn))
    half = _round_up(pl.cdiv(n, 2), 8)
    if half < n:                                        # >= 2 grid steps possible
        tn = min(tn, half)
    return min(tn, _round_up(n, 8))


def head_forward_pallas(x, masks, params, *, tile_n=None):
    """x: (N, HW, C) backbone features (channels-last, spatial flattened),
    masks: (N, M, HW).  Returns (x_fcs (N, K, M), x_ems (N, F, M))."""
    N, HW, C = x.shape
    M = masks.shape[1]
    F = params["fc_w"].shape[1]
    K = params["clf_w"].shape[1]

    sm, tm, w_eff, wtc, b_eff, clf_w, clf_b = _fold_params(params)

    tn = tile_n if tile_n is not None else _pick_tile_n(N, HW, C, x.dtype.itemsize)
    # Ragged batch tail handled by masked boundary blocks: no jnp.pad of x.
    grid = (pl.cdiv(N, tn),)

    out_shape = (jax.ShapeDtypeStruct((M, N, F), jnp.float32),
                 jax.ShapeDtypeStruct((M, N, K), jnp.float32))

    # TODO(synk): at production sizes (C*HW very large) on v7x's 64 MiB VMEM,
    # add a second "arbitrary" grid axis over C blocks with a VMEM accumulator
    # instead of shrinking tn further.
    in_specs = [
        pl.BlockSpec((tn, HW, C), lambda b: (b, 0, 0)),   # x, streamed in its input dtype
        pl.BlockSpec((tn, M, HW), lambda b: (b, 0, 0)),   # masks (f32)
        pl.BlockSpec((1, M, 1), lambda b: (0, 0, 0)),     # mask_bn scale (x20 folded)
        pl.BlockSpec((1, M, 1), lambda b: (0, 0, 0)),     # mask_bn shift (x20 folded)
        pl.BlockSpec((M, C, F), lambda b: (0, 0, 0)),     # folded dimred weights (bf16)
        pl.BlockSpec((M, F), lambda b: (0, 0)),           # m_bn-shift correction weights
        pl.BlockSpec((M, F), lambda b: (0, 0)),           # folded dimred bias
        pl.BlockSpec((M, F, K), lambda b: (0, 0, 0)),     # classifier weights m_W^T (bf16)
        pl.BlockSpec((M, K), lambda b: (0, 0)),           # classifier bias m_b^T
    ]
    out_specs = (pl.BlockSpec((M, tn, F), lambda b: (0, b, 0)),
                 pl.BlockSpec((M, tn, K), lambda b: (0, b, 0)))

    ems, fcs = pl.pallas_call(
        _head_kernel,
        out_shape=out_shape,
        grid_spec=pltpu.PrefetchScalarGridSpec(
            num_scalar_prefetch=0,
            grid=grid,
            in_specs=in_specs,
            out_specs=out_specs),
        compiler_params=pltpu.CompilerParams(
            dimension_semantics=("parallel",),
            vmem_limit_bytes=48 << 20),
    )(x, masks, sm, tm, w_eff, wtc, b_eff, clf_w, clf_b)

    # Match PyTorch output layout: (n, features, num_masks).
    x_ems = jnp.transpose(ems, (1, 2, 0))     # (N, F, M)
    x_fcs = jnp.transpose(fcs, (1, 2, 0))     # (N, K, M)
    return x_fcs, x_ems


def aicity_masks_senet_forward(feat, masks, params):
    """Module.forward in eval mode with is_initialize=True: returns x_ems.
    feat: backbone output feature map (N, C, H, W); masks: (N, M, H, W)."""
    N, C, H, W = feat.shape
    M = masks.shape[1]
    # Channels-last / spatial-flattened layout for the kernel; in a real
    # pipeline the (NHWC) backbone epilogue would emit this layout directly.
    x = jnp.transpose(feat, (0, 2, 3, 1)).reshape(N, H * W, C)
    m = masks.reshape(N, M, H * W)
    _x_fcs, x_ems = head_forward_pallas(x, m, params)
    return x_ems


# ---------------------------------------------------------------------------
# Example parameters + pure-f32 JAX reference
# ---------------------------------------------------------------------------
def init_params(key, *, C, M, F, K):
    """Example eval-mode parameters (BN pre-reduced to per-channel scale/shift,
    as if loaded from a trained checkpoint)."""
    ks = jax.random.split(key, 7)

    def affine(k, shape):
        k1, k2 = jax.random.split(k)
        scale = jax.random.uniform(k1, shape, jnp.float32, 0.7, 1.3)
        shift = 0.2 * jax.random.normal(k2, shape, jnp.float32)
        return scale, shift

    mask_scale, mask_shift = affine(ks[0], (M,))
    mbn_scale, mbn_shift = affine(ks[1], (C,))
    dbn_scale, dbn_shift = affine(ks[2], (M, F))
    return {
        "mask_scale": mask_scale, "mask_shift": mask_shift,   # mask_bn eval affine
        "mbn_scale": mbn_scale, "mbn_shift": mbn_shift,       # m_bn eval affine
        "fc_w": (jax.random.normal(ks[3], (M, F, C), jnp.float32)
                 * jnp.sqrt(2.0 / (C + F))),                  # m_dimred_fc (xavier)
        "fc_b": 0.02 * jax.random.normal(ks[4], (M, F), jnp.float32),
        "dbn_scale": dbn_scale, "dbn_shift": dbn_shift,       # m_dimred_bn eval affine
        "clf_w": jax.random.normal(ks[5], (M, K, F), jnp.float32) * 0.01,   # m_W
        "clf_b": 0.02 * jax.random.normal(ks[6], (M, K), jnp.float32),      # m_b^T
    }


def _reference_head(x, masks, params):
    """Unfused, full-f32 pure-JAX reference of the PyTorch eval-mode head.
    x: (N, HW, C), masks: (N, M, HW)."""
    xf = x.astype(jnp.float32)
    mf = masks.astype(jnp.float32)
    mm = (mf * (20.0 * params["mask_scale"])[None, :, None]
          + (20.0 * params["mask_shift"])[None, :, None])
    xbn = xf * params["mbn_scale"][None, None, :] + params["mbn_shift"][None, None, :]
    pooled = jnp.einsum("nmh,nhc->nmc", mm, xbn)
    em = jnp.einsum("nmc,mfc->nmf", pooled, params["fc_w"]) + params["fc_b"][None]
    em = em * params["dbn_scale"][None] + params["dbn_shift"][None]
    fcs = jnp.einsum("nmf,mkf->nmk", em, params["clf_w"]) + params["clf_b"][None]
    return jnp.transpose(fcs, (0, 2, 1)), jnp.transpose(em, (0, 2, 1))


def _max_rel_err(a, b):
    return float(jnp.max(jnp.abs(a - b)) / (jnp.max(jnp.abs(b)) + 1e-6))


# ---------------------------------------------------------------------------
if __name__ == "__main__":
    key = jax.random.PRNGKey(0)
    k_feat, k_mask, k_feat2, k_mask2, k_param = jax.random.split(key, 5)

    # Small shapes: batch=6, base_c=128 (stands in for 512*expansion),
    # feature-map spatial 8x8, num_masks=4, num_m_features=64, num_classes=16.
    N, C, H, W = 6, 128, 8, 8
    M, F, K = 4, 64, 16
    TOL = 3e-2   # kernel runs bf16 MXU dots; reference is full f32

    feat = jax.random.normal(k_feat, (N, C, H, W), jnp.float32)
    masks = jax.random.uniform(k_mask, (N, M, H, W), jnp.float32)
    params = init_params(k_param, C=C, M=M, F=F, K=K)

    # --- run 1: single-step grid (N=6), full head through the Pallas kernel --
    x = jnp.transpose(feat, (0, 2, 3, 1)).reshape(N, H * W, C)   # (N, HW, C)
    m = masks.reshape(N, M, H * W)
    x_fcs, x_ems = head_forward_pallas(x, m, params)
    jax.block_until_ready((x_fcs, x_ems))

    ref_fcs, ref_ems = _reference_head(x, m, params)
    assert x_ems.shape == (N, F, M) and x_fcs.shape == (N, K, M)
    err_e, err_f = _max_rel_err(x_ems, ref_ems), _max_rel_err(x_fcs, ref_fcs)
    assert err_e < TOL, err_e
    assert err_f < TOL, err_f

    # --- run 2: multi-step grid with a ragged batch tail (N=20, tn=16) -------
    N2 = 20
    x2 = jax.random.normal(k_feat2, (N2, H * W, C), jnp.float32)
    m2 = jax.random.uniform(k_mask2, (N2, M, H * W), jnp.float32)
    fcs2, ems2 = head_forward_pallas(x2, m2, params)
    jax.block_until_ready((fcs2, ems2))

    ref_fcs2, ref_ems2 = _reference_head(x2, m2, params)
    assert ems2.shape == (N2, F, M) and fcs2.shape == (N2, K, M)
    err_e2, err_f2 = _max_rel_err(ems2, ref_ems2), _max_rel_err(fcs2, ref_fcs2)
    assert err_e2 < TOL, err_e2
    assert err_f2 < TOL, err_f2

    # --- module-level forward (eval, is_initialize=True) -> embeddings only --
    out = aicity_masks_senet_forward(feat, masks, params)
    jax.block_until_ready(out)
    assert out.shape == (N, F, M)

    print("KERNEL_OK")
</pallas_src>

<mosaic_0001>
module attributes {stable_mosaic.version = 11 : i64} {
  func.func @_head_kernel(%arg0: i32, %arg1: memref<8x64x128xf32, #tpu.memory_space<vmem>>, %arg2: memref<8x4x64xf32, #tpu.memory_space<vmem>>, %arg3: memref<1x4x1xf32, #tpu.memory_space<vmem>>, %arg4: memref<1x4x1xf32, #tpu.memory_space<vmem>>, %arg5: memref<4x128x64xbf16, #tpu.memory_space<vmem>>, %arg6: memref<4x64xf32, #tpu.memory_space<vmem>>, %arg7: memref<4x64xf32, #tpu.memory_space<vmem>>, %arg8: memref<4x64x16xbf16, #tpu.memory_space<vmem>>, %arg9: memref<4x16xf32, #tpu.memory_space<vmem>>, %arg10: memref<4x8x64xf32, #tpu.memory_space<vmem>>, %arg11: memref<4x8x16xf32, #tpu.memory_space<vmem>>) attributes {dimension_semantics = [#tpu.dimension_semantics<parallel>], iteration_bounds = array<i64: 1>, scalar_prefetch = 0 : i64, scratch_operands = 0 : i64, tpu.core_type = #tpu.core_type<tc>, window_params = [{transform_indices = @transform_0, window_bounds = array<i64: 8, 64, 128>}, {transform_indices = @transform_1, window_bounds = array<i64: 8, 4, 64>}, {pipeline_mode = #tpu.pipeline_mode<synchronous>, transform_indices = @transform_2, window_bounds = array<i64: 1, 4, 1>}, {pipeline_mode = #tpu.pipeline_mode<synchronous>, transform_indices = @transform_3, window_bounds = array<i64: 1, 4, 1>}, {pipeline_mode = #tpu.pipeline_mode<synchronous>, transform_indices = @transform_4, window_bounds = array<i64: 4, 128, 64>}, {pipeline_mode = #tpu.pipeline_mode<synchronous>, transform_indices = @transform_5, window_bounds = array<i64: 4, 64>}, {pipeline_mode = #tpu.pipeline_mode<synchronous>, transform_indices = @transform_6, window_bounds = array<i64: 4, 64>}, {pipeline_mode = #tpu.pipeline_mode<synchronous>, transform_indices = @transform_7, window_bounds = array<i64: 4, 64, 16>}, {pipeline_mode = #tpu.pipeline_mode<synchronous>, transform_indices = @transform_8, window_bounds = array<i64: 4, 16>}, {transform_indices = @transform_9, window_bounds = array<i64: 4, 8, 64>}, {transform_indices = @transform_10, window_bounds = array<i64: 4, 8, 16>}]} {
    %c0 = arith.constant 0 : index
    %c0_0 = arith.constant 0 : index
    %c0_1 = arith.constant 0 : index
    %0 = vector.load %arg2[%c0, %c0_0, %c0_1] : memref<8x4x64xf32, #tpu.memory_space<vmem>>, vector<8x4x64xf32>
    %c0_2 = arith.constant 0 : index
    %c0_3 = arith.constant 0 : index
    %c0_4 = arith.constant 0 : index
    %1 = vector.load %arg3[%c0_2, %c0_3, %c0_4] : memref<1x4x1xf32, #tpu.memory_space<vmem>>, vector<1x4x1xf32>
    %2 = vector.broadcast %1 : vector<1x4x1xf32> to vector<8x4x64xf32>
    %3 = arith.mulf %0, %2 : vector<8x4x64xf32>
    %c0_5 = arith.constant 0 : index
    %c0_6 = arith.constant 0 : index
    %c0_7 = arith.constant 0 : index
    %4 = vector.load %arg4[%c0_5, %c0_6, %c0_7] : memref<1x4x1xf32, #tpu.memory_space<vmem>>, vector<1x4x1xf32>
    %5 = vector.broadcast %4 : vector<1x4x1xf32> to vector<8x4x64xf32>
    %6 = arith.addf %3, %5 : vector<8x4x64xf32>
    %7 = arith.truncf %6 : vector<8x4x64xf32> to vector<8x4x64xbf16>
    %c0_8 = arith.constant 0 : index
    %c0_9 = arith.constant 0 : index
    %c0_10 = arith.constant 0 : index
    %8 = vector.load %arg1[%c0_8, %c0_9, %c0_10] : memref<8x64x128xf32, #tpu.memory_space<vmem>>, vector<8x64x128xf32>
    %9 = arith.truncf %8 : vector<8x64x128xf32> to vector<8x64x128xbf16>
    %cst = arith.constant dense<0.000000e+00> : vector<8x4xf32>
    %10 = vector.multi_reduction <add>, %6, %cst [2] : vector<8x4x64xf32> to vector<8x4xf32>
    "tpu.trace_start"() <{level = 10 : i32, message = "nmh,nhc->nmc"}> : () -> ()
    %cst_11 = arith.constant dense<0.000000e+00> : vector<8x4x128xf32>
    %11 = tpu.matmul %7, %9, %cst_11 {dimension_numbers = #tpu.dot_dimension_numbers<[2], [1], [1], [2], [0, 0, 0, 1, 1, 2], [0], [0]>} : vector<8x4x64xbf16>, vector<8x64x128xbf16>, vector<8x4x128xf32> -> vector<8x4x128xf32>
    "tpu.trace_stop"() : () -> ()
    %12 = vector.extract_strided_slice %11 {offsets = [0, 0, 0], sizes = [8, 1, 128], strides = [1, 1, 1]} : vector<8x4x128xf32> to vector<8x1x128xf32>
    %13 = vector.shape_cast %12 : vector<8x1x128xf32> to vector<8x128xf32>
    %14 = arith.truncf %13 : vector<8x128xf32> to vector<8x128xbf16>
    %c0_12 = arith.constant 0 : index
    %c0_13 = arith.constant 0 : index
    %c0_14 = arith.constant 0 : index
    %15 = vector.load %arg5[%c0_12, %c0_13, %c0_14] : memref<4x128x64xbf16, #tpu.memory_space<vmem>>, vector<1x128x64xbf16>
    %16 = vector.shape_cast %15 : vector<1x128x64xbf16> to vector<128x64xbf16>
    %cst_15 = arith.constant dense<0.000000e+00> : vector<8x64xf32>
    %17 = tpu.matmul %14, %16, %cst_15 {dimension_numbers = #tpu.dot_dimension_numbers<[1], [0], [0], [1], [0, 0, 1, 1], [], []>} : vector<8x128xbf16>, vector<128x64xbf16>, vector<8x64xf32> -> vector<8x64xf32>
    %18 = vector.extract_strided_slice %10 {offsets = [0, 0], sizes = [8, 1], strides = [1, 1]} : vector<8x4xf32> to vector<8x1xf32>
    %c0_16 = arith.constant 0 : index
    %c0_17 = arith.constant 0 : index
    %19 = vector.load %arg6[%c0_16, %c0_17] : memref<4x64xf32, #tpu.memory_space<vmem>>, vector<1x64xf32>
    %20 = vector.broadcast %18 : vector<8x1xf32> to vector<8x64xf32>
    %21 = vector.broadcast %19 : vector<1x64xf32> to vector<8x64xf32>
    %22 = arith.mulf %20, %21 : vector<8x64xf32>
    %23 = arith.addf %17, %22 : vector<8x64xf32>
    %c0_18 = arith.constant 0 : index
    %c0_19 = arith.constant 0 : index
    %24 = vector.load %arg7[%c0_18, %c0_19] : memref<4x64xf32, #tpu.memory_space<vmem>>, vector<1x64xf32>
    %25 = vector.broadcast %24 : vector<1x64xf32> to vector<8x64xf32>
    %26 = arith.addf %23, %25 : vector<8x64xf32>
    %c0_20 = arith.constant 0 : index
    %c0_21 = arith.constant 0 : index
    %c0_22 = arith.constant 0 : index
    %27 = vector.load %arg10[%c0_20, %c0_21, %c0_22] : memref<4x8x64xf32, #tpu.memory_space<vmem>>, vector<1x8x64xf32>
    %28 = vector.shape_cast %27 : vector<1x8x64xf32> to vector<8x64xf32>
    %29 = vector.shape_cast %26 : vector<8x64xf32> to vector<1x8x64xf32>
    tpu.vector_store %arg10[%c0_20, %c0_21, %c0_22], %29 {strides = array<i32>} : memref<4x8x64xf32, #tpu.memory_space<vmem>>, vector<1x8x64xf32>,
    %30 = arith.truncf %26 : vector<8x64xf32> to vector<8x64xbf16>
    %c0_23 = arith.constant 0 : index
    %c0_24 = arith.constant 0 : index
    %c0_25 = arith.constant 0 : index
    %31 = vector.load %arg8[%c0_23, %c0_24, %c0_25] : memref<4x64x16xbf16, #tpu.memory_space<vmem>>, vector<1x64x16xbf16>
    %32 = vector.shape_cast %31 : vector<1x64x16xbf16> to vector<64x16xbf16>
    %cst_26 = arith.constant dense<0.000000e+00> : vector<8x16xf32>
    %33 = tpu.matmul %30, %32, %cst_26 {dimension_numbers = #tpu.dot_dimension_numbers<[1], [0], [0], [1], [0, 0, 1, 1], [], []>} : vector<8x64xbf16>, vector<64x16xbf16>, vector<8x16xf32> -> vector<8x16xf32>
    %c0_27 = arith.constant 0 : index
    %c0_28 = arith.constant 0 : index
    %34 = vector.load %arg9[%c0_27, %c0_28] : memref<4x16xf32, #tpu.memory_space<vmem>>, vector<1x16xf32>
    %35 = vector.broadcast %34 : vector<1x16xf32> to vector<8x16xf32>
    %36 = arith.addf %33, %35 : vector<8x16xf32>
    %c0_29 = arith.constant 0 : index
    %c0_30 = arith.constant 0 : index
    %c0_31 = arith.constant 0 : index
    %37 = vector.load %arg11[%c0_29, %c0_30, %c0_31] : memref<4x8x16xf32, #tpu.memory_space<vmem>>, vector<1x8x16xf32>
    %38 = vector.shape_cast %37 : vector<1x8x16xf32> to vector<8x16xf32>
    %39 = vector.shape_cast %36 : vector<8x16xf32> to vector<1x8x16xf32>
    tpu.vector_store %arg11[%c0_29, %c0_30, %c0_31], %39 {strides = array<i32>} : memref<4x8x16xf32, #tpu.memory_space<vmem>>, vector<1x8x16xf32>,
    %40 = vector.extract_strided_slice %11 {offsets = [0, 1, 0], sizes = [8, 1, 128], strides = [1, 1, 1]} : vector<8x4x128xf32> to vector<8x1x128xf32>
    %41 = vector.shape_cast %40 : vector<8x1x128xf32> to vector<8x128xf32>
    %42 = arith.truncf %41 : vector<8x128xf32> to vector<8x128xbf16>
    %c1 = arith.constant 1 : index
    %c0_32 = arith.constant 0 : index
    %c0_33 = arith.constant 0 : index
    %43 = vector.load %arg5[%c1, %c0_32, %c0_33] : memref<4x128x64xbf16, #tpu.memory_space<vmem>>, vector<1x128x64xbf16>
    %44 = vector.shape_cast %43 : vector<1x128x64xbf16> to vector<128x64xbf16>
    %cst_34 = arith.constant dense<0.000000e+00> : vector<8x64xf32>
    %45 = tpu.matmul %42, %44, %cst_34 {dimension_numbers = #tpu.dot_dimension_numbers<[1], [0], [0], [1], [0, 0, 1, 1], [], []>} : vector<8x128xbf16>, vector<128x64xbf16>, vector<8x64xf32> -> vector<8x64xf32>
    %46 = vector.extract_strided_slice %10 {offsets = [0, 1], sizes = [8, 1], strides = [1, 1]} : vector<8x4xf32> to vector<8x1xf32>
    %c1_35 = arith.constant 1 : index
    %c0_36 = arith.constant 0 : index
    %47 = vector.load %arg6[%c1_35, %c0_36] : memref<4x64xf32, #tpu.memory_space<vmem>>, vector<1x64xf32>
    %48 = vector.broadcast %46 : vector<8x1xf32> to vector<8x64xf32>
    %49 = vector.broadcast %47 : vector<1x64xf32> to vector<8x64xf32>
    %50 = arith.mulf %48, %49 : vector<8x64xf32>
    %51 = arith.addf %45, %50 : vector<8x64xf32>
    %c1_37 = arith.constant 1 : index
    %c0_38 = arith.constant 0 : index
    %52 = vector.load %arg7[%c1_37, %c0_38] : memref<4x64xf32, #tpu.memory_space<vmem>>, vector<1x64xf32>
    %53 = vector.broadcast %52 : vector<1x64xf32> to vector<8x64xf32>
    %54 = arith.addf %51, %53 : vector<8x64xf32>
    %c1_39 = arith.constant 1 : index
    %c0_40 = arith.constant 0 : index
    %c0_41 = arith.constant 0 : index
    %55 = vector.load %arg10[%c1_39, %c0_40, %c0_41] : memref<4x8x64xf32, #tpu.memory_space<vmem>>, vector<1x8x64xf32>
    %56 = vector.shape_cast %55 : vector<1x8x64xf32> to vector<8x64xf32>
    %57 = vector.shape_cast %54 : vector<8x64xf32> to vector<1x8x64xf32>
    tpu.vector_store %arg10[%c1_39, %c0_40, %c0_41], %57 {strides = array<i32>} : memref<4x8x64xf32, #tpu.memory_space<vmem>>, vector<1x8x64xf32>,
    %58 = arith.truncf %54 : vector<8x64xf32> to vector<8x64xbf16>
    %c1_42 = arith.constant 1 : index
    %c0_43 = arith.constant 0 : index
    %c0_44 = arith.constant 0 : index
    %59 = vector.load %arg8[%c1_42, %c0_43, %c0_44] : memref<4x64x16xbf16, #tpu.memory_space<vmem>>, vector<1x64x16xbf16>
    %60 = vector.shape_cast %59 : vector<1x64x16xbf16> to vector<64x16xbf16>
    %cst_45 = arith.constant dense<0.000000e+00> : vector<8x16xf32>
    %61 = tpu.matmul %58, %60, %cst_45 {dimension_numbers = #tpu.dot_dimension_numbers<[1], [0], [0], [1], [0, 0, 1, 1], [], []>} : vector<8x64xbf16>, vector<64x16xbf16>, vector<8x16xf32> -> vector<8x16xf32>
    %c1_46 = arith.constant 1 : index
    %c0_47 = arith.constant 0 : index
    %62 = vector.load %arg9[%c1_46, %c0_47] : memref<4x16xf32, #tpu.memory_space<vmem>>, vector<1x16xf32>
    %63 = vector.broadcast %62 : vector<1x16xf32> to vector<8x16xf32>
    %64 = arith.addf %61, %63 : vector<8x16xf32>
    %c1_48 = arith.constant 1 : index
    %c0_49 = arith.constant 0 : index
    %c0_50 = arith.constant 0 : index
    %65 = vector.load %arg11[%c1_48, %c0_49, %c0_50] : memref<4x8x16xf32, #tpu.memory_space<vmem>>, vector<1x8x16xf32>
    %66 = vector.shape_cast %65 : vector<1x8x16xf32> to vector<8x16xf32>
    %67 = vector.shape_cast %64 : vector<8x16xf32> to vector<1x8x16xf32>
    tpu.vector_store %arg11[%c1_48, %c0_49, %c0_50], %67 {strides = array<i32>} : memref<4x8x16xf32, #tpu.memory_space<vmem>>, vector<1x8x16xf32>,
    %68 = vector.extract_strided_slice %11 {offsets = [0, 2, 0], sizes = [8, 1, 128], strides = [1, 1, 1]} : vector<8x4x128xf32> to vector<8x1x128xf32>
    %69 = vector.shape_cast %68 : vector<8x1x128xf32> to vector<8x128xf32>
    %70 = arith.truncf %69 : vector<8x128xf32> to vector<8x128xbf16>
    %c2 = arith.constant 2 : index
    %c0_51 = arith.constant 0 : index
    %c0_52 = arith.constant 0 : index
    %71 = vector.load %arg5[%c2, %c0_51, %c0_52] : memref<4x128x64xbf16, #tpu.memory_space<vmem>>, vector<1x128x64xbf16>
    %72 = vector.shape_cast %71 : vector<1x128x64xbf16> to vector<128x64xbf16>
    %cst_53 = arith.constant dense<0.000000e+00> : vector<8x64xf32>
    %73 = tpu.matmul %70, %72, %cst_53 {dimension_numbers = #tpu.dot_dimension_numbers<[1], [0], [0], [1], [0, 0, 1, 1], [], []>} : vector<8x128xbf16>, vector<128x64xbf16>, vector<8x64xf32> -> vector<8x64xf32>
    %74 = vector.extract_strided_slice %10 {offsets = [0, 2], sizes = [8, 1], strides = [1, 1]} : vector<8x4xf32> to vector<8x1xf32>
    %c2_54 = arith.constant 2 : index
    %c0_55 = arith.constant 0 : index
    %75 = vector.load %arg6[%c2_54, %c0_55] : memref<4x64xf32, #tpu.memory_space<vmem>>, vector<1x64xf32>
    %76 = vector.broadcast %74 : vector<8x1xf32> to vector<8x64xf32>
    %77 = vector.broadcast %75 : vector<1x64xf32> to vector<8x64xf32>
    %78 = arith.mulf %76, %77 : vector<8x64xf32>
    %79 = arith.addf %73, %78 : vector<8x64xf32>
    %c2_56 = arith.constant 2 : index
    %c0_57 = arith.constant 0 : index
    %80 = vector.load %arg7[%c2_56, %c0_57] : memref<4x64xf32, #tpu.memory_space<vmem>>, vector<1x64xf32>
    %81 = vector.broadcast %80 : vector<1x64xf32> to vector<8x64xf32>
    %82 = arith.addf %79, %81 : vector<8x64xf32>
    %c2_58 = arith.constant 2 : index
    %c0_59 = arith.constant 0 : index
    %c0_60 = arith.constant 0 : index
    %83 = vector.load %arg10[%c2_58, %c0_59, %c0_60] : memref<4x8x64xf32, #tpu.memory_space<vmem>>, vector<1x8x64xf32>
    %84 = vector.shape_cast %83 : vector<1x8x64xf32> to vector<8x64xf32>
    %85 = vector.shape_cast %82 : vector<8x64xf32> to vector<1x8x64xf32>
    tpu.vector_store %arg10[%c2_58, %c0_59, %c0_60], %85 {strides = array<i32>} : memref<4x8x64xf32, #tpu.memory_space<vmem>>, vector<1x8x64xf32>,
    %86 = arith.truncf %82 : vector<8x64xf32> to vector<8x64xbf16>
    %c2_61 = arith.constant 2 : index
    %c0_62 = arith.constant 0 : index
    %c0_63 = arith.constant 0 : index
    %87 = vector.load %arg8[%c2_61, %c0_62, %c0_63] : memref<4x64x16xbf16, #tpu.memory_space<vmem>>, vector<1x64x16xbf16>
    %88 = vector.shape_cast %87 : vector<1x64x16xbf16> to vector<64x16xbf16>
    %cst_64 = arith.constant dense<0.000000e+00> : vector<8x16xf32>
    %89 = tpu.matmul %86, %88, %cst_64 {dimension_numbers = #tpu.dot_dimension_numbers<[1], [0], [0], [1], [0, 0, 1, 1], [], []>} : vector<8x64xbf16>, vector<64x16xbf16>, vector<8x16xf32> -> vector<8x16xf32>
    %c2_65 = arith.constant 2 : index
    %c0_66 = arith.constant 0 : index
    %90 = vector.load %arg9[%c2_65, %c0_66] : memref<4x16xf32, #tpu.memory_space<vmem>>, vector<1x16xf32>
    %91 = vector.broadcast %90 : vector<1x16xf32> to vector<8x16xf32>
    %92 = arith.addf %89, %91 : vector<8x16xf32>
    %c2_67 = arith.constant 2 : index
    %c0_68 = arith.constant 0 : index
    %c0_69 = arith.constant 0 : index
    %93 = vector.load %arg11[%c2_67, %c0_68, %c0_69] : memref<4x8x16xf32, #tpu.memory_space<vmem>>, vector<1x8x16xf32>
    %94 = vector.shape_cast %93 : vector<1x8x16xf32> to vector<8x16xf32>
    %95 = vector.shape_cast %92 : vector<8x16xf32> to vector<1x8x16xf32>
    tpu.vector_store %arg11[%c2_67, %c0_68, %c0_69], %95 {strides = array<i32>} : memref<4x8x16xf32, #tpu.memory_space<vmem>>, vector<1x8x16xf32>,
    %96 = vector.extract_strided_slice %11 {offsets = [0, 3, 0], sizes = [8, 1, 128], strides = [1, 1, 1]} : vector<8x4x128xf32> to vector<8x1x128xf32>
    %97 = vector.shape_cast %96 : vector<8x1x128xf32> to vector<8x128xf32>
    %98 = arith.truncf %97 : vector<8x128xf32> to vector<8x128xbf16>
    %c3 = arith.constant 3 : index
    %c0_70 = arith.constant 0 : index
    %c0_71 = arith.constant 0 : index
    %99 = vector.load %arg5[%c3, %c0_70, %c0_71] : memref<4x128x64xbf16, #tpu.memory_space<vmem>>, vector<1x128x64xbf16>
    %100 = vector.shape_cast %99 : vector<1x128x64xbf16> to vector<128x64xbf16>
    %cst_72 = arith.constant dense<0.000000e+00> : vector<8x64xf32>
    %101 = tpu.matmul %98, %100, %cst_72 {dimension_numbers = #tpu.dot_dimension_numbers<[1], [0], [0], [1], [0, 0, 1, 1], [], []>} : vector<8x128xbf16>, vector<128x64xbf16>, vector<8x64xf32> -> vector<8x64xf32>
    %102 = vector.extract_strided_slice %10 {offsets = [0, 3], sizes = [8, 1], strides = [1, 1]} : vector<8x4xf32> to vector<8x1xf32>
    %c3_73 = arith.constant 3 : index
    %c0_74 = arith.constant 0 : index
    %103 = vector.load %arg6[%c3_73, %c0_74] : memref<4x64xf32, #tpu.memory_space<vmem>>, vector<1x64xf32>
    %104 = vector.broadcast %102 : vector<8x1xf32> to vector<8x64xf32>
    %105 = vector.broadcast %103 : vector<1x64xf32> to vector<8x64xf32>
    %106 = arith.mulf %104, %105 : vector<8x64xf32>
    %107 = arith.addf %101, %106 : vector<8x64xf32>
    %c3_75 = arith.constant 3 : index
    %c0_76 = arith.constant 0 : index
    %108 = vector.load %arg7[%c3_75, %c0_76] : memref<4x64xf32, #tpu.memory_space<vmem>>, vector<1x64xf32>
    %109 = vector.broadcast %108 : vector<1x64xf32> to vector<8x64xf32>
    %110 = arith.addf %107, %109 : vector<8x64xf32>
    %c3_77 = arith.constant 3 : index
    %c0_78 = arith.constant 0 : index
    %c0_79 = arith.constant 0 : index
    %111 = vector.load %arg10[%c3_77, %c0_78, %c0_79] : memref<4x8x64xf32, #tpu.memory_space<vmem>>, vector<1x8x64xf32>
    %112 = vector.shape_cast %111 : vector<1x8x64xf32> to vector<8x64xf32>
    %113 = vector.shape_cast %110 : vector<8x64xf32> to vector<1x8x64xf32>
    tpu.vector_store %arg10[%c3_77, %c0_78, %c0_79], %113 {strides = array<i32>} : memref<4x8x64xf32, #tpu.memory_space<vmem>>, vector<1x8x64xf32>,
    %114 = arith.truncf %110 : vector<8x64xf32> to vector<8x64xbf16>
    %c3_80 = arith.constant 3 : index
    %c0_81 = arith.constant 0 : index
    %c0_82 = arith.constant 0 : index
    %115 = vector.load %arg8[%c3_80, %c0_81, %c0_82] : memref<4x64x16xbf16, #tpu.memory_space<vmem>>, vector<1x64x16xbf16>
    %116 = vector.shape_cast %115 : vector<1x64x16xbf16> to vector<64x16xbf16>
    %cst_83 = arith.constant dense<0.000000e+00> : vector<8x16xf32>
    %117 = tpu.matmul %114, %116, %cst_83 {dimension_numbers = #tpu.dot_dimension_numbers<[1], [0], [0], [1], [0, 0, 1, 1], [], []>} : vector<8x64xbf16>, vector<64x16xbf16>, vector<8x16xf32> -> vector<8x16xf32>
    %c3_84 = arith.constant 3 : index
    %c0_85 = arith.constant 0 : index
    %118 = vector.load %arg9[%c3_84, %c0_85] : memref<4x16xf32, #tpu.memory_space<vmem>>, vector<1x16xf32>
    %119 = vector.broadcast %118 : vector<1x16xf32> to vector<8x16xf32>
    %120 = arith.addf %117, %119 : vector<8x16xf32>
    %c3_86 = arith.constant 3 : index
    %c0_87 = arith.constant 0 : index
    %c0_88 = arith.constant 0 : index
    %121 = vector.load %arg11[%c3_86, %c0_87, %c0_88] : memref<4x8x16xf32, #tpu.memory_space<vmem>>, vector<1x8x16xf32>
    %122 = vector.shape_cast %121 : vector<1x8x16xf32> to vector<8x16xf32>
    %123 = vector.shape_cast %120 : vector<8x16xf32> to vector<1x8x16xf32>
    tpu.vector_store %arg11[%c3_86, %c0_87, %c0_88], %123 {strides = array<i32>} : memref<4x8x16xf32, #tpu.memory_space<vmem>>, vector<1x8x16xf32>,
    return
  }
  func.func @transform_0(%arg0: i32) -> (i32, i32, i32) {
    %c0_i32 = arith.constant 0 : i32
    %c0_i32_0 = arith.constant 0 : i32
    %c0_i32_1 = arith.constant 0 : i32
    return %arg0, %c0_i32, %c0_i32_0 : i32, i32, i32
  }
  func.func @transform_1(%arg0: i32) -> (i32, i32, i32) {
    %c0_i32 = arith.constant 0 : i32
    %c0_i32_0 = arith.constant 0 : i32
    %c0_i32_1 = arith.constant 0 : i32
    return %arg0, %c0_i32, %c0_i32_0 : i32, i32, i32
  }
  func.func @transform_2(%arg0: i32) -> (i32, i32, i32) {
    %c0_i32 = arith.constant 0 : i32
    %c0_i32_0 = arith.constant 0 : i32
    %c0_i32_1 = arith.constant 0 : i32
    %c0_i32_2 = arith.constant 0 : i32
    return %c0_i32, %c0_i32_0, %c0_i32_1 : i32, i32, i32
  }
  func.func @transform_3(%arg0: i32) -> (i32, i32, i32) {
    %c0_i32 = arith.constant 0 : i32
    %c0_i32_0 = arith.constant 0 : i32
    %c0_i32_1 = arith.constant 0 : i32
    %c0_i32_2 = arith.constant 0 : i32
    return %c0_i32, %c0_i32_0, %c0_i32_1 : i32, i32, i32
  }
  func.func @transform_4(%arg0: i32) -> (i32, i32, i32) {
    %c0_i32 = arith.constant 0 : i32
    %c0_i32_0 = arith.constant 0 : i32
    %c0_i32_1 = arith.constant 0 : i32
    %c0_i32_2 = arith.constant 0 : i32
    return %c0_i32, %c0_i32_0, %c0_i32_1 : i32, i32, i32
  }
  func.func @transform_5(%arg0: i32) -> (i32, i32) {
    %c0_i32 = arith.constant 0 : i32
    %c0_i32_0 = arith.constant 0 : i32
    %c0_i32_1 = arith.constant 0 : i32
    return %c0_i32, %c0_i32_0 : i32, i32
  }
  func.func @transform_6(%arg0: i32) -> (i32, i32) {
    %c0_i32 = arith.constant 0 : i32
    %c0_i32_0 = arith.constant 0 : i32
    %c0_i32_1 = arith.constant 0 : i32
    return %c0_i32, %c0_i32_0 : i32, i32
  }
  func.func @transform_7(%arg0: i32) -> (i32, i32, i32) {
    %c0_i32 = arith.constant 0 : i32
    %c0_i32_0 = arith.constant 0 : i32
    %c0_i32_1 = arith.constant 0 : i32
    %c0_i32_2 = arith.constant 0 : i32
    return %c0_i32, %c0_i32_0, %c0_i32_1 : i32, i32, i32
  }
  func.func @transform_8(%arg0: i32) -> (i32, i32) {
    %c0_i32 = arith.constant 0 : i32
    %c0_i32_0 = arith.constant 0 : i32
    %c0_i32_1 = arith.constant 0 : i32
    return %c0_i32, %c0_i32_0 : i32, i32
  }
  func.func @transform_9(%arg0: i32) -> (i32, i32, i32) {
    %c0_i32 = arith.constant 0 : i32
    %c0_i32_0 = arith.constant 0 : i32
    %c0_i32_1 = arith.constant 0 : i32
    return %c0_i32, %arg0, %c0_i32_0 : i32, i32, i32
  }
  func.func @transform_10(%arg0: i32) -> (i32, i32, i32) {
    %c0_i32 = arith.constant 0 : i32
    %c0_i32_0 = arith.constant 0 : i32
    %c0_i32_1 = arith.constant 0 : i32
    return %c0_i32, %arg0, %c0_i32_0 : i32, i32, i32
  }
}

</mosaic_0001>

<llo_original>
// kernel: tpu_custom_call.1
$region0: #{tpu_custom_call.1}
  #allocation0 [shape = 'u32[]', space=smem, size = 0x4, offset = 0x4, fixed_abs, tag = 'smem constant byte address 0x4 - core index']
  #allocation1 [shape = 'u32[144,128]{1,0:T(1,128)}', space=vmem, size = 0x12000, scoped, tag = 'internal scratch']
  %s0 = inlined_call_operand.vmem [shape: f32[6,64,128], index: 0, kind: input, shape index: {}]
  %s1 = inlined_call_operand.vmem [shape: f32[6,4,64], index: 1, kind: input, shape index: {}]
  %s2 = inlined_call_operand.vmem [shape: f32[1,4,1], index: 2, kind: input, shape index: {}]
  %s3 = inlined_call_operand.vmem [shape: f32[1,4,1], index: 3, kind: input, shape index: {}]
  %s4 = inlined_call_operand.vmem [shape: bf16[4,128,64], index: 4, kind: input, shape index: {}]
  %s5 = inlined_call_operand.vmem [shape: f32[4,64], index: 5, kind: input, shape index: {}]
  %s6 = inlined_call_operand.vmem [shape: f32[4,64], index: 6, kind: input, shape index: {}]
  %s7 = inlined_call_operand.vmem [shape: bf16[4,64,16], index: 7, kind: input, shape index: {}]
  %s8 = inlined_call_operand.vmem [shape: f32[4,16], index: 8, kind: input, shape index: {}]
  %s9 = inlined_call_operand.vmem [shape: f32[4,6,64], index: 9, kind: output, shape index: {0}]
  %s10 = inlined_call_operand.vmem [shape: f32[4,6,16], index: 10, kind: output, shape index: {1}]
  %11 = xla_tuple %s9, %s10
  %s12 = sld [smem:[#allocation0]]
  $region54: #{tpu_custom_call.1} parent=0
    _
  %s14 = ssub.s32 1, %s12
  %s15 = scalar_select 0, %s14, %s12
  // Predicated region
  $region2: #{tpu_custom_call.1} parent=0 // pred_check
    _
  $region3: #{tpu_custom_call.1} parent=0 // pred_check_branch
    %17 = sbr.rel (0) target = $region5
  $region4: #{tpu_custom_call.1} parent=0 // pred_region
    _
  $region5: #{tpu_custom_call.1} parent=0 // pred_fallthru
    _
  // Predicated region
  $region6: #{tpu_custom_call.1} parent=0 // pred_check
    _
  $region7: #{tpu_custom_call.1} parent=0 // pred_check_branch
    %19 = sbr.rel (0) target = $region9
  $region8: #{tpu_custom_call.1} parent=0 // pred_region
    _
  $region9: #{tpu_custom_call.1} parent=0 // pred_fallthru
    _
  // Predicated region
  $region10: #{tpu_custom_call.1} parent=0 // pred_check
    _
  $region11: #{tpu_custom_call.1} parent=0 // pred_check_branch
    %21 = sbr.rel (0) target = $region13
  $region12: #{tpu_custom_call.1} parent=0 // pred_region
    _
  $region13: #{tpu_custom_call.1} parent=0 // pred_fallthru
    _
  // Predicated region
  $region14: #{tpu_custom_call.1} parent=0 // pred_check
    _
  $region15: #{tpu_custom_call.1} parent=0 // pred_check_branch
    %23 = sbr.rel (0) target = $region17
  $region16: #{tpu_custom_call.1} parent=0 // pred_region
    _
  $region17: #{tpu_custom_call.1} parent=0 // pred_fallthru
    _
  // Predicated region
  $region18: #{tpu_custom_call.1} parent=0 // pred_check
    _
  $region19: #{tpu_custom_call.1} parent=0 // pred_check_branch
    %25 = sbr.rel (0) target = $region21
  $region20: #{tpu_custom_call.1} parent=0 // pred_region
    _
  $region21: #{tpu_custom_call.1} parent=0 // pred_fallthru
    _
  // Predicated region
  $region22: #{tpu_custom_call.1} parent=0 // pred_check
    _
  $region23: #{tpu_custom_call.1} parent=0 // pred_check_branch
    %27 = sbr.rel (0) target = $region25
  $region24: #{tpu_custom_call.1} parent=0 // pred_region
    _
  $region25: #{tpu_custom_call.1} parent=0 // pred_fallthru
    _
  // Predicated region
  $region26: #{tpu_custom_call.1} parent=0 // pred_check
    _
  $region27: #{tpu_custom_call.1} parent=0 // pred_check_branch
    %29 = sbr.rel (0) target = $region29
  $region28: #{tpu_custom_call.1} parent=0 // pred_region
    _
  $region29: #{tpu_custom_call.1} parent=0 // pred_fallthru
    _
  // Predicated region
  $region30: #{tpu_custom_call.1} parent=0 // pred_check
    _
  $region31: #{tpu_custom_call.1} parent=0 // pred_check_branch
    %31 = sbr.rel (0) target = $region33
  $region32: #{tpu_custom_call.1} parent=0 // pred_region
    _
  $region33: #{tpu_custom_call.1} parent=0 // pred_fallthru
    _
  // Predicated region
  $region34: #{tpu_custom_call.1} parent=0 // pred_check
    _
  $region35: #{tpu_custom_call.1} parent=0 // pred_check_branch
    %33 = sbr.rel (0) target = $region37
  $region36: #{tpu_custom_call.1} parent=0 // pred_region
    _
  $region37: #{tpu_custom_call.1} parent=0 // pred_fallthru
    _
  %v35 = vld [vmem:[%s1] sm:$0xf]
  %v36 = vld [vmem:[%s1 + $0x4] sm:$0xf]
  %v37 = vld [vmem:[%s1 + $0x8] sm:$0xf]
  %v38 = vld [vmem:[%s1 + $0xc] sm:$0xf]
  %v39 = vld [vmem:[%s1 + $0x10] sm:$0xf]
  %v40 = vld [vmem:[%s1 + $0x14] sm:$0xf]
  %v41 = vld [vmem:[%s1 + $0x18] sm:$0xf]
  %v42 = vld [vmem:[%s1 + $0x1c] sm:$0xf]
  %v43 = vld [vmem:[%s2] sm:$0xf]
  %45 = vset.pattern.permute.xlu0 0
  %46 = vperm.xlu0 %45, %v43
  %v47 = vpop.permute.xlu0 %46
  %v49 = vmul.f32 %v35, %v47
  %v50 = vmul.f32 %v36, %v47
  %v51 = vmul.f32 %v37, %v47
  %v52 = vmul.f32 %v38, %v47
  %v53 = vmul.f32 %v39, %v47
  %v54 = vmul.f32 %v40, %v47
  %v55 = vmul.f32 %v41, %v47
  %v56 = vmul.f32 %v42, %v47
  %v57 = vld [vmem:[%s3] sm:$0xf]
  %59 = vset.pattern.permute.xlu0 0
  %60 = vperm.xlu0 %59, %v57
  %v61 = vpop.permute.xlu0 %60
  %v63 = vadd.f32 %v49, %v61
  %v64 = vadd.f32 %v50, %v61
  %v65 = vadd.f32 %v51, %v61
  %v66 = vadd.f32 %v52, %v61
  %v67 = vadd.f32 %v53, %v61
  %v68 = vadd.f32 %v54, %v61
  %v69 = vadd.f32 %v55, %v61
  %v70 = vadd.f32 %v56, %v61
  %v71 = vpack.c.bf16 %v63, %v63
  %v72 = vpack.c.bf16 %v64, %v64
  %v73 = vpack.c.bf16 %v65, %v65
  %v74 = vpack.c.bf16 %v66, %v66
  %v75 = vpack.c.bf16 %v67, %v67
  %v76 = vpack.c.bf16 %v68, %v68
  %v77 = vpack.c.bf16 %v69, %v69
  %v78 = vpack.c.bf16 %v70, %v70
  %v79 = vld [vmem:[%s0] sm:$0xff]
  %v80 = vld [vmem:[%s0 + $0x8] sm:$0xff]
  %v81 = vld [vmem:[%s0 + $0x10] sm:$0xff]
  %v82 = vld [vmem:[%s0 + $0x18] sm:$0xff]
  %v83 = vld [vmem:[%s0 + $0x20] sm:$0xff]
  %v84 = vld [vmem:[%s0 + $0x28] sm:$0xff]
  %v85 = vld [vmem:[%s0 + $0x30] sm:$0xff]
  %v86 = vld [vmem:[%s0 + $0x38] sm:$0xff]
  %v87 = vld [vmem:[%s0 + $0x40] sm:$0xff]
  %v88 = vld [vmem:[%s0 + $0x48] sm:$0xff]
  %v89 = vld [vmem:[%s0 + $0x50] sm:$0xff]
  %v90 = vld [vmem:[%s0 + $0x58] sm:$0xff]
  %v91 = vld [vmem:[%s0 + $0x60] sm:$0xff]
  %v92 = vld [vmem:[%s0 + $0x68] sm:$0xff]
  %v93 = vld [vmem:[%s0 + $0x70] sm:$0xff]
  %v94 = vld [vmem:[%s0 + $0x78] sm:$0xff]
  %v95 = vld [vmem:[%s0 + $0x80] sm:$0xff]
  %v96 = vld [vmem:[%s0 + $0x88] sm:$0xff]
  %v97 = vld [vmem:[%s0 + $0x90] sm:$0xff]
  %v98 = vld [vmem:[%s0 + $0x98] sm:$0xff]
  %v99 = vld [vmem:[%s0 + $0xa0] sm:$0xff]
  %v100 = vld [vmem:[%s0 + $0xa8] sm:$0xff]
  %v101 = vld [vmem:[%s0 + $0xb0] sm:$0xff]
  %v102 = vld [vmem:[%s0 + $0xb8] sm:$0xff]
  %v103 = vld [vmem:[%s0 + $0xc0] sm:$0xff]
  %v104 = vld [vmem:[%s0 + $0xc8] sm:$0xff]
  %v105 = vld [vmem:[%s0 + $0xd0] sm:$0xff]
  %v106 = vld [vmem:[%s0 + $0xd8] sm:$0xff]
  %v107 = vld [vmem:[%s0 + $0xe0] sm:$0xff]
  %v108 = vld [vmem:[%s0 + $0xe8] sm:$0xff]
  %v109 = vld [vmem:[%s0 + $0xf0] sm:$0xff]
  %v110 = vld [vmem:[%s0 + $0xf8] sm:$0xff]
  %v111 = vld [vmem:[%s0 + $0x100] sm:$0xff]
  %v112 = vld [vmem:[%s0 + $0x108] sm:$0xff]
  %v113 = vld [vmem:[%s0 + $0x110] sm:$0xff]
  %v114 = vld [vmem:[%s0 + $0x118] sm:$0xff]
  %v115 = vld [vmem:[%s0 + $0x120] sm:$0xff]
  %v116 = vld [vmem:[%s0 + $0x128] sm:$0xff]
  %v117 = vld [vmem:[%s0 + $0x130] sm:$0xff]
  %v118 = vld [vmem:[%s0 + $0x138] sm:$0xff]
  %v119 = vld [vmem:[%s0 + $0x140] sm:$0xff]
  %v120 = vld [vmem:[%s0 + $0x148] sm:$0xff]
  %v121 = vld [vmem:[%s0 + $0x150] sm:$0xff]
  %v122 = vld [vmem:[%s0 + $0x158] sm:$0xff]
  %v123 = vld [vmem:[%s0 + $0x160] sm:$0xff]
  %v124 = vld [vmem:[%s0 + $0x168] sm:$0xff]
  %v125 = vld [vmem:[%s0 + $0x170] sm:$0xff]
  %v126 = vld [vmem:[%s0 + $0x178] sm:$0xff]
  %v127 = vld [vmem:[%s0 + $0x180] sm:$0xff]
  %v128 = vld [vmem:[%s0 + $0x188] sm:$0xff]
  %v129 = vld [vmem:[%s0 + $0x190] sm:$0xff]
  %v130 = vld [vmem:[%s0 + $0x198] sm:$0xff]
  %v131 = vld [vmem:[%s0 + $0x1a0] sm:$0xff]
  %v132 = vld [vmem:[%s0 + $0x1a8] sm:$0xff]
  %v133 = vld [vmem:[%s0 + $0x1b0] sm:$0xff]
  %v134 = vld [vmem:[%s0 + $0x1b8] sm:$0xff]
  %v135 = vld [vmem:[%s0 + $0x1c0] sm:$0xff]
  %v136 = vld [vmem:[%s0 + $0x1c8] sm:$0xff]
  %v137 = vld [vmem:[%s0 + $0x1d0] sm:$0xff]
  %v138 = vld [vmem:[%s0 + $0x1d8] sm:$0xff]
  %v139 = vld [vmem:[%s0 + $0x1e0] sm:$0xff]
  %v140 = vld [vmem:[%s0 + $0x1e8] sm:$0xff]
  %v141 = vld [vmem:[%s0 + $0x1f0] sm:$0xff]
  %v142 = vld [vmem:[%s0 + $0x1f8] sm:$0xff]
  %v143 = vpack.c.bf16 %v80, %v79
  %v144 = vpack.c.bf16 %v82, %v81
  %v145 = vpack.c.bf16 %v84, %v83
  %v146 = vpack.c.bf16 %v86, %v85
  %v147 = vpack.c.bf16 %v88, %v87
  %v148 = vpack.c.bf16 %v90, %v89
  %v149 = vpack.c.bf16 %v92, %v91
  %v150 = vpack.c.bf16 %v94, %v93
  %v151 = vpack.c.bf16 %v96, %v95
  %v152 = vpack.c.bf16 %v98, %v97
  %v153 = vpack.c.bf16 %v100, %v99
  %v154 = vpack.c.bf16 %v102, %v101
  %v155 = vpack.c.bf16 %v104, %v103
  %v156 = vpack.c.bf16 %v106, %v105
  %v157 = vpack.c.bf16 %v108, %v107
  %v158 = vpack.c.bf16 %v110, %v109
  %v159 = vpack.c.bf16 %v112, %v111
  %v160 = vpack.c.bf16 %v114, %v113
  %v161 = vpack.c.bf16 %v116, %v115
  %v162 = vpack.c.bf16 %v118, %v117
  %v163 = vpack.c.bf16 %v120, %v119
  %v164 = vpack.c.bf16 %v122, %v121
  %v165 = vpack.c.bf16 %v124, %v123
  %v166 = vpack.c.bf16 %v126, %v125
  %v167 = vpack.c.bf16 %v128, %v127
  %v168 = vpack.c.bf16 %v130, %v129
  %v169 = vpack.c.bf16 %v132, %v131
  %v170 = vpack.c.bf16 %v134, %v133
  %v171 = vpack.c.bf16 %v136, %v135
  %v172 = vpack.c.bf16 %v138, %v137
  %v173 = vpack.c.bf16 %v140, %v139
  %v174 = vpack.c.bf16 %v142, %v141
  %vm175 = vcmask 519168
  %v176 = vsel %vm175, %v63, 0.0
  %177 = vadd.xlane.f32.xlu0 %v176
  %v178 = vpop.xlane.xlu0 %177
  %v179 = vsel %vm175, %v64, 0.0
  %180 = vadd.xlane.f32.xlu0 %v179
  %v181 = vpop.xlane.xlu0 %180
  %v182 = vsel %vm175, %v65, 0.0
  %183 = vadd.xlane.f32.xlu0 %v182
  %v184 = vpop.xlane.xlu0 %183
  %v185 = vsel %vm175, %v66, 0.0
  %186 = vadd.xlane.f32.xlu0 %v185
  %v187 = vpop.xlane.xlu0 %186
  %v188 = vsel %vm175, %v67, 0.0
  %189 = vadd.xlane.f32.xlu0 %v188
  %v190 = vpop.xlane.xlu0 %189
  %v191 = vsel %vm175, %v68, 0.0
  %192 = vadd.xlane.f32.xlu0 %v191
  %v193 = vpop.xlane.xlu0 %192
  %v194 = vsel %vm175, %v69, 0.0
  %195 = vadd.xlane.f32.xlu0 %v194
  %v196 = vpop.xlane.xlu0 %195
  %v197 = vsel %vm175, %v70, 0.0
  %198 = vadd.xlane.f32.xlu0 %v197
  %v199 = vpop.xlane.xlu0 %198
  %vm200 = vcmask 523264
  %v202 = vsel %vm200, %v71, 0
  %204 = vmatprep.subr.bf16.mxu0 0
  %205 = vmatpush1.bf16.msra.mxu0 %v143
  %206 = vmatprep.subr.bf16.mxu0 0
  %207 = vmatpush1.bf16.msra.mxu0 %v144
  %208 = vmatprep.subr.bf16.mxu0 0
  %209 = vmatpush1.bf16.msra.mxu0 %v145
  %210 = vmatprep.subr.bf16.mxu0 0
  %211 = vmatpush1.bf16.msra.mxu0 %v146
  %212 = vmatprep.subr.bf16.mxu0 0
  %213 = vmatpush1.bf16.msra.mxu0 0
  %214 = vmatprep.subr.bf16.mxu0 0
  %215 = vmatpush1.bf16.msra.mxu0 0
  %216 = vmatprep.subr.bf16.mxu0 0
  %217 = vmatpush1.bf16.msra.mxu0 0
  %218 = vmatprep.subr.bf16.mxu0 0
  %219 = vmatpush1.bf16.msra.mxu0 0
  %220 = vmatprep.subr.bf16.mxu0 0
  %221 = vmatpush1.bf16.msra.mxu0 0
  %222 = vmatprep.subr.bf16.mxu0 0
  %223 = vmatpush1.bf16.msra.mxu0 0
  %224 = vmatprep.subr.bf16.mxu0 0
  %225 = vmatpush1.bf16.msra.mxu0 0
  %226 = vmatprep.subr.bf16.mxu0 0
  %227 = vmatpush1.bf16.msra.mxu0 0
  %228 = vmatprep.subr.bf16.mxu0 0
  %229 = vmatpush1.bf16.msra.mxu0 0
  %230 = vmatprep.subr.bf16.mxu0 0
  %231 = vmatpush1.bf16.msra.mxu0 0
  %232 = vmatprep.subr.bf16.mxu0 0
  %233 = vmatpush1.bf16.msra.mxu0 0
  %234 = vmatprep.subr.bf16.mxu0 0
  %235 = vmatpush1.bf16.msra.mxu0 0
  %236 = vmatprep.mubr.bf16.mxu0 0
  %237 = vmatmul.mubr.bf16.gmra.mrb[0].mxu0 %v202
  %v238 = vpop.f32.mrb[0].mxu0
  %v239 = vadd.f32 0.0, %v238
  %v240 = vpop.f32.mrb[0].mxu0
  %v241 = vpop.f32.mrb[0].mxu0
  %v242 = vpop.f32.mrb[0].mxu0
  %243 = vdwg.mxu0
  %v245 = vsel %vm200, %v72, 0
  %247 = vmatprep.subr.bf16.mxu0 0
  %248 = vmatpush1.bf16.msra.mxu0 %v147
  %249 = vmatprep.subr.bf16.mxu0 0
  %250 = vmatpush1.bf16.msra.mxu0 %v148
  %251 = vmatprep.subr.bf16.mxu0 0
  %252 = vmatpush1.bf16.msra.mxu0 %v149
  %253 = vmatprep.subr.bf16.mxu0 0
  %254 = vmatpush1.bf16.msra.mxu0 %v150
  %255 = vmatprep.subr.bf16.mxu0 0
  %256 = vmatpush1.bf16.msra.mxu0 0
  %257 = vmatprep.subr.bf16.mxu0 0
  %258 = vmatpush1.bf16.msra.mxu0 0
  %259 = vmatprep.subr.bf16.mxu0 0
  %260 = vmatpush1.bf16.msra.mxu0 0
  %261 = vmatprep.subr.bf16.mxu0 0
  %262 = vmatpush1.bf16.msra.mxu0 0
  %263 = vmatprep.subr.bf16.mxu0 0
  %264 = vmatpush1.bf16.msra.mxu0 0
  %265 = vmatprep.subr.bf16.mxu0 0
  %266 = vmatpush1.bf16.msra.mxu0 0
  %267 = vmatprep.subr.bf16.mxu0 0
  %268 = vmatpush1.bf16.msra.mxu0 0
  %269 = vmatprep.subr.bf16.mxu0 0
  %270 = vmatpush1.bf16.msra.mxu0 0
  %271 = vmatprep.subr.bf16.mxu0 0
  %272 = vmatpush1.bf16.msra.mxu0 0
  %273 = vmatprep.subr.bf16.mxu0 0
  %274 = vmatpush1.bf16.msra.mxu0 0
  %275 = vmatprep.subr.bf16.mxu0 0
  %276 = vmatpush1.bf16.msra.mxu0 0
  %277 = vmatprep.subr.bf16.mxu0 0
  %278 = vmatpush1.bf16.msra.mxu0 0
  %279 = vmatprep.mubr.bf16.mxu0 0
  %280 = vmatmul.mubr.bf16.gmra.mrb[0].mxu0 %v245
  %v281 = vpop.f32.mrb[0].mxu0
  %v282 = vadd.f32 0.0, %v281
  %v283 = vpop.f32.mrb[0].mxu0
  %v284 = vpop.f32.mrb[0].mxu0
  %v285 = vpop.f32.mrb[0].mxu0
  %286 = vdwg.mxu0
  %v288 = vsel %vm200, %v73, 0
  %290 = vmatprep.subr.bf16.mxu0 0
  %291 = vmatpush1.bf16.msra.mxu0 %v151
  %292 = vmatprep.subr.bf16.mxu0 0
  %293 = vmatpush1.bf16.msra.mxu0 %v152
  %294 = vmatprep.subr.bf16.mxu0 0
  %295 = vmatpush1.bf16.msra.mxu0 %v153
  %296 = vmatprep.subr.bf16.mxu0 0
  %297 = vmatpush1.bf16.msra.mxu0 %v154
  %298 = vmatprep.subr.bf16.mxu0 0
  %299 = vmatpush1.bf16.msra.mxu0 0
  %300 = vmatprep.subr.bf16.mxu0 0
  %301 = vmatpush1.bf16.msra.mxu0 0
  %302 = vmatprep.subr.bf16.mxu0 0
  %303 = vmatpush1.bf16.msra.mxu0 0
  %304 = vmatprep.subr.bf16.mxu0 0
  %305 = vmatpush1.bf16.msra.mxu0 0
  %306 = vmatprep.subr.bf16.mxu0 0
  %307 = vmatpush1.bf16.msra.mxu0 0
  %308 = vmatprep.subr.bf16.mxu0 0
  %309 = vmatpush1.bf16.msra.mxu0 0
  %310 = vmatprep.subr.bf16.mxu0 0
  %311 = vmatpush1.bf16.msra.mxu0 0
  %312 = vmatprep.subr.bf16.mxu0 0
  %313 = vmatpush1.bf16.msra.mxu0 0
  %314 = vmatprep.subr.bf16.mxu0 0
  %315 = vmatpush1.bf16.msra.mxu0 0
  %316 = vmatprep.subr.bf16.mxu0 0
  %317 = vmatpush1.bf16.msra.mxu0 0
  %318 = vmatprep.subr.bf16.mxu0 0
  %319 = vmatpush1.bf16.msra.mxu0 0
  %320 = vmatprep.subr.bf16.mxu0 0
  %321 = vmatpush1.bf16.msra.mxu0 0
  %322 = vmatprep.mubr.bf16.mxu0 0
  %323 = vmatmul.mubr.bf16.gmra.mrb[0].mxu0 %v288
  %v324 = vpop.f32.mrb[0].mxu0
  %v325 = vadd.f32 0.0, %v324
  %v326 = vpop.f32.mrb[0].mxu0
  %v327 = vpop.f32.mrb[0].mxu0
  %v328 = vpop.f32.mrb[0].mxu0
  %329 = vdwg.mxu0
  %v331 = vsel %vm200, %v74, 0
  %333 = vmatprep.subr.bf16.mxu0 0
  %334 = vmatpush1.bf16.msra.mxu0 %v155
  %335 = vmatprep.subr.bf16.mxu0 0
  %336 = vmatpush1.bf16.msra.mxu0 %v156
  %337 = vmatprep.subr.bf16.mxu0 0
  %338 = vmatpush1.bf16.msra.mxu0 %v157
  %339 = vmatprep.subr.bf16.mxu0 0
  %340 = vmatpush1.bf16.msra.mxu0 %v158
  %341 = vmatprep.subr.bf16.mxu0 0
  %342 = vmatpush1.bf16.msra.mxu0 0
  %343 = vmatprep.subr.bf16.mxu0 0
  %344 = vmatpush1.bf16.msra.mxu0 0
  %345 = vmatprep.subr.bf16.mxu0 0
  %346 = vmatpush1.bf16.msra.mxu0 0
  %347 = vmatprep.subr.bf16.mxu0 0
  %348 = vmatpush1.bf16.msra.mxu0 0
  %349 = vmatprep.subr.bf16.mxu0 0
  %350 = vmatpush1.bf16.msra.mxu0 0
  %351 = vmatprep.subr.bf16.mxu0 0
  %352 = vmatpush1.bf16.msra.mxu0 0
  %353 = vmatprep.subr.bf16.mxu0 0
  %354 = vmatpush1.bf16.msra.mxu0 0
  %355 = vmatprep.subr.bf16.mxu0 0
  %356 = vmatpush1.bf16.msra.mxu0 0
  %357 = vmatprep.subr.bf16.mxu0 0
  %358 = vmatpush1.bf16.msra.mxu0 0
  %359 = vmatprep.subr.bf16.mxu0 0
  %360 = vmatpush1.bf16.msra.mxu0 0
  %361 = vmatprep.subr.bf16.mxu0 0
  %362 = vmatpush1.bf16.msra.mxu0 0
  %363 = vmatprep.subr.bf16.mxu0 0
  %364 = vmatpush1.bf16.msra.mxu0 0
  %365 = vmatprep.mubr.bf16.mxu0 0
  %366 = vmatmul.mubr.bf16.gmra.mrb[0].mxu0 %v331
  %v367 = vpop.f32.mrb[0].mxu0
  %v368 = vadd.f32 0.0, %v367
  %v369 = vpop.f32.mrb[0].mxu0
  %v370 = vpop.f32.mrb[0].mxu0
  %v371 = vpop.f32.mrb[0].mxu0
  %372 = vdwg.mxu0
  %v374 = vsel %vm200, %v75, 0
  %376 = vmatprep.subr.bf16.mxu0 0
  %377 = vmatpush1.bf16.msra.mxu0 %v159
  %378 = vmatprep.subr.bf16.mxu0 0
  %379 = vmatpush1.bf16.msra.mxu0 %v160
  %380 = vmatprep.subr.bf16.mxu0 0
  %381 = vmatpush1.bf16.msra.mxu0 %v161
  %382 = vmatprep.subr.bf16.mxu0 0
  %383 = vmatpush1.bf16.msra.mxu0 %v162
  %384 = vmatprep.subr.bf16.mxu0 0
  %385 = vmatpush1.bf16.msra.mxu0 0
  %386 = vmatprep.subr.bf16.mxu0 0
  %387 = vmatpush1.bf16.msra.mxu0 0
  %388 = vmatprep.subr.bf16.mxu0 0
  %389 = vmatpush1.bf16.msra.mxu0 0
  %390 = vmatprep.subr.bf16.mxu0 0
  %391 = vmatpush1.bf16.msra.mxu0 0
  %392 = vmatprep.subr.bf16.mxu0 0
  %393 = vmatpush1.bf16.msra.mxu0 0
  %394 = vmatprep.subr.bf16.mxu0 0
  %395 = vmatpush1.bf16.msra.mxu0 0
  %396 = vmatprep.subr.bf16.mxu0 0
  %397 = vmatpush1.bf16.msra.mxu0 0
  %398 = vmatprep.subr.bf16.mxu0 0
  %399 = vmatpush1.bf16.msra.mxu0 0
  %400 = vmatprep.subr.bf16.mxu0 0
  %401 = vmatpush1.bf16.msra.mxu0 0
  %402 = vmatprep.subr.bf16.mxu0 0
  %403 = vmatpush1.bf16.msra.mxu0 0
  %404 = vmatprep.subr.bf16.mxu0 0
  %405 = vmatpush1.bf16.msra.mxu0 0
  %406 = vmatprep.subr.bf16.mxu0 0
  %407 = vmatpush1.bf16.msra.mxu0 0
  %408 = vmatprep.mubr.bf16.mxu0 0
  %409 = vmatmul.mubr.bf16.gmra.mrb[0].mxu0 %v374
  %v410 = vpop.f32.mrb[0].mxu0
  %v411 = vadd.f32 0.0, %v410
  %v412 = vpop.f32.mrb[0].mxu0
  %v413 = vpop.f32.mrb[0].mxu0
  %v414 = vpop.f32.mrb[0].mxu0
  %415 = vdwg.mxu0
  %v417 = vsel %vm200, %v76, 0
  %419 = vmatprep.subr.bf16.mxu0 0
  %420 = vmatpush1.bf16.msra.mxu0 %v163
  %421 = vmatprep.subr.bf16.mxu0 0
  %422 = vmatpush1.bf16.msra.mxu0 %v164
  %423 = vmatprep.subr.bf16.mxu0 0
  %424 = vmatpush1.bf16.msra.mxu0 %v165
  %425 = vmatprep.subr.bf16.mxu0 0
  %426 = vmatpush1.bf16.msra.mxu0 %v166
  %427 = vmatprep.subr.bf16.mxu0 0
  %428 = vmatpush1.bf16.msra.mxu0 0
  %429 = vmatprep.subr.bf16.mxu0 0
  %430 = vmatpush1.bf16.msra.mxu0 0
  %431 = vmatprep.subr.bf16.mxu0 0
  %432 = vmatpush1.bf16.msra.mxu0 0
  %433 = vmatprep.subr.bf16.mxu0 0
  %434 = vmatpush1.bf16.msra.mxu0 0
  %435 = vmatprep.subr.bf16.mxu0 0
  %436 = vmatpush1.bf16.msra.mxu0 0
  %437 = vmatprep.subr.bf16.mxu0 0
  %438 = vmatpush1.bf16.msra.mxu0 0
  %439 = vmatprep.subr.bf16.mxu0 0
  %440 = vmatpush1.bf16.msra.mxu0 0
  %441 = vmatprep.subr.bf16.mxu0 0
  %442 = vmatpush1.bf16.msra.mxu0 0
  %443 = vmatprep.subr.bf16.mxu0 0
  %444 = vmatpush1.bf16.msra.mxu0 0
  %445 = vmatprep.subr.bf16.mxu0 0
  %446 = vmatpush1.bf16.msra.mxu0 0
  %447 = vmatprep.subr.bf16.mxu0 0
  %448 = vmatpush1.bf16.msra.mxu0 0
  %449 = vmatprep.subr.bf16.mxu0 0
  %450 = vmatpush1.bf16.msra.mxu0 0
  %451 = vmatprep.mubr.bf16.mxu0 0
  %452 = vmatmul.mubr.bf16.gmra.mrb[0].mxu0 %v417
  %v453 = vpop.f32.mrb[0].mxu0
  %v454 = vadd.f32 0.0, %v453
  %v455 = vpop.f32.mrb[0].mxu0
  %v456 = vpop.f32.mrb[0].mxu0
  %v457 = vpop.f32.mrb[0].mxu0
  %458 = vdwg.mxu0
  %v460 = vsel %vm200, %v77, 0
  %462 = vmatprep.subr.bf16.mxu0 0
  %463 = vmatpush1.bf16.msra.mxu0 %v167
  %464 = vmatprep.subr.bf16.mxu0 0
  %465 = vmatpush1.bf16.msra.mxu0 %v168
  %466 = vmatprep.subr.bf16.mxu0 0
  %467 = vmatpush1.bf16.msra.mxu0 %v169
  %468 = vmatprep.subr.bf16.mxu0 0
  %469 = vmatpush1.bf16.msra.mxu0 %v170
  %470 = vmatprep.subr.bf16.mxu0 0
  %471 = vmatpush1.bf16.msra.mxu0 0
  %472 = vmatprep.subr.bf16.mxu0 0
  %473 = vmatpush1.bf16.msra.mxu0 0
  %474 = vmatprep.subr.bf16.mxu0 0
  %475 = vmatpush1.bf16.msra.mxu0 0
  %476 = vmatprep.subr.bf16.mxu0 0
  %477 = vmatpush1.bf16.msra.mxu0 0
  %478 = vmatprep.subr.bf16.mxu0 0
  %479 = vmatpush1.bf16.msra.mxu0 0
  %480 = vmatprep.subr.bf16.mxu0 0
  %481 = vmatpush1.bf16.msra.mxu0 0
  %482 = vmatprep.subr.bf16.mxu0 0
  %483 = vmatpush1.bf16.msra.mxu0 0
  %484 = vmatprep.subr.bf16.mxu0 0
  %485 = vmatpush1.bf16.msra.mxu0 0
  %486 = vmatprep.subr.bf16.mxu0 0
  %487 = vmatpush1.bf16.msra.mxu0 0
  %488 = vmatprep.subr.bf16.mxu0 0
  %489 = vmatpush1.bf16.msra.mxu0 0
  %490 = vmatprep.subr.bf16.mxu0 0
  %491 = vmatpush1.bf16.msra.mxu0 0
  %492 = vmatprep.subr.bf16.mxu0 0
  %493 = vmatpush1.bf16.msra.mxu0 0
  %494 = vmatprep.mubr.bf16.mxu0 0
  %495 = vmatmul.mubr.bf16.gmra.mrb[0].mxu0 %v460
  %v496 = vpop.f32.mrb[0].mxu0
  %v497 = vadd.f32 0.0, %v496
  %v498 = vpop.f32.mrb[0].mxu0
  %v499 = vpop.f32.mrb[0].mxu0
  %v500 = vpop.f32.mrb[0].mxu0
  %501 = vdwg.mxu0
  %v503 = vsel %vm200, %v78, 0
  %505 = vmatprep.subr.bf16.mxu0 0
  %506 = vmatpush1.bf16.msra.mxu0 %v171
  %507 = vmatprep.subr.bf16.mxu0 0
  %508 = vmatpush1.bf16.msra.mxu0 %v172
  %509 = vmatprep.subr.bf16.mxu0 0
  %510 = vmatpush1.bf16.msra.mxu0 %v173
  %511 = vmatprep.subr.bf16.mxu0 0
  %512 = vmatpush1.bf16.msra.mxu0 %v174
  %513 = vmatprep.subr.bf16.mxu0 0
  %514 = vmatpush1.bf16.msra.mxu0 0
  %515 = vmatprep.subr.bf16.mxu0 0
  %516 = vmatpush1.bf16.msra.mxu0 0
  %517 = vmatprep.subr.bf16.mxu0 0
  %518 = vmatpush1.bf16.msra.mxu0 0
  %519 = vmatprep.subr.bf16.mxu0 0
  %520 = vmatpush1.bf16.msra.mxu0 0
  %521 = vmatprep.subr.bf16.mxu0 0
  %522 = vmatpush1.bf16.msra.mxu0 0
  %523 = vmatprep.subr.bf16.mxu0 0
  %524 = vmatpush1.bf16.msra.mxu0 0
  %525 = vmatprep.subr.bf16.mxu0 0
  %526 = vmatpush1.bf16.msra.mxu0 0
  %527 = vmatprep.subr.bf16.mxu0 0
  %528 = vmatpush1.bf16.msra.mxu0 0
  %529 = vmatprep.subr.bf16.mxu0 0
  %530 = vmatpush1.bf16.msra.mxu0 0
  %531 = vmatprep.subr.bf16.mxu0 0
  %532 = vmatpush1.bf16.msra.mxu0 0
  %533 = vmatprep.subr.bf16.mxu0 0
  %534 = vmatpush1.bf16.msra.mxu0 0
  %535 = vmatprep.subr.bf16.mxu0 0
  %536 = vmatpush1.bf16.msra.mxu0 0
  %537 = vmatprep.mubr.bf16.mxu0 0
  %538 = vmatmul.mubr.bf16.gmra.mrb[0].mxu0 %v503
  %v539 = vpop.f32.mrb[0].mxu0
  %v540 = vadd.f32 0.0, %v539
  %v541 = vpop.f32.mrb[0].mxu0
  %v542 = vpop.f32.mrb[0].mxu0
  %v543 = vpop.f32.mrb[0].mxu0
  %544 = vdwg.mxu0
  %v545 = vpack.c.bf16 %v239, %v239
  %v546 = vpack.c.bf16 %v282, %v282
  %v547 = vpack.c.bf16 %v325, %v325
  %v548 = vpack.c.bf16 %v368, %v368
  %v549 = vpack.c.bf16 %v411, %v411
  %v550 = vpack.c.bf16 %v454, %v454
  %v551 = vpack.c.bf16 %v497, %v497
  %v552 = vpack.c.bf16 %v540, %v540
  %v553 = vld [vmem:[%s4] sm:$0xf]
  %v554 = vld [vmem:[%s4 + $0x4] sm:$0xf]
  %v555 = vld [vmem:[%s4 + $0x8] sm:$0xf]
  %v556 = vld [vmem:[%s4 + $0xc] sm:$0xf]
  %v557 = vld [vmem:[%s4 + $0x10] sm:$0xf]
  %v558 = vld [vmem:[%s4 + $0x14] sm:$0xf]
  %v559 = vld [vmem:[%s4 + $0x18] sm:$0xf]
  %v560 = vld [vmem:[%s4 + $0x1c] sm:$0xf]
  %v561 = vld [vmem:[%s4 + $0x20] sm:$0xf]
  %v562 = vld [vmem:[%s4 + $0x24] sm:$0xf]
  %v563 = vld [vmem:[%s4 + $0x28] sm:$0xf]
  %v564 = vld [vmem:[%s4 + $0x2c] sm:$0xf]
  %v565 = vld [vmem:[%s4 + $0x30] sm:$0xf]
  %v566 = vld [vmem:[%s4 + $0x34] sm:$0xf]
  %v567 = vld [vmem:[%s4 + $0x38] sm:$0xf]
  %v568 = vld [vmem:[%s4 + $0x3c] sm:$0xf]
  %v569 = vld [vmem:[%s5] sm:$0x1]
  %v570 = vlaneseq
  %v571 = vshrl.u32 %v570, 7
  %v572 = vsub.s32 0, %v571
  %v573 = vrot.slane %v178, %v572
  %v574 = vlaneseq
  %v575 = vshrl.u32 %v574, 7
  %v576 = vsub.s32 0, %v575
  %v577 = vrot.slane %v181, %v576
  %v578 = vlaneseq
  %v579 = vshrl.u32 %v578, 7
  %v580 = vsub.s32 0, %v579
  %v581 = vrot.slane %v184, %v580
  %v582 = vlaneseq
  %v583 = vshrl.u32 %v582, 7
  %v584 = vsub.s32 0, %v583
  %v585 = vrot.slane %v187, %v584
  %v586 = vlaneseq
  %v587 = vshrl.u32 %v586, 7
  %v588 = vsub.s32 0, %v587
  %v589 = vrot.slane %v190, %v588
  %v590 = vlaneseq
  %v591 = vshrl.u32 %v590, 7
  %v592 = vsub.s32 0, %v591
  %v593 = vrot.slane %v193, %v592
  %v594 = vlaneseq
  %v595 = vshrl.u32 %v594, 7
  %v596 = vsub.s32 0, %v595
  %v597 = vrot.slane %v196, %v596
  %v598 = vlaneseq
  %v599 = vshrl.u32 %v598, 7
  %v600 = vsub.s32 0, %v599
  %v601 = vrot.slane %v199, %v600
  %v602 = vlaneseq
  %v603 = vshrl.u32 %v602, 7
  %v604 = vsub.s32 0, %v603
  %v605 = vrot.slane %v569, %v604
  %608 = vbcast.lane.b32.xlu0 %v605, 256
  %v609 = vpop.permute.xlu0 %608
  %s611 = sor.u32 256, 8
  %612 = vbcast.lane.b32.xlu0 %v605, %s611
  %v613 = vpop.permute.xlu0 %612
  %s615 = sor.u32 256, 16
  %616 = vbcast.lane.b32.xlu0 %v605, %s615
  %v617 = vpop.permute.xlu0 %616
  %s619 = sor.u32 256, 24
  %620 = vbcast.lane.b32.xlu0 %v605, %s619
  %v621 = vpop.permute.xlu0 %620
  %s623 = sor.u32 256, 32
  %624 = vbcast.lane.b32.xlu0 %v605, %s623
  %v625 = vpop.permute.xlu0 %624
  %s627 = sor.u32 256, 40
  %628 = vbcast.lane.b32.xlu0 %v605, %s627
  %v629 = vpop.permute.xlu0 %628
  %s631 = sor.u32 256, 48
  %632 = vbcast.lane.b32.xlu0 %v605, %s631
  %v633 = vpop.permute.xlu0 %632
  %s635 = sor.u32 256, 56
  %636 = vbcast.lane.b32.xlu0 %v605, %s635
  %v637 = vpop.permute.xlu0 %636
  %v646 = vmul.f32 %v573, %v609
  %v647 = vmul.f32 %v573, %v613
  %v648 = vmul.f32 %v573, %v617
  %v649 = vmul.f32 %v573, %v621
  %v650 = vmul.f32 %v573, %v625
  %v651 = vmul.f32 %v573, %v629
  %v652 = vmul.f32 %v573, %v633
  %v653 = vmul.f32 %v573, %v637
  %v654 = vmul.f32 %v577, %v609
  %v655 = vmul.f32 %v577, %v613
  %v656 = vmul.f32 %v577, %v617
  %v657 = vmul.f32 %v577, %v621
  %v658 = vmul.f32 %v577, %v625
  %v659 = vmul.f32 %v577, %v629
  %v660 = vmul.f32 %v577, %v633
  %v661 = vmul.f32 %v577, %v637
  %v662 = vmul.f32 %v581, %v609
  %v663 = vmul.f32 %v581, %v613
  %v664 = vmul.f32 %v581, %v617
  %v665 = vmul.f32 %v581, %v621
  %v666 = vmul.f32 %v581, %v625
  %v667 = vmul.f32 %v581, %v629
  %v668 = vmul.f32 %v581, %v633
  %v669 = vmul.f32 %v581, %v637
  %v670 = vmul.f32 %v585, %v609
  %v671 = vmul.f32 %v585, %v613
  %v672 = vmul.f32 %v585, %v617
  %v673 = vmul.f32 %v585, %v621
  %v674 = vmul.f32 %v585, %v625
  %v675 = vmul.f32 %v585, %v629
  %v676 = vmul.f32 %v585, %v633
  %v677 = vmul.f32 %v585, %v637
  %v678 = vmul.f32 %v589, %v609
  %v679 = vmul.f32 %v589, %v613
  %v680 = vmul.f32 %v589, %v617
  %v681 = vmul.f32 %v589, %v621
  %v682 = vmul.f32 %v589, %v625
  %v683 = vmul.f32 %v589, %v629
  %v684 = vmul.f32 %v589, %v633
  %v685 = vmul.f32 %v589, %v637
  %v686 = vmul.f32 %v593, %v609
  %v687 = vmul.f32 %v593, %v613
  %v688 = vmul.f32 %v593, %v617
  %v689 = vmul.f32 %v593, %v621
  %v690 = vmul.f32 %v593, %v625
  %v691 = vmul.f32 %v593, %v629
  %v692 = vmul.f32 %v593, %v633
  %v693 = vmul.f32 %v593, %v637
  %v694 = vmul.f32 %v597, %v609
  %v695 = vmul.f32 %v597, %v613
  %v696 = vmul.f32 %v597, %v617
  %v697 = vmul.f32 %v597, %v621
  %v698 = vmul.f32 %v597, %v625
  %v699 = vmul.f32 %v597, %v629
  %v700 = vmul.f32 %v597, %v633
  %v701 = vmul.f32 %v597, %v637
  %v702 = vmul.f32 %v601, %v609
  %v703 = vmul.f32 %v601, %v613
  %v704 = vmul.f32 %v601, %v617
  %v705 = vmul.f32 %v601, %v621
  %v706 = vmul.f32 %v601, %v625
  %v707 = vmul.f32 %v601, %v629
  %v708 = vmul.f32 %v601, %v633
  %v709 = vmul.f32 %v601, %v637
  %v718 = vunpack.c.l.b16 %v545
  %v719 = vunpack.c.l.b16 %v546
  %v720 = vunpack.c.l.b16 %v547
  %v721 = vunpack.c.l.b16 %v548
  %v722 = vunpack.c.l.b16 %v549
  %v723 = vunpack.c.l.b16 %v550
  %v724 = vunpack.c.l.b16 %v551
  %v725 = vunpack.c.l.b16 %v552
  %v726 = vrot.slane %v719, 7
  %vm727 = vcmask 1041409
  %v728 = vsel %vm727, %v726, %v718
  %v729 = vrot.slane %v720, 6
  %vm730 = vcmask 1042434
  %v731 = vsel %vm730, %v729, %v728
  %v732 = vrot.slane %v721, 5
  %vm733 = vcmask 1043459
  %v734 = vsel %vm733, %v732, %v731
  %v735 = vrot.slane %v722, 4
  %vm736 = vcmask 1044484
  %v737 = vsel %vm736, %v735, %v734
  %v738 = vrot.slane %v723, 3
  %vm739 = vcmask 1045509
  %v740 = vsel %vm739, %v738, %v737
  %v741 = vrot.slane %v724, 2
  %vm742 = vcmask 1046534
  %v743 = vsel %vm742, %v741, %v740
  %v744 = vrot.slane %v725, 1
  %vm745 = vcmask 1047559
  %v746 = vsel %vm745, %v744, %v743
  %v747 = vpack.c.b16 %v746, %v746
  %v765 = vunpack.c.l.b16 %v553
  %v766 = vunpack.c.l.b16 %v554
  %v767 = vunpack.c.l.b16 %v555
  %v768 = vunpack.c.l.b16 %v556
  %v769 = vunpack.c.l.b16 %v557
  %v770 = vunpack.c.l.b16 %v558
  %v771 = vunpack.c.l.b16 %v559
  %v772 = vunpack.c.l.b16 %v560
  %v773 = vunpack.c.l.b16 %v561
  %v774 = vunpack.c.l.b16 %v562
  %v775 = vunpack.c.l.b16 %v563
  %v776 = vunpack.c.l.b16 %v564
  %v777 = vunpack.c.l.b16 %v565
  %v778 = vunpack.c.l.b16 %v566
  %v779 = vunpack.c.l.b16 %v567
  %v780 = vunpack.c.l.b16 %v568
  %v781 = vpack.c.b16 %v766, %v765
  %v782 = vpack.c.b16 %v768, %v767
  %v783 = vpack.c.b16 %v770, %v769
  %v784 = vpack.c.b16 %v772, %v771
  %v785 = vpack.c.b16 %v774, %v773
  %v786 = vpack.c.b16 %v776, %v775
  %v787 = vpack.c.b16 %v778, %v777
  %v788 = vpack.c.b16 %v780, %v779
  %861 = vset.pattern.permute.xlu0 0
  %862 = vperm.xlu0 %861, %v646
  %v863 = vpop.permute.xlu0 %862
  %864 = vset.pattern.permute.xlu0 0
  %865 = vperm.xlu0 %864, %v647
  %v866 = vpop.permute.xlu0 %865
  %867 = vset.pattern.permute.xlu0 0
  %868 = vperm.xlu0 %867, %v648
  %v869 = vpop.permute.xlu0 %868
  %870 = vset.pattern.permute.xlu0 0
  %871 = vperm.xlu0 %870, %v649
  %v872 = vpop.permute.xlu0 %871
  %873 = vset.pattern.permute.xlu0 0
  %874 = vperm.xlu0 %873, %v650
  %v875 = vpop.permute.xlu0 %874
  %876 = vset.pattern.permute.xlu0 0
  %877 = vperm.xlu0 %876, %v651
  %v878 = vpop.permute.xlu0 %877
  %879 = vset.pattern.permute.xlu0 0
  %880 = vperm.xlu0 %879, %v652
  %v881 = vpop.permute.xlu0 %880
  %882 = vset.pattern.permute.xlu0 0
  %883 = vperm.xlu0 %882, %v653
  %v884 = vpop.permute.xlu0 %883
  %885 = vset.pattern.permute.xlu0 0
  %886 = vperm.xlu0 %885, %v654
  %v887 = vpop.permute.xlu0 %886
  %888 = vset.pattern.permute.xlu0 0
  %889 = vperm.xlu0 %888, %v655
  %v890 = vpop.permute.xlu0 %889
  %891 = vset.pattern.permute.xlu0 0
  %892 = vperm.xlu0 %891, %v656
  %v893 = vpop.permute.xlu0 %892
  %894 = vset.pattern.permute.xlu0 0
  %895 = vperm.xlu0 %894, %v657
  %v896 = vpop.permute.xlu0 %895
  %897 = vset.pattern.permute.xlu0 0
  %898 = vperm.xlu0 %897, %v658
  %v899 = vpop.permute.xlu0 %898
  %900 = vset.pattern.permute.xlu0 0
  %901 = vperm.xlu0 %900, %v659
  %v902 = vpop.permute.xlu0 %901
  %903 = vset.pattern.permute.xlu0 0
  %904 = vperm.xlu0 %903, %v660
  %v905 = vpop.permute.xlu0 %904
  %906 = vset.pattern.permute.xlu0 0
  %907 = vperm.xlu0 %906, %v661
  %v908 = vpop.permute.xlu0 %907
  %909 = vset.pattern.permute.xlu0 0
  %910 = vperm.xlu0 %909, %v662
  %v911 = vpop.permute.xlu0 %910
  %912 = vset.pattern.permute.xlu0 0
  %913 = vperm.xlu0 %912, %v663
  %v914 = vpop.permute.xlu0 %913
  %915 = vset.pattern.permute.xlu0 0
  %916 = vperm.xlu0 %915, %v664
  %v917 = vpop.permute.xlu0 %916
  %918 = vset.pattern.permute.xlu0 0
  %919 = vperm.xlu0 %918, %v665
  %v920 = vpop.permute.xlu0 %919
  %921 = vset.pattern.permute.xlu0 0
  %922 = vperm.xlu0 %921, %v666
  %v923 = vpop.permute.xlu0 %922
  %924 = vset.pattern.permute.xlu0 0
  %925 = vperm.xlu0 %924, %v667
  %v926 = vpop.permute.xlu0 %925
  %927 = vset.pattern.permute.xlu0 0
  %928 = vperm.xlu0 %927, %v668
  %v929 = vpop.permute.xlu0 %928
  %930 = vset.pattern.permute.xlu0 0
  %931 = vperm.xlu0 %930, %v669
  %v932 = vpop.permute.xlu0 %931
  %933 = vset.pattern.permute.xlu0 0
  %934 = vperm.xlu0 %933, %v670
  %v935 = vpop.permute.xlu0 %934
  %936 = vset.pattern.permute.xlu0 0
  %937 = vperm.xlu0 %936, %v671
  %v938 = vpop.permute.xlu0 %937
  %939 = vset.pattern.permute.xlu0 0
  %940 = vperm.xlu0 %939, %v672
  %v941 = vpop.permute.xlu0 %940
  %942 = vset.pattern.permute.xlu0 0
  %943 = vperm.xlu0 %942, %v673
  %v944 = vpop.permute.xlu0 %943
  %945 = vset.pattern.permute.xlu0 0
  %946 = vperm.xlu0 %945, %v674
  %v947 = vpop.permute.xlu0 %946
  %948 = vset.pattern.permute.xlu0 0
  %949 = vperm.xlu0 %948, %v675
  %v950 = vpop.permute.xlu0 %949
  %951 = vset.pattern.permute.xlu0 0
  %952 = vperm.xlu0 %951, %v676
  %v953 = vpop.permute.xlu0 %952
  %954 = vset.pattern.permute.xlu0 0
  %955 = vperm.xlu0 %954, %v677
  %v956 = vpop.permute.xlu0 %955
  %957 = vset.pattern.permute.xlu0 0
  %958 = vperm.xlu0 %957, %v678
  %v959 = vpop.permute.xlu0 %958
  %960 = vset.pattern.permute.xlu0 0
  %961 = vperm.xlu0 %960, %v679
  %v962 = vpop.permute.xlu0 %961
  %963 = vset.pattern.permute.xlu0 0
  %964 = vperm.xlu0 %963, %v680
  %v965 = vpop.permute.xlu0 %964
  %966 = vset.pattern.permute.xlu0 0
  %967 = vperm.xlu0 %966, %v681
  %v968 = vpop.permute.xlu0 %967
  %969 = vset.pattern.permute.xlu0 0
  %970 = vperm.xlu0 %969, %v682
  %v971 = vpop.permute.xlu0 %970
  %972 = vset.pattern.permute.xlu0 0
  %973 = vperm.xlu0 %972, %v683
  %v974 = vpop.permute.xlu0 %973
  %975 = vset.pattern.permute.xlu0 0
  %976 = vperm.xlu0 %975, %v684
  %v977 = vpop.permute.xlu0 %976
  %978 = vset.pattern.permute.xlu0 0
  %979 = vperm.xlu0 %978, %v685
  %v980 = vpop.permute.xlu0 %979
  %981 = vset.pattern.permute.xlu0 0
  %982 = vperm.xlu0 %981, %v686
  %v983 = vpop.permute.xlu0 %982
  %984 = vset.pattern.permute.xlu0 0
  %985 = vperm.xlu0 %984, %v687
  %v986 = vpop.permute.xlu0 %985
  %987 = vset.pattern.permute.xlu0 0
  %988 = vperm.xlu0 %987, %v688
  %v989 = vpop.permute.xlu0 %988
  %990 = vset.pattern.permute.xlu0 0
  %991 = vperm.xlu0 %990, %v689
  %v992 = vpop.permute.xlu0 %991
  %993 = vset.pattern.permute.xlu0 0
  %994 = vperm.xlu0 %993, %v690
  %v995 = vpop.permute.xlu0 %994
  %996 = vset.pattern.permute.xlu0 0
  %997 = vperm.xlu0 %996, %v691
  %v998 = vpop.permute.xlu0 %997
  %999 = vset.pattern.permute.xlu0 0
  %1000 = vperm.xlu0 %999, %v692
  %v1001 = vpop.permute.xlu0 %1000
  %1002 = vset.pattern.permute.xlu0 0
  %1003 = vperm.xlu0 %1002, %v693
  %v1004 = vpop.permute.xlu0 %1003
  %1005 = vset.pattern.permute.xlu0 0
  %1006 = vperm.xlu0 %1005, %v694
  %v1007 = vpop.permute.xlu0 %1006
  %1008 = vset.pattern.permute.xlu0 0
  %1009 = vperm.xlu0 %1008, %v695
  %v1010 = vpop.permute.xlu0 %1009
  %1011 = vset.pattern.permute.xlu0 0
  %1012 = vperm.xlu0 %1011, %v696
  %v1013 = vpop.permute.xlu0 %1012
  %1014 = vset.pattern.permute.xlu0 0
  %1015 = vperm.xlu0 %1014, %v697
  %v1016 = vpop.permute.xlu0 %1015
  %1017 = vset.pattern.permute.xlu0 0
  %1018 = vperm.xlu0 %1017, %v698
  %v1019 = vpop.permute.xlu0 %1018
  %1020 = vset.pattern.permute.xlu0 0
  %1021 = vperm.xlu0 %1020, %v699
  %v1022 = vpop.permute.xlu0 %1021
  %1023 = vset.pattern.permute.xlu0 0
  %1024 = vperm.xlu0 %1023, %v700
  %v1025 = vpop.permute.xlu0 %1024
  %1026 = vset.pattern.permute.xlu0 0
  %1027 = vperm.xlu0 %1026, %v701
  %v1028 = vpop.permute.xlu0 %1027
  %1029 = vset.pattern.permute.xlu0 0
  %1030 = vperm.xlu0 %1029, %v702
  %v1031 = vpop.permute.xlu0 %1030
  %1032 = vset.pattern.permute.xlu0 0
  %1033 = vperm.xlu0 %1032, %v703
  %v1034 = vpop.permute.xlu0 %1033
  %1035 = vset.pattern.permute.xlu0 0
  %1036 = vperm.xlu0 %1035, %v704
  %v1037 = vpop.permute.xlu0 %1036
  %1038 = vset.pattern.permute.xlu0 0
  %1039 = vperm.xlu0 %1038, %v705
  %v1040 = vpop.permute.xlu0 %1039
  %1041 = vset.pattern.permute.xlu0 0
  %1042 = vperm.xlu0 %1041, %v706
  %v1043 = vpop.permute.xlu0 %1042
  %1044 = vset.pattern.permute.xlu0 0
  %1045 = vperm.xlu0 %1044, %v707
  %v1046 = vpop.permute.xlu0 %1045
  %1047 = vset.pattern.permute.xlu0 0
  %1048 = vperm.xlu0 %1047, %v708
  %v1049 = vpop.permute.xlu0 %1048
  %1050 = vset.pattern.permute.xlu0 0
  %1051 = vperm.xlu0 %1050, %v709
  %v1052 = vpop.permute.xlu0 %1051
  %v1053 = vlaneseq
  %v1054 = vand.u32 %v1053, 127
  %v1055 = vlaneseq
  %v1056 = vshrl.u32 %v1055, 7
  %v1057 = vsub.s32 %v1054, %v1056
  %v1058 = vrot.slane %v863, %v1057
  %v1059 = vadd.s32 %v1054, 4294967288
  %v1060 = vlaneseq
  %v1061 = vshrl.u32 %v1060, 7
  %v1062 = vsub.s32 %v1059, %v1061
  %v1063 = vrot.slane %v866, %v1062
  %vm1064 = vcmask 130112
  %v1065 = vsel %vm1064, %v1063, %v1058
  %v1066 = vadd.s32 %v1054, 4294967280
  %v1067 = vlaneseq
  %v1068 = vshrl.u32 %v1067, 7
  %v1069 = vsub.s32 %v1066, %v1068
  %v1070 = vrot.slane %v869, %v1069
  %vm1071 = vcmask 195712
  %v1072 = vsel %vm1071, %v1070, %v1065
  %v1073 = vadd.s32 %v1054, 4294967272
  %v1074 = vlaneseq
  %v1075 = vshrl.u32 %v1074, 7
  %v1076 = vsub.s32 %v1073, %v1075
  %v1077 = vrot.slane %v872, %v1076
  %vm1078 = vcmask 261312
  %v1079 = vsel %vm1078, %v1077, %v1072
  %v1080 = vadd.s32 %v1054, 4294967264
  %v1081 = vlaneseq
  %v1082 = vshrl.u32 %v1081, 7
  %v1083 = vsub.s32 %v1080, %v1082
  %v1084 = vrot.slane %v875, %v1083
  %vm1085 = vcmask 326912
  %v1086 = vsel %vm1085, %v1084, %v1079
  %v1087 = vadd.s32 %v1054, 4294967256
  %v1088 = vlaneseq
  %v1089 = vshrl.u32 %v1088, 7
  %v1090 = vsub.s32 %v1087, %v1089
  %v1091 = vrot.slane %v878, %v1090
  %vm1092 = vcmask 392512
  %v1093 = vsel %vm1092, %v1091, %v1086
  %v1094 = vadd.s32 %v1054, 4294967248
  %v1095 = vlaneseq
  %v1096 = vshrl.u32 %v1095, 7
  %v1097 = vsub.s32 %v1094, %v1096
  %v1098 = vrot.slane %v881, %v1097
  %vm1099 = vcmask 458112
  %v1100 = vsel %vm1099, %v1098, %v1093
  %v1101 = vadd.s32 %v1054, 4294967240
  %v1102 = vlaneseq
  %v1103 = vshrl.u32 %v1102, 7
  %v1104 = vsub.s32 %v1101, %v1103
  %v1105 = vrot.slane %v884, %v1104
  %vm1106 = vcmask 523712
  %v1107 = vsel %vm1106, %v1105, %v1100
  %v1108 = vlaneseq
  %v1109 = vshrl.u32 %v1108, 7
  %v1110 = vsub.s32 %v1054, %v1109
  %v1111 = vrot.slane %v887, %v1110
  %v1112 = vlaneseq
  %v1113 = vshrl.u32 %v1112, 7
  %v1114 = vsub.s32 %v1059, %v1113
  %v1115 = vrot.slane %v890, %v1114
  %v1116 = vsel %vm1064, %v1115, %v1111
  %v1117 = vlaneseq
  %v1118 = vshrl.u32 %v1117, 7
  %v1119 = vsub.s32 %v1066, %v1118
  %v1120 = vrot.slane %v893, %v1119
  %v1121 = vsel %vm1071, %v1120, %v1116
  %v1122 = vlaneseq
  %v1123 = vshrl.u32 %v1122, 7
  %v1124 = vsub.s32 %v1073, %v1123
  %v1125 = vrot.slane %v896, %v1124
  %v1126 = vsel %vm1078, %v1125, %v1121
  %v1127 = vlaneseq
  %v1128 = vshrl.u32 %v1127, 7
  %v1129 = vsub.s32 %v1080, %v1128
  %v1130 = vrot.slane %v899, %v1129
  %v1131 = vsel %vm1085, %v1130, %v1126
  %v1132 = vlaneseq
  %v1133 = vshrl.u32 %v1132, 7
  %v1134 = vsub.s32 %v1087, %v1133
  %v1135 = vrot.slane %v902, %v1134
  %v1136 = vsel %vm1092, %v1135, %v1131
  %v1137 = vlaneseq
  %v1138 = vshrl.u32 %v1137, 7
  %v1139 = vsub.s32 %v1094, %v1138
  %v1140 = vrot.slane %v905, %v1139
  %v1141 = vsel %vm1099, %v1140, %v1136
  %v1142 = vlaneseq
  %v1143 = vshrl.u32 %v1142, 7
  %v1144 = vsub.s32 %v1101, %v1143
  %v1145 = vrot.slane %v908, %v1144
  %v1146 = vsel %vm1106, %v1145, %v1141
  %v1147 = vlaneseq
  %v1148 = vshrl.u32 %v1147, 7
  %v1149 = vsub.s32 %v1054, %v1148
  %v1150 = vrot.slane %v911, %v1149
  %v1151 = vlaneseq
  %v1152 = vshrl.u32 %v1151, 7
  %v1153 = vsub.s32 %v1059, %v1152
  %v1154 = vrot.slane %v914, %v1153
  %v1155 = vsel %vm1064, %v1154, %v1150
  %v1156 = vlaneseq
  %v1157 = vshrl.u32 %v1156, 7
  %v1158 = vsub.s32 %v1066, %v1157
  %v1159 = vrot.slane %v917, %v1158
  %v1160 = vsel %vm1071, %v1159, %v1155
  %v1161 = vlaneseq
  %v1162 = vshrl.u32 %v1161, 7
  %v1163 = vsub.s32 %v1073, %v1162
  %v1164 = vrot.slane %v920, %v1163
  %v1165 = vsel %vm1078, %v1164, %v1160
  %v1166 = vlaneseq
  %v1167 = vshrl.u32 %v1166, 7
  %v1168 = vsub.s32 %v1080, %v1167
  %v1169 = vrot.slane %v923, %v1168
  %v1170 = vsel %vm1085, %v1169, %v1165
  %v1171 = vlaneseq
  %v1172 = vshrl.u32 %v1171, 7
  %v1173 = vsub.s32 %v1087, %v1172
  %v1174 = vrot.slane %v926, %v1173
  %v1175 = vsel %vm1092, %v1174, %v1170
  %v1176 = vlaneseq
  %v1177 = vshrl.u32 %v1176, 7
  %v1178 = vsub.s32 %v1094, %v1177
  %v1179 = vrot.slane %v929, %v1178
  %v1180 = vsel %vm1099, %v1179, %v1175
  %v1181 = vlaneseq
  %v1182 = vshrl.u32 %v1181, 7
  %v1183 = vsub.s32 %v1101, %v1182
  %v1184 = vrot.slane %v932, %v1183
  %v1185 = vsel %vm1106, %v1184, %v1180
  %v1186 = vlaneseq
  %v1187 = vshrl.u32 %v1186, 7
  %v1188 = vsub.s32 %v1054, %v1187
  %v1189 = vrot.slane %v935, %v1188
  %v1190 = vlaneseq
  %v1191 = vshrl.u32 %v1190, 7
  %v1192 = vsub.s32 %v1059, %v1191
  %v1193 = vrot.slane %v938, %v1192
  %v1194 = vsel %vm1064, %v1193, %v1189
  %v1195 = vlaneseq
  %v1196 = vshrl.u32 %v1195, 7
  %v1197 = vsub.s32 %v1066, %v1196
  %v1198 = vrot.slane %v941, %v1197
  %v1199 = vsel %vm1071, %v1198, %v1194
  %v1200 = vlaneseq
  %v1201 = vshrl.u32 %v1200, 7
  %v1202 = vsub.s32 %v1073, %v1201
  %v1203 = vrot.slane %v944, %v1202
  %v1204 = vsel %vm1078, %v1203, %v1199
  %v1205 = vlaneseq
  %v1206 = vshrl.u32 %v1205, 7
  %v1207 = vsub.s32 %v1080, %v1206
  %v1208 = vrot.slane %v947, %v1207
  %v1209 = vsel %vm1085, %v1208, %v1204
  %v1210 = vlaneseq
  %v1211 = vshrl.u32 %v1210, 7
  %v1212 = vsub.s32 %v1087, %v1211
  %v1213 = vrot.slane %v950, %v1212
  %v1214 = vsel %vm1092, %v1213, %v1209
  %v1215 = vlaneseq
  %v1216 = vshrl.u32 %v1215, 7
  %v1217 = vsub.s32 %v1094, %v1216
  %v1218 = vrot.slane %v953, %v1217
  %v1219 = vsel %vm1099, %v1218, %v1214
  %v1220 = vlaneseq
  %v1221 = vshrl.u32 %v1220, 7
  %v1222 = vsub.s32 %v1101, %v1221
  %v1223 = vrot.slane %v956, %v1222
  %v1224 = vsel %vm1106, %v1223, %v1219
  %v1225 = vlaneseq
  %v1226 = vshrl.u32 %v1225, 7
  %v1227 = vsub.s32 %v1054, %v1226
  %v1228 = vrot.slane %v959, %v1227
  %v1229 = vlaneseq
  %v1230 = vshrl.u32 %v1229, 7
  %v1231 = vsub.s32 %v1059, %v1230
  %v1232 = vrot.slane %v962, %v1231
  %v1233 = vsel %vm1064, %v1232, %v1228
  %v1234 = vlaneseq
  %v1235 = vshrl.u32 %v1234, 7
  %v1236 = vsub.s32 %v1066, %v1235
  %v1237 = vrot.slane %v965, %v1236
  %v1238 = vsel %vm1071, %v1237, %v1233
  %v1239 = vlaneseq
  %v1240 = vshrl.u32 %v1239, 7
  %v1241 = vsub.s32 %v1073, %v1240
  %v1242 = vrot.slane %v968, %v1241
  %v1243 = vsel %vm1078, %v1242, %v1238
  %v1244 = vlaneseq
  %v1245 = vshrl.u32 %v1244, 7
  %v1246 = vsub.s32 %v1080, %v1245
  %v1247 = vrot.slane %v971, %v1246
  %v1248 = vsel %vm1085, %v1247, %v1243
  %v1249 = vlaneseq
  %v1250 = vshrl.u32 %v1249, 7
  %v1251 = vsub.s32 %v1087, %v1250
  %v1252 = vrot.slane %v974, %v1251
  %v1253 = vsel %vm1092, %v1252, %v1248
  %v1254 = vlaneseq
  %v1255 = vshrl.u32 %v1254, 7
  %v1256 = vsub.s32 %v1094, %v1255
  %v1257 = vrot.slane %v977, %v1256
  %v1258 = vsel %vm1099, %v1257, %v1253
  %v1259 = vlaneseq
  %v1260 = vshrl.u32 %v1259, 7
  %v1261 = vsub.s32 %v1101, %v1260
  %v1262 = vrot.slane %v980, %v1261
  %v1263 = vsel %vm1106, %v1262, %v1258
  %v1264 = vlaneseq
  %v1265 = vshrl.u32 %v1264, 7
  %v1266 = vsub.s32 %v1054, %v1265
  %v1267 = vrot.slane %v983, %v1266
  %v1268 = vlaneseq
  %v1269 = vshrl.u32 %v1268, 7
  %v1270 = vsub.s32 %v1059, %v1269
  %v1271 = vrot.slane %v986, %v1270
  %v1272 = vsel %vm1064, %v1271, %v1267
  %v1273 = vlaneseq
  %v1274 = vshrl.u32 %v1273, 7
  %v1275 = vsub.s32 %v1066, %v1274
  %v1276 = vrot.slane %v989, %v1275
  %v1277 = vsel %vm1071, %v1276, %v1272
  %v1278 = vlaneseq
  %v1279 = vshrl.u32 %v1278, 7
  %v1280 = vsub.s32 %v1073, %v1279
  %v1281 = vrot.slane %v992, %v1280
  %v1282 = vsel %vm1078, %v1281, %v1277
  %v1283 = vlaneseq
  %v1284 = vshrl.u32 %v1283, 7
  %v1285 = vsub.s32 %v1080, %v1284
  %v1286 = vrot.slane %v995, %v1285
  %v1287 = vsel %vm1085, %v1286, %v1282
  %v1288 = vlaneseq
  %v1289 = vshrl.u32 %v1288, 7
  %v1290 = vsub.s32 %v1087, %v1289
  %v1291 = vrot.slane %v998, %v1290
  %v1292 = vsel %vm1092, %v1291, %v1287
  %v1293 = vlaneseq
  %v1294 = vshrl.u32 %v1293, 7
  %v1295 = vsub.s32 %v1094, %v1294
  %v1296 = vrot.slane %v1001, %v1295
  %v1297 = vsel %vm1099, %v1296, %v1292
  %v1298 = vlaneseq
  %v1299 = vshrl.u32 %v1298, 7
  %v1300 = vsub.s32 %v1101, %v1299
  %v1301 = vrot.slane %v1004, %v1300
  %v1302 = vsel %vm1106, %v1301, %v1297
  %v1303 = vlaneseq
  %v1304 = vshrl.u32 %v1303, 7
  %v1305 = vsub.s32 %v1054, %v1304
  %v1306 = vrot.slane %v1007, %v1305
  %v1307 = vlaneseq
  %v1308 = vshrl.u32 %v1307, 7
  %v1309 = vsub.s32 %v1059, %v1308
  %v1310 = vrot.slane %v1010, %v1309
  %v1311 = vsel %vm1064, %v1310, %v1306
  %v1312 = vlaneseq
  %v1313 = vshrl.u32 %v1312, 7
  %v1314 = vsub.s32 %v1066, %v1313
  %v1315 = vrot.slane %v1013, %v1314
  %v1316 = vsel %vm1071, %v1315, %v1311
  %v1317 = vlaneseq
  %v1318 = vshrl.u32 %v1317, 7
  %v1319 = vsub.s32 %v1073, %v1318
  %v1320 = vrot.slane %v1016, %v1319
  %v1321 = vsel %vm1078, %v1320, %v1316
  %v1322 = vlaneseq
  %v1323 = vshrl.u32 %v1322, 7
  %v1324 = vsub.s32 %v1080, %v1323
  %v1325 = vrot.slane %v1019, %v1324
  %v1326 = vsel %vm1085, %v1325, %v1321
  %v1327 = vlaneseq
  %v1328 = vshrl.u32 %v1327, 7
  %v1329 = vsub.s32 %v1087, %v1328
  %v1330 = vrot.slane %v1022, %v1329
  %v1331 = vsel %vm1092, %v1330, %v1326
  %v1332 = vlaneseq
  %v1333 = vshrl.u32 %v1332, 7
  %v1334 = vsub.s32 %v1094, %v1333
  %v1335 = vrot.slane %v1025, %v1334
  %v1336 = vsel %vm1099, %v1335, %v1331
  %v1337 = vlaneseq
  %v1338 = vshrl.u32 %v1337, 7
  %v1339 = vsub.s32 %v1101, %v1338
  %v1340 = vrot.slane %v1028, %v1339
  %v1341 = vsel %vm1106, %v1340, %v1336
  %v1342 = vlaneseq
  %v1343 = vshrl.u32 %v1342, 7
  %v1344 = vsub.s32 %v1054, %v1343
  %v1345 = vrot.slane %v1031, %v1344
  %v1346 = vlaneseq
  %v1347 = vshrl.u32 %v1346, 7
  %v1348 = vsub.s32 %v1059, %v1347
  %v1349 = vrot.slane %v1034, %v1348
  %v1350 = vsel %vm1064, %v1349, %v1345
  %v1351 = vlaneseq
  %v1352 = vshrl.u32 %v1351, 7
  %v1353 = vsub.s32 %v1066, %v1352
  %v1354 = vrot.slane %v1037, %v1353
  %v1355 = vsel %vm1071, %v1354, %v1350
  %v1356 = vlaneseq
  %v1357 = vshrl.u32 %v1356, 7
  %v1358 = vsub.s32 %v1073, %v1357
  %v1359 = vrot.slane %v1040, %v1358
  %v1360 = vsel %vm1078, %v1359, %v1355
  %v1361 = vlaneseq
  %v1362 = vshrl.u32 %v1361, 7
  %v1363 = vsub.s32 %v1080, %v1362
  %v1364 = vrot.slane %v1043, %v1363
  %v1365 = vsel %vm1085, %v1364, %v1360
  %v1366 = vlaneseq
  %v1367 = vshrl.u32 %v1366, 7
  %v1368 = vsub.s32 %v1087, %v1367
  %v1369 = vrot.slane %v1046, %v1368
  %v1370 = vsel %vm1092, %v1369, %v1365
  %v1371 = vlaneseq
  %v1372 = vshrl.u32 %v1371, 7
  %v1373 = vsub.s32 %v1094, %v1372
  %v1374 = vrot.slane %v1049, %v1373
  %v1375 = vsel %vm1099, %v1374, %v1370
  %v1376 = vlaneseq
  %v1377 = vshrl.u32 %v1376, 7
  %v1378 = vsub.s32 %v1101, %v1377
  %v1379 = vrot.slane %v1052, %v1378
  %v1380 = vsel %vm1106, %v1379, %v1375
  %v1381 = vsel %vm727, %v1146, %v1107
  %v1382 = vsel %vm730, %v1185, %v1381
  %v1383 = vsel %vm733, %v1224, %v1382
  %v1384 = vsel %vm736, %v1263, %v1383
  %v1385 = vsel %vm739, %v1302, %v1384
  %v1386 = vsel %vm742, %v1341, %v1385
  %v1387 = vsel %vm745, %v1380, %v1386
  %1389 = vmatprep.subr.bf16.mxu0 0
  %1390 = vmatpush1.bf16.msra.mxu0 %v781
  %1391 = vmatprep.subr.bf16.mxu0 0
  %1392 = vmatpush1.bf16.msra.mxu0 %v782
  %1393 = vmatprep.subr.bf16.mxu0 0
  %1394 = vmatpush1.bf16.msra.mxu0 %v783
  %1395 = vmatprep.subr.bf16.mxu0 0
  %1396 = vmatpush1.bf16.msra.mxu0 %v784
  %1397 = vmatprep.subr.bf16.mxu0 0
  %1398 = vmatpush1.bf16.msra.mxu0 %v785
  %1399 = vmatprep.subr.bf16.mxu0 0
  %1400 = vmatpush1.bf16.msra.mxu0 %v786
  %1401 = vmatprep.subr.bf16.mxu0 0
  %1402 = vmatpush1.bf16.msra.mxu0 %v787
  %1403 = vmatprep.subr.bf16.mxu0 0
  %1404 = vmatpush1.bf16.msra.mxu0 %v788
  %1405 = vmatprep.subr.bf16.mxu0 0
  %1406 = vmatpush1.bf16.msra.mxu0 0
  %1407 = vmatprep.subr.bf16.mxu0 0
  %1408 = vmatpush1.bf16.msra.mxu0 0
  %1409 = vmatprep.subr.bf16.mxu0 0
  %1410 = vmatpush1.bf16.msra.mxu0 0
  %1411 = vmatprep.subr.bf16.mxu0 0
  %1412 = vmatpush1.bf16.msra.mxu0 0
  %1413 = vmatprep.subr.bf16.mxu0 0
  %1414 = vmatpush1.bf16.msra.mxu0 0
  %1415 = vmatprep.subr.bf16.mxu0 0
  %1416 = vmatpush1.bf16.msra.mxu0 0
  %1417 = vmatprep.subr.bf16.mxu0 0
  %1418 = vmatpush1.bf16.msra.mxu0 0
  %1419 = vmatprep.subr.bf16.mxu0 0
  %1420 = vmatpush1.bf16.msra.mxu0 0
  %1421 = vmatprep.mubr.bf16.mxu0 0
  %1422 = vmatmul.mubr.bf16.gmra.mrb[0].mxu0 %v747
  %v1423 = vpop.f32.mrb[0].mxu0
  %v1424 = vadd.f32 %v1387, %v1423
  %v1425 = vpop.f32.mrb[0].mxu0
  %v1426 = vpop.f32.mrb[0].mxu0
  %v1427 = vpop.f32.mrb[0].mxu0
  %1428 = vdwg.mxu0
  %v1429 = vld [vmem:[%s6] sm:$0x1]
  %v1430 = vlaneseq
  %v1431 = vshrl.u32 %v1430, 7
  %v1432 = vsub.s32 0, %v1431
  %v1433 = vrot.slane %v1429, %v1432
  %v1434 = vadd.f32 %v1424, %v1433
  %1435 = vst.msk [vmem:[%s9] sm:$0xff] %vm200, %v1434
  %v1436 = vpack.c.bf16 %v1434, %v1434
  %v1437 = vld [vmem:[%s7] sm:$0xf]
  %v1438 = vld [vmem:[%s7 + $0x4] sm:$0xf]
  %v1439 = vld [vmem:[%s7 + $0x8] sm:$0xf]
  %v1440 = vld [vmem:[%s7 + $0xc] sm:$0xf]
  %v1441 = vld [vmem:[%s7 + $0x10] sm:$0xf]
  %v1442 = vld [vmem:[%s7 + $0x14] sm:$0xf]
  %v1443 = vld [vmem:[%s7 + $0x18] sm:$0xf]
  %v1444 = vld [vmem:[%s7 + $0x1c] sm:$0xf]
  %v1445 = vld [vmem:[%s8] sm:$0x1]
  %v1446 = vlaneseq
  %v1447 = vshrl.u32 %v1446, 7
  %v1448 = vsub.s32 0, %v1447
  %v1449 = vrot.slane %v1445, %v1448
  %v1458 = vunpack.c.l.b16 %v1437
  %v1459 = vunpack.c.l.b16 %v1438
  %v1460 = vunpack.c.l.b16 %v1439
  %v1461 = vunpack.c.l.b16 %v1440
  %v1462 = vunpack.c.l.b16 %v1441
  %v1463 = vunpack.c.l.b16 %v1442
  %v1464 = vunpack.c.l.b16 %v1443
  %v1465 = vunpack.c.l.b16 %v1444
  %v1466 = vpack.c.b16 %v1459, %v1458
  %v1467 = vpack.c.b16 %v1461, %v1460
  %v1468 = vpack.c.b16 %v1463, %v1462
  %v1469 = vpack.c.b16 %v1465, %v1464
  %v1475 = vsel %vm200, %v1436, 0
  %1477 = vmatprep.subr.bf16.mxu0 0
  %1478 = vmatpush1.bf16.msra.mxu0 %v1466
  %1479 = vmatprep.subr.bf16.mxu0 0
  %1480 = vmatpush1.bf16.msra.mxu0 %v1467
  %1481 = vmatprep.subr.bf16.mxu0 0
  %1482 = vmatpush1.bf16.msra.mxu0 %v1468
  %1483 = vmatprep.subr.bf16.mxu0 0
  %1484 = vmatpush1.bf16.msra.mxu0 %v1469
  %1485 = vmatprep.subr.bf16.mxu0 0
  %1486 = vmatpush1.bf16.msra.mxu0 0
  %1487 = vmatprep.subr.bf16.mxu0 0
  %1488 = vmatpush1.bf16.msra.mxu0 0
  %1489 = vmatprep.subr.bf16.mxu0 0
  %1490 = vmatpush1.bf16.msra.mxu0 0
  %1491 = vmatprep.subr.bf16.mxu0 0
  %1492 = vmatpush1.bf16.msra.mxu0 0
  %1493 = vmatprep.subr.bf16.mxu0 0
  %1494 = vmatpush1.bf16.msra.mxu0 0
  %1495 = vmatprep.subr.bf16.mxu0 0
  %1496 = vmatpush1.bf16.msra.mxu0 0
  %1497 = vmatprep.subr.bf16.mxu0 0
  %1498 = vmatpush1.bf16.msra.mxu0 0
  %1499 = vmatprep.subr.bf16.mxu0 0
  %1500 = vmatpush1.bf16.msra.mxu0 0
  %1501 = vmatprep.subr.bf16.mxu0 0
  %1502 = vmatpush1.bf16.msra.mxu0 0
  %1503 = vmatprep.subr.bf16.mxu0 0
  %1504 = vmatpush1.bf16.msra.mxu0 0
  %1505 = vmatprep.subr.bf16.mxu0 0
  %1506 = vmatpush1.bf16.msra.mxu0 0
  %1507 = vmatprep.subr.bf16.mxu0 0
  %1508 = vmatpush1.bf16.msra.mxu0 0
  %1509 = vmatprep.mubr.bf16.mxu0 0
  %1510 = vmatmul.mubr.bf16.gmra.mrb[0].mxu0 %v1475
  %v1511 = vpop.f32.mrb[0].mxu0
  %v1512 = vadd.f32 %v1449, %v1511
  %v1513 = vpop.f32.mrb[0].mxu0
  %v1514 = vpop.f32.mrb[0].mxu0
  %v1515 = vpop.f32.mrb[0].mxu0
  %1516 = vdwg.mxu0
  %vm1517 = vcmask 130048
  %1518 = vst.msk [vmem:[%s10] sm:$0xff] %vm1517, %v1512
  %s1519 = scalar_lea.vmem %s4, 64
  %v1520 = vld [vmem:[%s1519] sm:$0xf]
  %v1521 = vld [vmem:[%s1519 + $0x4] sm:$0xf]
  %v1522 = vld [vmem:[%s1519 + $0x8] sm:$0xf]
  %v1523 = vld [vmem:[%s1519 + $0xc] sm:$0xf]
  %v1524 = vld [vmem:[%s1519 + $0x10] sm:$0xf]
  %v1525 = vld [vmem:[%s1519 + $0x14] sm:$0xf]
  %v1526 = vld [vmem:[%s1519 + $0x18] sm:$0xf]
  %v1527 = vld [vmem:[%s1519 + $0x1c] sm:$0xf]
  %v1528 = vld [vmem:[%s1519 + $0x20] sm:$0xf]
  %v1529 = vld [vmem:[%s1519 + $0x24] sm:$0xf]
  %v1530 = vld [vmem:[%s1519 + $0x28] sm:$0xf]
  %v1531 = vld [vmem:[%s1519 + $0x2c] sm:$0xf]
  %v1532 = vld [vmem:[%s1519 + $0x30] sm:$0xf]
  %v1533 = vld [vmem:[%s1519 + $0x34] sm:$0xf]
  %v1534 = vld [vmem:[%s1519 + $0x38] sm:$0xf]
  %v1535 = vld [vmem:[%s1519 + $0x3c] sm:$0xf]
  %v1536 = vld [vmem:[%s5 + $0x1] sm:$0x1]
  %v1537 = vlaneseq
  %v1538 = vshrl.u32 %v1537, 7
  %v1539 = vsub.s32 1, %v1538
  %v1540 = vrot.slane %v178, %v1539
  %v1541 = vlaneseq
  %v1542 = vshrl.u32 %v1541, 7
  %v1543 = vsub.s32 1, %v1542
  %v1544 = vrot.slane %v181, %v1543
  %v1545 = vlaneseq
  %v1546 = vshrl.u32 %v1545, 7
  %v1547 = vsub.s32 1, %v1546
  %v1548 = vrot.slane %v184, %v1547
  %v1549 = vlaneseq
  %v1550 = vshrl.u32 %v1549, 7
  %v1551 = vsub.s32 1, %v1550
  %v1552 = vrot.slane %v187, %v1551
  %v1553 = vlaneseq
  %v1554 = vshrl.u32 %v1553, 7
  %v1555 = vsub.s32 1, %v1554
  %v1556 = vrot.slane %v190, %v1555
  %v1557 = vlaneseq
  %v1558 = vshrl.u32 %v1557, 7
  %v1559 = vsub.s32 1, %v1558
  %v1560 = vrot.slane %v193, %v1559
  %v1561 = vlaneseq
  %v1562 = vshrl.u32 %v1561, 7
  %v1563 = vsub.s32 1, %v1562
  %v1564 = vrot.slane %v196, %v1563
  %v1565 = vlaneseq
  %v1566 = vshrl.u32 %v1565, 7
  %v1567 = vsub.s32 1, %v1566
  %v1568 = vrot.slane %v199, %v1567
  %v1569 = vlaneseq
  %v1570 = vshrl.u32 %v1569, 7
  %v1571 = vsub.s32 0, %v1570
  %v1572 = vrot.slane %v1536, %v1571
  %1575 = vbcast.lane.b32.xlu0 %v1572, 256
  %v1576 = vpop.permute.xlu0 %1575
  %s1578 = sor.u32 256, 8
  %1579 = vbcast.lane.b32.xlu0 %v1572, %s1578
  %v1580 = vpop.permute.xlu0 %1579
  %s1582 = sor.u32 256, 16
  %1583 = vbcast.lane.b32.xlu0 %v1572, %s1582
  %v1584 = vpop.permute.xlu0 %1583
  %s1586 = sor.u32 256, 24
  %1587 = vbcast.lane.b32.xlu0 %v1572, %s1586
  %v1588 = vpop.permute.xlu0 %1587
  %s1590 = sor.u32 256, 32
  %1591 = vbcast.lane.b32.xlu0 %v1572, %s1590
  %v1592 = vpop.permute.xlu0 %1591
  %s1594 = sor.u32 256, 40
  %1595 = vbcast.lane.b32.xlu0 %v1572, %s1594
  %v1596 = vpop.permute.xlu0 %1595
  %s1598 = sor.u32 256, 48
  %1599 = vbcast.lane.b32.xlu0 %v1572, %s1598
  %v1600 = vpop.permute.xlu0 %1599
  %s1602 = sor.u32 256, 56
  %1603 = vbcast.lane.b32.xlu0 %v1572, %s1602
  %v1604 = vpop.permute.xlu0 %1603
  %v1613 = vmul.f32 %v1540, %v1576
  %v1614 = vmul.f32 %v1540, %v1580
  %v1615 = vmul.f32 %v1540, %v1584
  %v1616 = vmul.f32 %v1540, %v1588
  %v1617 = vmul.f32 %v1540, %v1592
  %v1618 = vmul.f32 %v1540, %v1596
  %v1619 = vmul.f32 %v1540, %v1600
  %v1620 = vmul.f32 %v1540, %v1604
  %v1621 = vmul.f32 %v1544, %v1576
  %v1622 = vmul.f32 %v1544, %v1580
  %v1623 = vmul.f32 %v1544, %v1584
  %v1624 = vmul.f32 %v1544, %v1588
  %v1625 = vmul.f32 %v1544, %v1592
  %v1626 = vmul.f32 %v1544, %v1596
  %v1627 = vmul.f32 %v1544, %v1600
  %v1628 = vmul.f32 %v1544, %v1604
  %v1629 = vmul.f32 %v1548, %v1576
  %v1630 = vmul.f32 %v1548, %v1580
  %v1631 = vmul.f32 %v1548, %v1584
  %v1632 = vmul.f32 %v1548, %v1588
  %v1633 = vmul.f32 %v1548, %v1592
  %v1634 = vmul.f32 %v1548, %v1596
  %v1635 = vmul.f32 %v1548, %v1600
  %v1636 = vmul.f32 %v1548, %v1604
  %v1637 = vmul.f32 %v1552, %v1576
  %v1638 = vmul.f32 %v1552, %v1580
  %v1639 = vmul.f32 %v1552, %v1584
  %v1640 = vmul.f32 %v1552, %v1588
  %v1641 = vmul.f32 %v1552, %v1592
  %v1642 = vmul.f32 %v1552, %v1596
  %v1643 = vmul.f32 %v1552, %v1600
  %v1644 = vmul.f32 %v1552, %v1604
  %v1645 = vmul.f32 %v1556, %v1576
  %v1646 = vmul.f32 %v1556, %v1580
  %v1647 = vmul.f32 %v1556, %v1584
  %v1648 = vmul.f32 %v1556, %v1588
  %v1649 = vmul.f32 %v1556, %v1592
  %v1650 = vmul.f32 %v1556, %v1596
  %v1651 = vmul.f32 %v1556, %v1600
  %v1652 = vmul.f32 %v1556, %v1604
  %v1653 = vmul.f32 %v1560, %v1576
  %v1654 = vmul.f32 %v1560, %v1580
  %v1655 = vmul.f32 %v1560, %v1584
  %v1656 = vmul.f32 %v1560, %v1588
  %v1657 = vmul.f32 %v1560, %v1592
  %v1658 = vmul.f32 %v1560, %v1596
  %v1659 = vmul.f32 %v1560, %v1600
  %v1660 = vmul.f32 %v1560, %v1604
  %v1661 = vmul.f32 %v1564, %v1576
  %v1662 = vmul.f32 %v1564, %v1580
  %v1663 = vmul.f32 %v1564, %v1584
  %v1664 = vmul.f32 %v1564, %v1588
  %v1665 = vmul.f32 %v1564, %v1592
  %v1666 = vmul.f32 %v1564, %v1596
  %v1667 = vmul.f32 %v1564, %v1600
  %v1668 = vmul.f32 %v1564, %v1604
  %v1669 = vmul.f32 %v1568, %v1576
  %v1670 = vmul.f32 %v1568, %v1580
  %v1671 = vmul.f32 %v1568, %v1584
  %v1672 = vmul.f32 %v1568, %v1588
  %v1673 = vmul.f32 %v1568, %v1592
  %v1674 = vmul.f32 %v1568, %v1596
  %v1675 = vmul.f32 %v1568, %v1600
  %v1676 = vmul.f32 %v1568, %v1604
  %v1677 = vrot.slane %v718, 1
  %v1678 = vsel %vm727, %v719, %v1677
  %v1679 = vrot.slane %v720, 7
  %v1680 = vsel %vm730, %v1679, %v1678
  %v1681 = vrot.slane %v721, 6
  %v1682 = vsel %vm733, %v1681, %v1680
  %v1683 = vrot.slane %v722, 5
  %v1684 = vsel %vm736, %v1683, %v1682
  %v1685 = vrot.slane %v723, 4
  %v1686 = vsel %vm739, %v1685, %v1684
  %v1687 = vrot.slane %v724, 3
  %v1688 = vsel %vm742, %v1687, %v1686
  %v1689 = vrot.slane %v725, 2
  %v1690 = vsel %vm745, %v1689, %v1688
  %v1691 = vpack.c.b16 %v1690, %v1690
  %v1709 = vunpack.c.l.b16 %v1520
  %v1710 = vunpack.c.l.b16 %v1521
  %v1711 = vunpack.c.l.b16 %v1522
  %v1712 = vunpack.c.l.b16 %v1523
  %v1713 = vunpack.c.l.b16 %v1524
  %v1714 = vunpack.c.l.b16 %v1525
  %v1715 = vunpack.c.l.b16 %v1526
  %v1716 = vunpack.c.l.b16 %v1527
  %v1717 = vunpack.c.l.b16 %v1528
  %v1718 = vunpack.c.l.b16 %v1529
  %v1719 = vunpack.c.l.b16 %v1530
  %v1720 = vunpack.c.l.b16 %v1531
  %v1721 = vunpack.c.l.b16 %v1532
  %v1722 = vunpack.c.l.b16 %v1533
  %v1723 = vunpack.c.l.b16 %v1534
  %v1724 = vunpack.c.l.b16 %v1535
  %v1725 = vpack.c.b16 %v1710, %v1709
  %v1726 = vpack.c.b16 %v1712, %v1711
  %v1727 = vpack.c.b16 %v1714, %v1713
  %v1728 = vpack.c.b16 %v1716, %v1715
  %v1729 = vpack.c.b16 %v1718, %v1717
  %v1730 = vpack.c.b16 %v1720, %v1719
  %v1731 = vpack.c.b16 %v1722, %v1721
  %v1732 = vpack.c.b16 %v1724, %v1723
  %1805 = vset.pattern.permute.xlu0 0
  %1806 = vperm.xlu0 %1805, %v1613
  %v1807 = vpop.permute.xlu0 %1806
  %1808 = vset.pattern.permute.xlu0 0
  %1809 = vperm.xlu0 %1808, %v1614
  %v1810 = vpop.permute.xlu0 %1809
  %1811 = vset.pattern.permute.xlu0 0
  %1812 = vperm.xlu0 %1811, %v1615
  %v1813 = vpop.permute.xlu0 %1812
  %1814 = vset.pattern.permute.xlu0 0
  %1815 = vperm.xlu0 %1814, %v1616
  %v1816 = vpop.permute.xlu0 %1815
  %1817 = vset.pattern.permute.xlu0 0
  %1818 = vperm.xlu0 %1817, %v1617
  %v1819 = vpop.permute.xlu0 %1818
  %1820 = vset.pattern.permute.xlu0 0
  %1821 = vperm.xlu0 %1820, %v1618
  %v1822 = vpop.permute.xlu0 %1821
  %1823 = vset.pattern.permute.xlu0 0
  %1824 = vperm.xlu0 %1823, %v1619
  %v1825 = vpop.permute.xlu0 %1824
  %1826 = vset.pattern.permute.xlu0 0
  %1827 = vperm.xlu0 %1826, %v1620
  %v1828 = vpop.permute.xlu0 %1827
  %1829 = vset.pattern.permute.xlu0 0
  %1830 = vperm.xlu0 %1829, %v1621
  %v1831 = vpop.permute.xlu0 %1830
  %1832 = vset.pattern.permute.xlu0 0
  %1833 = vperm.xlu0 %1832, %v1622
  %v1834 = vpop.permute.xlu0 %1833
  %1835 = vset.pattern.permute.xlu0 0
  %1836 = vperm.xlu0 %1835, %v1623
  %v1837 = vpop.permute.xlu0 %1836
  %1838 = vset.pattern.permute.xlu0 0
  %1839 = vperm.xlu0 %1838, %v1624
  %v1840 = vpop.permute.xlu0 %1839
  %1841 = vset.pattern.permute.xlu0 0
  %1842 = vperm.xlu0 %1841, %v1625
  %v1843 = vpop.permute.xlu0 %1842
  %1844 = vset.pattern.permute.xlu0 0
  %1845 = vperm.xlu0 %1844, %v1626
  %v1846 = vpop.permute.xlu0 %1845
  %1847 = vset.pattern.permute.xlu0 0
  %1848 = vperm.xlu0 %1847, %v1627
  %v1849 = vpop.permute.xlu0 %1848
  %1850 = vset.pattern.permute.xlu0 0
  %1851 = vperm.xlu0 %1850, %v1628
  %v1852 = vpop.permute.xlu0 %1851
  %1853 = vset.pattern.permute.xlu0 0
  %1854 = vperm.xlu0 %1853, %v1629
  %v1855 = vpop.permute.xlu0 %1854
  %1856 = vset.pattern.permute.xlu0 0
  %1857 = vperm.xlu0 %1856, %v1630
  %v1858 = vpop.permute.xlu0 %1857
  %1859 = vset.pattern.permute.xlu0 0
  %1860 = vperm.xlu0 %1859, %v1631
  %v1861 = vpop.permute.xlu0 %1860
  %1862 = vset.pattern.permute.xlu0 0
  %1863 = vperm.xlu0 %1862, %v1632
  %v1864 = vpop.permute.xlu0 %1863
  %1865 = vset.pattern.permute.xlu0 0
  %1866 = vperm.xlu0 %1865, %v1633
  %v1867 = vpop.permute.xlu0 %1866
  %1868 = vset.pattern.permute.xlu0 0
  %1869 = vperm.xlu0 %1868, %v1634
  %v1870 = vpop.permute.xlu0 %1869
  %1871 = vset.pattern.permute.xlu0 0
  %1872 = vperm.xlu0 %1871, %v1635
  %v1873 = vpop.permute.xlu0 %1872
  %1874 = vset.pattern.permute.xlu0 0
  %1875 = vperm.xlu0 %1874, %v1636
  %v1876 = vpop.permute.xlu0 %1875
  %1877 = vset.pattern.permute.xlu0 0
  %1878 = vperm.xlu0 %1877, %v1637
  %v1879 = vpop.permute.xlu0 %1878
  %1880 = vset.pattern.permute.xlu0 0
  %1881 = vperm.xlu0 %1880, %v1638
  %v1882 = vpop.permute.xlu0 %1881
  %1883 = vset.pattern.permute.xlu0 0
  %1884 = vperm.xlu0 %1883, %v1639
  %v1885 = vpop.permute.xlu0 %1884
  %1886 = vset.pattern.permute.xlu0 0
  %1887 = vperm.xlu0 %1886, %v1640
  %v1888 = vpop.permute.xlu0 %1887
  %1889 = vset.pattern.permute.xlu0 0
  %1890 = vperm.xlu0 %1889, %v1641
  %v1891 = vpop.permute.xlu0 %1890
  %1892 = vset.pattern.permute.xlu0 0
  %1893 = vperm.xlu0 %1892, %v1642
  %v1894 = vpop.permute.xlu0 %1893
  %1895 = vset.pattern.permute.xlu0 0
  %1896 = vperm.xlu0 %1895, %v1643
  %v1897 = vpop.permute.xlu0 %1896
  %1898 = vset.pattern.permute.xlu0 0
  %1899 = vperm.xlu0 %1898, %v1644
  %v1900 = vpop.permute.xlu0 %1899
  %1901 = vset.pattern.permute.xlu0 0
  %1902 = vperm.xlu0 %1901, %v1645
  %v1903 = vpop.permute.xlu0 %1902
  %1904 = vset.pattern.permute.xlu0 0
  %1905 = vperm.xlu0 %1904, %v1646
  %v1906 = vpop.permute.xlu0 %1905
  %1907 = vset.pattern.permute.xlu0 0
  %1908 = vperm.xlu0 %1907, %v1647
  %v1909 = vpop.permute.xlu0 %1908
  %1910 = vset.pattern.permute.xlu0 0
  %1911 = vperm.xlu0 %1910, %v1648
  %v1912 = vpop.permute.xlu0 %1911
  %1913 = vset.pattern.permute.xlu0 0
  %1914 = vperm.xlu0 %1913, %v1649
  %v1915 = vpop.permute.xlu0 %1914
  %1916 = vset.pattern.permute.xlu0 0
  %1917 = vperm.xlu0 %1916, %v1650
  %v1918 = vpop.permute.xlu0 %1917
  %1919 = vset.pattern.permute.xlu0 0
  %1920 = vperm.xlu0 %1919, %v1651
  %v1921 = vpop.permute.xlu0 %1920
  %1922 = vset.pattern.permute.xlu0 0
  %1923 = vperm.xlu0 %1922, %v1652
  %v1924 = vpop.permute.xlu0 %1923
  %1925 = vset.pattern.permute.xlu0 0
  %1926 = vperm.xlu0 %1925, %v1653
  %v1927 = vpop.permute.xlu0 %1926
  %1928 = vset.pattern.permute.xlu0 0
  %1929 = vperm.xlu0 %1928, %v1654
  %v1930 = vpop.permute.xlu0 %1929
  %1931 = vset.pattern.permute.xlu0 0
  %1932 = vperm.xlu0 %1931, %v1655
  %v1933 = vpop.permute.xlu0 %1932
  %1934 = vset.pattern.permute.xlu0 0
  %1935 = vperm.xlu0 %1934, %v1656
  %v1936 = vpop.permute.xlu0 %1935
  %1937 = vset.pattern.permute.xlu0 0
  %1938 = vperm.xlu0 %1937, %v1657
  %v1939 = vpop.permute.xlu0 %1938
  %1940 = vset.pattern.permute.xlu0 0
  %1941 = vperm.xlu0 %1940, %v1658
  %v1942 = vpop.permute.xlu0 %1941
  %1943 = vset.pattern.permute.xlu0 0
  %1944 = vperm.xlu0 %1943, %v1659
  %v1945 = vpop.permute.xlu0 %1944
  %1946 = vset.pattern.permute.xlu0 0
  %1947 = vperm.xlu0 %1946, %v1660
  %v1948 = vpop.permute.xlu0 %1947
  %1949 = vset.pattern.permute.xlu0 0
  %1950 = vperm.xlu0 %1949, %v1661
  %v1951 = vpop.permute.xlu0 %1950
  %1952 = vset.pattern.permute.xlu0 0
  %1953 = vperm.xlu0 %1952, %v1662
  %v1954 = vpop.permute.xlu0 %1953
  %1955 = vset.pattern.permute.xlu0 0
  %1956 = vperm.xlu0 %1955, %v1663
  %v1957 = vpop.permute.xlu0 %1956
  %1958 = vset.pattern.permute.xlu0 0
  %1959 = vperm.xlu0 %1958, %v1664
  %v1960 = vpop.permute.xlu0 %1959
  %1961 = vset.pattern.permute.xlu0 0
  %1962 = vperm.xlu0 %1961, %v1665
  %v1963 = vpop.permute.xlu0 %1962
  %1964 = vset.pattern.permute.xlu0 0
  %1965 = vperm.xlu0 %1964, %v1666
  %v1966 = vpop.permute.xlu0 %1965
  %1967 = vset.pattern.permute.xlu0 0
  %1968 = vperm.xlu0 %1967, %v1667
  %v1969 = vpop.permute.xlu0 %1968
  %1970 = vset.pattern.permute.xlu0 0
  %1971 = vperm.xlu0 %1970, %v1668
  %v1972 = vpop.permute.xlu0 %1971
  %1973 = vset.pattern.permute.xlu0 0
  %1974 = vperm.xlu0 %1973, %v1669
  %v1975 = vpop.permute.xlu0 %1974
  %1976 = vset.pattern.permute.xlu0 0
  %1977 = vperm.xlu0 %1976, %v1670
  %v1978 = vpop.permute.xlu0 %1977
  %1979 = vset.pattern.permute.xlu0 0
  %1980 = vperm.xlu0 %1979, %v1671
  %v1981 = vpop.permute.xlu0 %1980
  %1982 = vset.pattern.permute.xlu0 0
  %1983 = vperm.xlu0 %1982, %v1672
  %v1984 = vpop.permute.xlu0 %1983
  %1985 = vset.pattern.permute.xlu0 0
  %1986 = vperm.xlu0 %1985, %v1673
  %v1987 = vpop.permute.xlu0 %1986
  %1988 = vset.pattern.permute.xlu0 0
  %1989 = vperm.xlu0 %1988, %v1674
  %v1990 = vpop.permute.xlu0 %1989
  %1991 = vset.pattern.permute.xlu0 0
  %1992 = vperm.xlu0 %1991, %v1675
  %v1993 = vpop.permute.xlu0 %1992
  %1994 = vset.pattern.permute.xlu0 0
  %1995 = vperm.xlu0 %1994, %v1676
  %v1996 = vpop.permute.xlu0 %1995
  %v1997 = vlaneseq
  %v1998 = vshrl.u32 %v1997, 7
  %v1999 = vsub.s32 %v1054, %v1998
  %v2000 = vrot.slane %v1807, %v1999
  %v2001 = vlaneseq
  %v2002 = vshrl.u32 %v2001, 7
  %v2003 = vsub.s32 %v1059, %v2002
  %v2004 = vrot.slane %v1810, %v2003
  %v2005 = vsel %vm1064, %v2004, %v2000
  %v2006 = vlaneseq
  %v2007 = vshrl.u32 %v2006, 7
  %v2008 = vsub.s32 %v1066, %v2007
  %v2009 = vrot.slane %v1813, %v2008
  %v2010 = vsel %vm1071, %v2009, %v2005
  %v2011 = vlaneseq
  %v2012 = vshrl.u32 %v2011, 7
  %v2013 = vsub.s32 %v1073, %v2012
  %v2014 = vrot.slane %v1816, %v2013
  %v2015 = vsel %vm1078, %v2014, %v2010
  %v2016 = vlaneseq
  %v2017 = vshrl.u32 %v2016, 7
  %v2018 = vsub.s32 %v1080, %v2017
  %v2019 = vrot.slane %v1819, %v2018
  %v2020 = vsel %vm1085, %v2019, %v2015
  %v2021 = vlaneseq
  %v2022 = vshrl.u32 %v2021, 7
  %v2023 = vsub.s32 %v1087, %v2022
  %v2024 = vrot.slane %v1822, %v2023
  %v2025 = vsel %vm1092, %v2024, %v2020
  %v2026 = vlaneseq
  %v2027 = vshrl.u32 %v2026, 7
  %v2028 = vsub.s32 %v1094, %v2027
  %v2029 = vrot.slane %v1825, %v2028
  %v2030 = vsel %vm1099, %v2029, %v2025
  %v2031 = vlaneseq
  %v2032 = vshrl.u32 %v2031, 7
  %v2033 = vsub.s32 %v1101, %v2032
  %v2034 = vrot.slane %v1828, %v2033
  %v2035 = vsel %vm1106, %v2034, %v2030
  %v2036 = vlaneseq
  %v2037 = vshrl.u32 %v2036, 7
  %v2038 = vsub.s32 %v1054, %v2037
  %v2039 = vrot.slane %v1831, %v2038
  %v2040 = vlaneseq
  %v2041 = vshrl.u32 %v2040, 7
  %v2042 = vsub.s32 %v1059, %v2041
  %v2043 = vrot.slane %v1834, %v2042
  %v2044 = vsel %vm1064, %v2043, %v2039
  %v2045 = vlaneseq
  %v2046 = vshrl.u32 %v2045, 7
  %v2047 = vsub.s32 %v1066, %v2046
  %v2048 = vrot.slane %v1837, %v2047
  %v2049 = vsel %vm1071, %v2048, %v2044
  %v2050 = vlaneseq
  %v2051 = vshrl.u32 %v2050, 7
  %v2052 = vsub.s32 %v1073, %v2051
  %v2053 = vrot.slane %v1840, %v2052
  %v2054 = vsel %vm1078, %v2053, %v2049
  %v2055 = vlaneseq
  %v2056 = vshrl.u32 %v2055, 7
  %v2057 = vsub.s32 %v1080, %v2056
  %v2058 = vrot.slane %v1843, %v2057
  %v2059 = vsel %vm1085, %v2058, %v2054
  %v2060 = vlaneseq
  %v2061 = vshrl.u32 %v2060, 7
  %v2062 = vsub.s32 %v1087, %v2061
  %v2063 = vrot.slane %v1846, %v2062
  %v2064 = vsel %vm1092, %v2063, %v2059
  %v2065 = vlaneseq
  %v2066 = vshrl.u32 %v2065, 7
  %v2067 = vsub.s32 %v1094, %v2066
  %v2068 = vrot.slane %v1849, %v2067
  %v2069 = vsel %vm1099, %v2068, %v2064
  %v2070 = vlaneseq
  %v2071 = vshrl.u32 %v2070, 7
  %v2072 = vsub.s32 %v1101, %v2071
  %v2073 = vrot.slane %v1852, %v2072
  %v2074 = vsel %vm1106, %v2073, %v2069
  %v2075 = vlaneseq
  %v2076 = vshrl.u32 %v2075, 7
  %v2077 = vsub.s32 %v1054, %v2076
  %v2078 = vrot.slane %v1855, %v2077
  %v2079 = vlaneseq
  %v2080 = vshrl.u32 %v2079, 7
  %v2081 = vsub.s32 %v1059, %v2080
  %v2082 = vrot.slane %v1858, %v2081
  %v2083 = vsel %vm1064, %v2082, %v2078
  %v2084 = vlaneseq
  %v2085 = vshrl.u32 %v2084, 7
  %v2086 = vsub.s32 %v1066, %v2085
  %v2087 = vrot.slane %v1861, %v2086
  %v2088 = vsel %vm1071, %v2087, %v2083
  %v2089 = vlaneseq
  %v2090 = vshrl.u32 %v2089, 7
  %v2091 = vsub.s32 %v1073, %v2090
  %v2092 = vrot.slane %v1864, %v2091
  %v2093 = vsel %vm1078, %v2092, %v2088
  %v2094 = vlaneseq
  %v2095 = vshrl.u32 %v2094, 7
  %v2096 = vsub.s32 %v1080, %v2095
  %v2097 = vrot.slane %v1867, %v2096
  %v2098 = vsel %vm1085, %v2097, %v2093
  %v2099 = vlaneseq
  %v2100 = vshrl.u32 %v2099, 7
  %v2101 = vsub.s32 %v1087, %v2100
  %v2102 = vrot.slane %v1870, %v2101
  %v2103 = vsel %vm1092, %v2102, %v2098
  %v2104 = vlaneseq
  %v2105 = vshrl.u32 %v2104, 7
  %v2106 = vsub.s32 %v1094, %v2105
  %v2107 = vrot.slane %v1873, %v2106
  %v2108 = vsel %vm1099, %v2107, %v2103
  %v2109 = vlaneseq
  %v2110 = vshrl.u32 %v2109, 7
  %v2111 = vsub.s32 %v1101, %v2110
  %v2112 = vrot.slane %v1876, %v2111
  %v2113 = vsel %vm1106, %v2112, %v2108
  %v2114 = vlaneseq
  %v2115 = vshrl.u32 %v2114, 7
  %v2116 = vsub.s32 %v1054, %v2115
  %v2117 = vrot.slane %v1879, %v2116
  %v2118 = vlaneseq
  %v2119 = vshrl.u32 %v2118, 7
  %v2120 = vsub.s32 %v1059, %v2119
  %v2121 = vrot.slane %v1882, %v2120
  %v2122 = vsel %vm1064, %v2121, %v2117
  %v2123 = vlaneseq
  %v2124 = vshrl.u32 %v2123, 7
  %v2125 = vsub.s32 %v1066, %v2124
  %v2126 = vrot.slane %v1885, %v2125
  %v2127 = vsel %vm1071, %v2126, %v2122
  %v2128 = vlaneseq
  %v2129 = vshrl.u32 %v2128, 7
  %v2130 = vsub.s32 %v1073, %v2129
  %v2131 = vrot.slane %v1888, %v2130
  %v2132 = vsel %vm1078, %v2131, %v2127
  %v2133 = vlaneseq
  %v2134 = vshrl.u32 %v2133, 7
  %v2135 = vsub.s32 %v1080, %v2134
  %v2136 = vrot.slane %v1891, %v2135
  %v2137 = vsel %vm1085, %v2136, %v2132
  %v2138 = vlaneseq
  %v2139 = vshrl.u32 %v2138, 7
  %v2140 = vsub.s32 %v1087, %v2139
  %v2141 = vrot.slane %v1894, %v2140
  %v2142 = vsel %vm1092, %v2141, %v2137
  %v2143 = vlaneseq
  %v2144 = vshrl.u32 %v2143, 7
  %v2145 = vsub.s32 %v1094, %v2144
  %v2146 = vrot.slane %v1897, %v2145
  %v2147 = vsel %vm1099, %v2146, %v2142
  %v2148 = vlaneseq
  %v2149 = vshrl.u32 %v2148, 7
  %v2150 = vsub.s32 %v1101, %v2149
  %v2151 = vrot.slane %v1900, %v2150
  %v2152 = vsel %vm1106, %v2151, %v2147
  %v2153 = vlaneseq
  %v2154 = vshrl.u32 %v2153, 7
  %v2155 = vsub.s32 %v1054, %v2154
  %v2156 = vrot.slane %v1903, %v2155
  %v2157 = vlaneseq
  %v2158 = vshrl.u32 %v2157, 7
  %v2159 = vsub.s32 %v1059, %v2158
  %v2160 = vrot.slane %v1906, %v2159
  %v2161 = vsel %vm1064, %v2160, %v2156
  %v2162 = vlaneseq
  %v2163 = vshrl.u32 %v2162, 7
  %v2164 = vsub.s32 %v1066, %v2163
  %v2165 = vrot.slane %v1909, %v2164
  %v2166 = vsel %vm1071, %v2165, %v2161
  %v2167 = vlaneseq
  %v2168 = vshrl.u32 %v2167, 7
  %v2169 = vsub.s32 %v1073, %v2168
  %v2170 = vrot.slane %v1912, %v2169
  %v2171 = vsel %vm1078, %v2170, %v2166
  %v2172 = vlaneseq
  %v2173 = vshrl.u32 %v2172, 7
  %v2174 = vsub.s32 %v1080, %v2173
  %v2175 = vrot.slane %v1915, %v2174
  %v2176 = vsel %vm1085, %v2175, %v2171
  %v2177 = vlaneseq
  %v2178 = vshrl.u32 %v2177, 7
  %v2179 = vsub.s32 %v1087, %v2178
  %v2180 = vrot.slane %v1918, %v2179
  %v2181 = vsel %vm1092, %v2180, %v2176
  %v2182 = vlaneseq
  %v2183 = vshrl.u32 %v2182, 7
  %v2184 = vsub.s32 %v1094, %v2183
  %v2185 = vrot.slane %v1921, %v2184
  %v2186 = vsel %vm1099, %v2185, %v2181
  %v2187 = vlaneseq
  %v2188 = vshrl.u32 %v2187, 7
  %v2189 = vsub.s32 %v1101, %v2188
  %v2190 = vrot.slane %v1924, %v2189
  %v2191 = vsel %vm1106, %v2190, %v2186
  %v2192 = vlaneseq
  %v2193 = vshrl.u32 %v2192, 7
  %v2194 = vsub.s32 %v1054, %v2193
  %v2195 = vrot.slane %v1927, %v2194
  %v2196 = vlaneseq
  %v2197 = vshrl.u32 %v2196, 7
  %v2198 = vsub.s32 %v1059, %v2197
  %v2199 = vrot.slane %v1930, %v2198
  %v2200 = vsel %vm1064, %v2199, %v2195
  %v2201 = vlaneseq
  %v2202 = vshrl.u32 %v2201, 7
  %v2203 = vsub.s32 %v1066, %v2202
  %v2204 = vrot.slane %v1933, %v2203
  %v2205 = vsel %vm1071, %v2204, %v2200
  %v2206 = vlaneseq
  %v2207 = vshrl.u32 %v2206, 7
  %v2208 = vsub.s32 %v1073, %v2207
  %v2209 = vrot.slane %v1936, %v2208
  %v2210 = vsel %vm1078, %v2209, %v2205
  %v2211 = vlaneseq
  %v2212 = vshrl.u32 %v2211, 7
  %v2213 = vsub.s32 %v1080, %v2212
  %v2214 = vrot.slane %v1939, %v2213
  %v2215 = vsel %vm1085, %v2214, %v2210
  %v2216 = vlaneseq
  %v2217 = vshrl.u32 %v2216, 7
  %v2218 = vsub.s32 %v1087, %v2217
  %v2219 = vrot.slane %v1942, %v2218
  %v2220 = vsel %vm1092, %v2219, %v2215
  %v2221 = vlaneseq
  %v2222 = vshrl.u32 %v2221, 7
  %v2223 = vsub.s32 %v1094, %v2222
  %v2224 = vrot.slane %v1945, %v2223
  %v2225 = vsel %vm1099, %v2224, %v2220
  %v2226 = vlaneseq
  %v2227 = vshrl.u32 %v2226, 7
  %v2228 = vsub.s32 %v1101, %v2227
  %v2229 = vrot.slane %v1948, %v2228
  %v2230 = vsel %vm1106, %v2229, %v2225
  %v2231 = vlaneseq
  %v2232 = vshrl.u32 %v2231, 7
  %v2233 = vsub.s32 %v1054, %v2232
  %v2234 = vrot.slane %v1951, %v2233
  %v2235 = vlaneseq
  %v2236 = vshrl.u32 %v2235, 7
  %v2237 = vsub.s32 %v1059, %v2236
  %v2238 = vrot.slane %v1954, %v2237
  %v2239 = vsel %vm1064, %v2238, %v2234
  %v2240 = vlaneseq
  %v2241 = vshrl.u32 %v2240, 7
  %v2242 = vsub.s32 %v1066, %v2241
  %v2243 = vrot.slane %v1957, %v2242
  %v2244 = vsel %vm1071, %v2243, %v2239
  %v2245 = vlaneseq
  %v2246 = vshrl.u32 %v2245, 7
  %v2247 = vsub.s32 %v1073, %v2246
  %v2248 = vrot.slane %v1960, %v2247
  %v2249 = vsel %vm1078, %v2248, %v2244
  %v2250 = vlaneseq
  %v2251 = vshrl.u32 %v2250, 7
  %v2252 = vsub.s32 %v1080, %v2251
  %v2253 = vrot.slane %v1963, %v2252
  %v2254 = vsel %vm1085, %v2253, %v2249
  %v2255 = vlaneseq
  %v2256 = vshrl.u32 %v2255, 7
  %v2257 = vsub.s32 %v1087, %v2256
  %v2258 = vrot.slane %v1966, %v2257
  %v2259 = vsel %vm1092, %v2258, %v2254
  %v2260 = vlaneseq
  %v2261 = vshrl.u32 %v2260, 7
  %v2262 = vsub.s32 %v1094, %v2261
  %v2263 = vrot.slane %v1969, %v2262
  %v2264 = vsel %vm1099, %v2263, %v2259
  %v2265 = vlaneseq
  %v2266 = vshrl.u32 %v2265, 7
  %v2267 = vsub.s32 %v1101, %v2266
  %v2268 = vrot.slane %v1972, %v2267
  %v2269 = vsel %vm1106, %v2268, %v2264
  %v2270 = vlaneseq
  %v2271 = vshrl.u32 %v2270, 7
  %v2272 = vsub.s32 %v1054, %v2271
  %v2273 = vrot.slane %v1975, %v2272
  %v2274 = vlaneseq
  %v2275 = vshrl.u32 %v2274, 7
  %v2276 = vsub.s32 %v1059, %v2275
  %v2277 = vrot.slane %v1978, %v2276
  %v2278 = vsel %vm1064, %v2277, %v2273
  %v2279 = vlaneseq
  %v2280 = vshrl.u32 %v2279, 7
  %v2281 = vsub.s32 %v1066, %v2280
  %v2282 = vrot.slane %v1981, %v2281
  %v2283 = vsel %vm1071, %v2282, %v2278
  %v2284 = vlaneseq
  %v2285 = vshrl.u32 %v2284, 7
  %v2286 = vsub.s32 %v1073, %v2285
  %v2287 = vrot.slane %v1984, %v2286
  %v2288 = vsel %vm1078, %v2287, %v2283
  %v2289 = vlaneseq
  %v2290 = vshrl.u32 %v2289, 7
  %v2291 = vsub.s32 %v1080, %v2290
  %v2292 = vrot.slane %v1987, %v2291
  %v2293 = vsel %vm1085, %v2292, %v2288
  %v2294 = vlaneseq
  %v2295 = vshrl.u32 %v2294, 7
  %v2296 = vsub.s32 %v1087, %v2295
  %v2297 = vrot.slane %v1990, %v2296
  %v2298 = vsel %vm1092, %v2297, %v2293
  %v2299 = vlaneseq
  %v2300 = vshrl.u32 %v2299, 7
  %v2301 = vsub.s32 %v1094, %v2300
  %v2302 = vrot.slane %v1993, %v2301
  %v2303 = vsel %vm1099, %v2302, %v2298
  %v2304 = vlaneseq
  %v2305 = vshrl.u32 %v2304, 7
  %v2306 = vsub.s32 %v1101, %v2305
  %v2307 = vrot.slane %v1996, %v2306
  %v2308 = vsel %vm1106, %v2307, %v2303
  %v2309 = vsel %vm727, %v2074, %v2035
  %v2310 = vsel %vm730, %v2113, %v2309
  %v2311 = vsel %vm733, %v2152, %v2310
  %v2312 = vsel %vm736, %v2191, %v2311
  %v2313 = vsel %vm739, %v2230, %v2312
  %v2314 = vsel %vm742, %v2269, %v2313
  %v2315 = vsel %vm745, %v2308, %v2314
  %2317 = vmatprep.subr.bf16.mxu0 0
  %2318 = vmatpush1.bf16.msra.mxu0 %v1725
  %2319 = vmatprep.subr.bf16.mxu0 0
  %2320 = vmatpush1.bf16.msra.mxu0 %v1726
  %2321 = vmatprep.subr.bf16.mxu0 0
  %2322 = vmatpush1.bf16.msra.mxu0 %v1727
  %2323 = vmatprep.subr.bf16.mxu0 0
  %2324 = vmatpush1.bf16.msra.mxu0 %v1728
  %2325 = vmatprep.subr.bf16.mxu0 0
  %2326 = vmatpush1.bf16.msra.mxu0 %v1729
  %2327 = vmatprep.subr.bf16.mxu0 0
  %2328 = vmatpush1.bf16.msra.mxu0 %v1730
  %2329 = vmatprep.subr.bf16.mxu0 0
  %2330 = vmatpush1.bf16.msra.mxu0 %v1731
  %2331 = vmatprep.subr.bf16.mxu0 0
  %2332 = vmatpush1.bf16.msra.mxu0 %v1732
  %2333 = vmatprep.subr.bf16.mxu0 0
  %2334 = vmatpush1.bf16.msra.mxu0 0
  %2335 = vmatprep.subr.bf16.mxu0 0
  %2336 = vmatpush1.bf16.msra.mxu0 0
  %2337 = vmatprep.subr.bf16.mxu0 0
  %2338 = vmatpush1.bf16.msra.mxu0 0
  %2339 = vmatprep.subr.bf16.mxu0 0
  %2340 = vmatpush1.bf16.msra.mxu0 0
  %2341 = vmatprep.subr.bf16.mxu0 0
  %2342 = vmatpush1.bf16.msra.mxu0 0
  %2343 = vmatprep.subr.bf16.mxu0 0
  %2344 = vmatpush1.bf16.msra.mxu0 0
  %2345 = vmatprep.subr.bf16.mxu0 0
  %2346 = vmatpush1.bf16.msra.mxu0 0
  %2347 = vmatprep.subr.bf16.mxu0 0
  %2348 = vmatpush1.bf16.msra.mxu0 0
  %2349 = vmatprep.mubr.bf16.mxu0 0
  %2350 = vmatmul.mubr.bf16.gmra.mrb[0].mxu0 %v1691
  %v2351 = vpop.f32.mrb[0].mxu0
  %v2352 = vadd.f32 %v2315, %v2351
  %v2353 = vpop.f32.mrb[0].mxu0
  %v2354 = vpop.f32.mrb[0].mxu0
  %v2355 = vpop.f32.mrb[0].mxu0
  %2356 = vdwg.mxu0
  %v2357 = vld [vmem:[%s6 + $0x1] sm:$0x1]
  %v2358 = vlaneseq
  %v2359 = vshrl.u32 %v2358, 7
  %v2360 = vsub.s32 0, %v2359
  %v2361 = vrot.slane %v2357, %v2360
  %v2362 = vadd.f32 %v2352, %v2361
  %s2363 = scalar_lea.vmem %s9, 8
  %2364 = vst.msk [vmem:[%s2363] sm:$0xff] %vm200, %v2362
  %v2365 = vpack.c.bf16 %v2362, %v2362
  %s2366 = scalar_lea.vmem %s7, 32
  %v2367 = vld [vmem:[%s2366] sm:$0xf]
  %v2368 = vld [vmem:[%s2366 + $0x4] sm:$0xf]
  %v2369 = vld [vmem:[%s2366 + $0x8] sm:$0xf]
  %v2370 = vld [vmem:[%s2366 + $0xc] sm:$0xf]
  %v2371 = vld [vmem:[%s2366 + $0x10] sm:$0xf]
  %v2372 = vld [vmem:[%s2366 + $0x14] sm:$0xf]
  %v2373 = vld [vmem:[%s2366 + $0x18] sm:$0xf]
  %v2374 = vld [vmem:[%s2366 + $0x1c] sm:$0xf]
  %v2375 = vld [vmem:[%s8 + $0x1] sm:$0x1]
  %v2376 = vlaneseq
  %v2377 = vshrl.u32 %v2376, 7
  %v2378 = vsub.s32 0, %v2377
  %v2379 = vrot.slane %v2375, %v2378
  %v2388 = vunpack.c.l.b16 %v2367
  %v2389 = vunpack.c.l.b16 %v2368
  %v2390 = vunpack.c.l.b16 %v2369
  %v2391 = vunpack.c.l.b16 %v2370
  %v2392 = vunpack.c.l.b16 %v2371
  %v2393 = vunpack.c.l.b16 %v2372
  %v2394 = vunpack.c.l.b16 %v2373
  %v2395 = vunpack.c.l.b16 %v2374
  %v2396 = vpack.c.b16 %v2389, %v2388
  %v2397 = vpack.c.b16 %v2391, %v2390
  %v2398 = vpack.c.b16 %v2393, %v2392
  %v2399 = vpack.c.b16 %v2395, %v2394
  %v2405 = vsel %vm200, %v2365, 0
  %2407 = vmatprep.subr.bf16.mxu0 0
  %2408 = vmatpush1.bf16.msra.mxu0 %v2396
  %2409 = vmatprep.subr.bf16.mxu0 0
  %2410 = vmatpush1.bf16.msra.mxu0 %v2397
  %2411 = vmatprep.subr.bf16.mxu0 0
  %2412 = vmatpush1.bf16.msra.mxu0 %v2398
  %2413 = vmatprep.subr.bf16.mxu0 0
  %2414 = vmatpush1.bf16.msra.mxu0 %v2399
  %2415 = vmatprep.subr.bf16.mxu0 0
  %2416 = vmatpush1.bf16.msra.mxu0 0
  %2417 = vmatprep.subr.bf16.mxu0 0
  %2418 = vmatpush1.bf16.msra.mxu0 0
  %2419 = vmatprep.subr.bf16.mxu0 0
  %2420 = vmatpush1.bf16.msra.mxu0 0
  %2421 = vmatprep.subr.bf16.mxu0 0
  %2422 = vmatpush1.bf16.msra.mxu0 0
  %2423 = vmatprep.subr.bf16.mxu0 0
  %2424 = vmatpush1.bf16.msra.mxu0 0
  %2425 = vmatprep.subr.bf16.mxu0 0
  %2426 = vmatpush1.bf16.msra.mxu0 0
  %2427 = vmatprep.subr.bf16.mxu0 0
  %2428 = vmatpush1.bf16.msra.mxu0 0
  %2429 = vmatprep.subr.bf16.mxu0 0
  %2430 = vmatpush1.bf16.msra.mxu0 0
  %2431 = vmatprep.subr.bf16.mxu0 0
  %2432 = vmatpush1.bf16.msra.mxu0 0
  %2433 = vmatprep.subr.bf16.mxu0 0
  %2434 = vmatpush1.bf16.msra.mxu0 0
  %2435 = vmatprep.subr.bf16.mxu0 0
  %2436 = vmatpush1.bf16.msra.mxu0 0
  %2437 = vmatprep.subr.bf16.mxu0 0
  %2438 = vmatpush1.bf16.msra.mxu0 0
  %2439 = vmatprep.mubr.bf16.mxu0 0
  %2440 = vmatmul.mubr.bf16.gmra.mrb[0].mxu0 %v2405
  %v2441 = vpop.f32.mrb[0].mxu0
  %v2442 = vadd.f32 %v2379, %v2441
  %v2443 = vpop.f32.mrb[0].mxu0
  %v2444 = vpop.f32.mrb[0].mxu0
  %v2445 = vpop.f32.mrb[0].mxu0
  %2446 = vdwg.mxu0
  %s2447 = scalar_lea.vmem %s10, 8
  %2448 = vst.msk [vmem:[%s2447] sm:$0xff] %vm1517, %v2442
  %s2449 = scalar_lea.vmem %s4, 128
  %v2450 = vld [vmem:[%s2449] sm:$0xf]
  %v2451 = vld [vmem:[%s2449 + $0x4] sm:$0xf]
  %v2452 = vld [vmem:[%s2449 + $0x8] sm:$0xf]
  %v2453 = vld [vmem:[%s2449 + $0xc] sm:$0xf]
  %v2454 = vld [vmem:[%s2449 + $0x10] sm:$0xf]
  %v2455 = vld [vmem:[%s2449 + $0x14] sm:$0xf]
  %v2456 = vld [vmem:[%s2449 + $0x18] sm:$0xf]
  %v2457 = vld [vmem:[%s2449 + $0x1c] sm:$0xf]
  %v2458 = vld [vmem:[%s2449 + $0x20] sm:$0xf]
  %v2459 = vld [vmem:[%s2449 + $0x24] sm:$0xf]
  %v2460 = vld [vmem:[%s2449 + $0x28] sm:$0xf]
  %v2461 = vld [vmem:[%s2449 + $0x2c] sm:$0xf]
  %v2462 = vld [vmem:[%s2449 + $0x30] sm:$0xf]
  %v2463 = vld [vmem:[%s2449 + $0x34] sm:$0xf]
  %v2464 = vld [vmem:[%s2449 + $0x38] sm:$0xf]
  %v2465 = vld [vmem:[%s2449 + $0x3c] sm:$0xf]
  %v2466 = vld [vmem:[%s5 + $0x2] sm:$0x1]
  %v2467 = vlaneseq
  %v2468 = vshrl.u32 %v2467, 7
  %v2469 = vsub.s32 2, %v2468
  %v2470 = vrot.slane %v178, %v2469
  %v2471 = vlaneseq
  %v2472 = vshrl.u32 %v2471, 7
  %v2473 = vsub.s32 2, %v2472
  %v2474 = vrot.slane %v181, %v2473
  %v2475 = vlaneseq
  %v2476 = vshrl.u32 %v2475, 7
  %v2477 = vsub.s32 2, %v2476
  %v2478 = vrot.slane %v184, %v2477
  %v2479 = vlaneseq
  %v2480 = vshrl.u32 %v2479, 7
  %v2481 = vsub.s32 2, %v2480
  %v2482 = vrot.slane %v187, %v2481
  %v2483 = vlaneseq
  %v2484 = vshrl.u32 %v2483, 7
  %v2485 = vsub.s32 2, %v2484
  %v2486 = vrot.slane %v190, %v2485
  %v2487 = vlaneseq
  %v2488 = vshrl.u32 %v2487, 7
  %v2489 = vsub.s32 2, %v2488
  %v2490 = vrot.slane %v193, %v2489
  %v2491 = vlaneseq
  %v2492 = vshrl.u32 %v2491, 7
  %v2493 = vsub.s32 2, %v2492
  %v2494 = vrot.slane %v196, %v2493
  %v2495 = vlaneseq
  %v2496 = vshrl.u32 %v2495, 7
  %v2497 = vsub.s32 2, %v2496
  %v2498 = vrot.slane %v199, %v2497
  %v2499 = vlaneseq
  %v2500 = vshrl.u32 %v2499, 7
  %v2501 = vsub.s32 0, %v2500
  %v2502 = vrot.slane %v2466, %v2501
  %2505 = vbcast.lane.b32.xlu0 %v2502, 256
  %v2506 = vpop.permute.xlu0 %2505
  %s2508 = sor.u32 256, 8
  %2509 = vbcast.lane.b32.xlu0 %v2502, %s2508
  %v2510 = vpop.permute.xlu0 %2509
  %s2512 = sor.u32 256, 16
  %2513 = vbcast.lane.b32.xlu0 %v2502, %s2512
  %v2514 = vpop.permute.xlu0 %2513
  %s2516 = sor.u32 256, 24
  %2517 = vbcast.lane.b32.xlu0 %v2502, %s2516
  %v2518 = vpop.permute.xlu0 %2517
  %s2520 = sor.u32 256, 32
  %2521 = vbcast.lane.b32.xlu0 %v2502, %s2520
  %v2522 = vpop.permute.xlu0 %2521
  %s2524 = sor.u32 256, 40
  %2525 = vbcast.lane.b32.xlu0 %v2502, %s2524
  %v2526 = vpop.permute.xlu0 %2525
  %s2528 = sor.u32 256, 48
  %2529 = vbcast.lane.b32.xlu0 %v2502, %s2528
  %v2530 = vpop.permute.xlu0 %2529
  %s2532 = sor.u32 256, 56
  %2533 = vbcast.lane.b32.xlu0 %v2502, %s2532
  %v2534 = vpop.permute.xlu0 %2533
  %v2543 = vmul.f32 %v2470, %v2506
  %v2544 = vmul.f32 %v2470, %v2510
  %v2545 = vmul.f32 %v2470, %v2514
  %v2546 = vmul.f32 %v2470, %v2518
  %v2547 = vmul.f32 %v2470, %v2522
  %v2548 = vmul.f32 %v2470, %v2526
  %v2549 = vmul.f32 %v2470, %v2530
  %v2550 = vmul.f32 %v2470, %v2534
  %v2551 = vmul.f32 %v2474, %v2506
  %v2552 = vmul.f32 %v2474, %v2510
  %v2553 = vmul.f32 %v2474, %v2514
  %v2554 = vmul.f32 %v2474, %v2518
  %v2555 = vmul.f32 %v2474, %v2522
  %v2556 = vmul.f32 %v2474, %v2526
  %v2557 = vmul.f32 %v2474, %v2530
  %v2558 = vmul.f32 %v2474, %v2534
  %v2559 = vmul.f32 %v2478, %v2506
  %v2560 = vmul.f32 %v2478, %v2510
  %v2561 = vmul.f32 %v2478, %v2514
  %v2562 = vmul.f32 %v2478, %v2518
  %v2563 = vmul.f32 %v2478, %v2522
  %v2564 = vmul.f32 %v2478, %v2526
  %v2565 = vmul.f32 %v2478, %v2530
  %v2566 = vmul.f32 %v2478, %v2534
  %v2567 = vmul.f32 %v2482, %v2506
  %v2568 = vmul.f32 %v2482, %v2510
  %v2569 = vmul.f32 %v2482, %v2514
  %v2570 = vmul.f32 %v2482, %v2518
  %v2571 = vmul.f32 %v2482, %v2522
  %v2572 = vmul.f32 %v2482, %v2526
  %v2573 = vmul.f32 %v2482, %v2530
  %v2574 = vmul.f32 %v2482, %v2534
  %v2575 = vmul.f32 %v2486, %v2506
  %v2576 = vmul.f32 %v2486, %v2510
  %v2577 = vmul.f32 %v2486, %v2514
  %v2578 = vmul.f32 %v2486, %v2518
  %v2579 = vmul.f32 %v2486, %v2522
  %v2580 = vmul.f32 %v2486, %v2526
  %v2581 = vmul.f32 %v2486, %v2530
  %v2582 = vmul.f32 %v2486, %v2534
  %v2583 = vmul.f32 %v2490, %v2506
  %v2584 = vmul.f32 %v2490, %v2510
  %v2585 = vmul.f32 %v2490, %v2514
  %v2586 = vmul.f32 %v2490, %v2518
  %v2587 = vmul.f32 %v2490, %v2522
  %v2588 = vmul.f32 %v2490, %v2526
  %v2589 = vmul.f32 %v2490, %v2530
  %v2590 = vmul.f32 %v2490, %v2534
  %v2591 = vmul.f32 %v2494, %v2506
  %v2592 = vmul.f32 %v2494, %v2510
  %v2593 = vmul.f32 %v2494, %v2514
  %v2594 = vmul.f32 %v2494, %v2518
  %v2595 = vmul.f32 %v2494, %v2522
  %v2596 = vmul.f32 %v2494, %v2526
  %v2597 = vmul.f32 %v2494, %v2530
  %v2598 = vmul.f32 %v2494, %v2534
  %v2599 = vmul.f32 %v2498, %v2506
  %v2600 = vmul.f32 %v2498, %v2510
  %v2601 = vmul.f32 %v2498, %v2514
  %v2602 = vmul.f32 %v2498, %v2518
  %v2603 = vmul.f32 %v2498, %v2522
  %v2604 = vmul.f32 %v2498, %v2526
  %v2605 = vmul.f32 %v2498, %v2530
  %v2606 = vmul.f32 %v2498, %v2534
  %v2607 = vrot.slane %v718, 2
  %v2608 = vrot.slane %v719, 1
  %v2609 = vsel %vm727, %v2608, %v2607
  %v2610 = vsel %vm730, %v720, %v2609
  %v2611 = vrot.slane %v721, 7
  %v2612 = vsel %vm733, %v2611, %v2610
  %v2613 = vrot.slane %v722, 6
  %v2614 = vsel %vm736, %v2613, %v2612
  %v2615 = vrot.slane %v723, 5
  %v2616 = vsel %vm739, %v2615, %v2614
  %v2617 = vrot.slane %v724, 4
  %v2618 = vsel %vm742, %v2617, %v2616
  %v2619 = vrot.slane %v725, 3
  %v2620 = vsel %vm745, %v2619, %v2618
  %v2621 = vpack.c.b16 %v2620, %v2620
  %v2639 = vunpack.c.l.b16 %v2450
  %v2640 = vunpack.c.l.b16 %v2451
  %v2641 = vunpack.c.l.b16 %v2452
  %v2642 = vunpack.c.l.b16 %v2453
  %v2643 = vunpack.c.l.b16 %v2454
  %v2644 = vunpack.c.l.b16 %v2455
  %v2645 = vunpack.c.l.b16 %v2456
  %v2646 = vunpack.c.l.b16 %v2457
  %v2647 = vunpack.c.l.b16 %v2458
  %v2648 = vunpack.c.l.b16 %v2459
  %v2649 = vunpack.c.l.b16 %v2460
  %v2650 = vunpack.c.l.b16 %v2461
  %v2651 = vunpack.c.l.b16 %v2462
  %v2652 = vunpack.c.l.b16 %v2463
  %v2653 = vunpack.c.l.b16 %v2464
  %v2654 = vunpack.c.l.b16 %v2465
  %v2655 = vpack.c.b16 %v2640, %v2639
  %v2656 = vpack.c.b16 %v2642, %v2641
  %v2657 = vpack.c.b16 %v2644, %v2643
  %v2658 = vpack.c.b16 %v2646, %v2645
  %v2659 = vpack.c.b16 %v2648, %v2647
  %v2660 = vpack.c.b16 %v2650, %v2649
  %v2661 = vpack.c.b16 %v2652, %v2651
  %v2662 = vpack.c.b16 %v2654, %v2653
  %2735 = vset.pattern.permute.xlu0 0
  %2736 = vperm.xlu0 %2735, %v2543
  %v2737 = vpop.permute.xlu0 %2736
  %2738 = vset.pattern.permute.xlu0 0
  %2739 = vperm.xlu0 %2738, %v2544
  %v2740 = vpop.permute.xlu0 %2739
  %2741 = vset.pattern.permute.xlu0 0
  %2742 = vperm.xlu0 %2741, %v2545
  %v2743 = vpop.permute.xlu0 %2742
  %2744 = vset.pattern.permute.xlu0 0
  %2745 = vperm.xlu0 %2744, %v2546
  %v2746 = vpop.permute.xlu0 %2745
  %2747 = vset.pattern.permute.xlu0 0
  %2748 = vperm.xlu0 %2747, %v2547
  %v2749 = vpop.permute.xlu0 %2748
  %2750 = vset.pattern.permute.xlu0 0
  %2751 = vperm.xlu0 %2750, %v2548
  %v2752 = vpop.permute.xlu0 %2751
  %2753 = vset.pattern.permute.xlu0 0
  %2754 = vperm.xlu0 %2753, %v2549
  %v2755 = vpop.permute.xlu0 %2754
  %2756 = vset.pattern.permute.xlu0 0
  %2757 = vperm.xlu0 %2756, %v2550
  %v2758 = vpop.permute.xlu0 %2757
  %2759 = vset.pattern.permute.xlu0 0
  %2760 = vperm.xlu0 %2759, %v2551
  %v2761 = vpop.permute.xlu0 %2760
  %2762 = vset.pattern.permute.xlu0 0
  %2763 = vperm.xlu0 %2762, %v2552
  %v2764 = vpop.permute.xlu0 %2763
  %2765 = vset.pattern.permute.xlu0 0
  %2766 = vperm.xlu0 %2765, %v2553
  %v2767 = vpop.permute.xlu0 %2766
  %2768 = vset.pattern.permute.xlu0 0
  %2769 = vperm.xlu0 %2768, %v2554
  %v2770 = vpop.permute.xlu0 %2769
  %2771 = vset.pattern.permute.xlu0 0
  %2772 = vperm.xlu0 %2771, %v2555
  %v2773 = vpop.permute.xlu0 %2772
  %2774 = vset.pattern.permute.xlu0 0
  %2775 = vperm.xlu0 %2774, %v2556
  %v2776 = vpop.permute.xlu0 %2775
  %2777 = vset.pattern.permute.xlu0 0
  %2778 = vperm.xlu0 %2777, %v2557
  %v2779 = vpop.permute.xlu0 %2778
  %2780 = vset.pattern.permute.xlu0 0
  %2781 = vperm.xlu0 %2780, %v2558
  %v2782 = vpop.permute.xlu0 %2781
  %2783 = vset.pattern.permute.xlu0 0
  %2784 = vperm.xlu0 %2783, %v2559
  %v2785 = vpop.permute.xlu0 %2784
  %2786 = vset.pattern.permute.xlu0 0
  %2787 = vperm.xlu0 %2786, %v2560
  %v2788 = vpop.permute.xlu0 %2787
  %2789 = vset.pattern.permute.xlu0 0
  %2790 = vperm.xlu0 %2789, %v2561
  %v2791 = vpop.permute.xlu0 %2790
  %2792 = vset.pattern.permute.xlu0 0
  %2793 = vperm.xlu0 %2792, %v2562
  %v2794 = vpop.permute.xlu0 %2793
  %2795 = vset.pattern.permute.xlu0 0
  %2796 = vperm.xlu0 %2795, %v2563
  %v2797 = vpop.permute.xlu0 %2796
  %2798 = vset.pattern.permute.xlu0 0
  %2799 = vperm.xlu0 %2798, %v2564
  %v2800 = vpop.permute.xlu0 %2799
  %2801 = vset.pattern.permute.xlu0 0
  %2802 = vperm.xlu0 %2801, %v2565
  %v2803 = vpop.permute.xlu0 %2802
  %2804 = vset.pattern.permute.xlu0 0
  %2805 = vperm.xlu0 %2804, %v2566
  %v2806 = vpop.permute.xlu0 %2805
  %2807 = vset.pattern.permute.xlu0 0
  %2808 = vperm.xlu0 %2807, %v2567
  %v2809 = vpop.permute.xlu0 %2808
  %2810 = vset.pattern.permute.xlu0 0
  %2811 = vperm.xlu0 %2810, %v2568
  %v2812 = vpop.permute.xlu0 %2811
  %2813 = vset.pattern.permute.xlu0 0
  %2814 = vperm.xlu0 %2813, %v2569
  %v2815 = vpop.permute.xlu0 %2814
  %2816 = vset.pattern.permute.xlu0 0
  %2817 = vperm.xlu0 %2816, %v2570
  %v2818 = vpop.permute.xlu0 %2817
  %2819 = vset.pattern.permute.xlu0 0
  %2820 = vperm.xlu0 %2819, %v2571
  %v2821 = vpop.permute.xlu0 %2820
  %2822 = vset.pattern.permute.xlu0 0
  %2823 = vperm.xlu0 %2822, %v2572
  %v2824 = vpop.permute.xlu0 %2823
  %2825 = vset.pattern.permute.xlu0 0
  %2826 = vperm.xlu0 %2825, %v2573
  %v2827 = vpop.permute.xlu0 %2826
  %2828 = vset.pattern.permute.xlu0 0
  %2829 = vperm.xlu0 %2828, %v2574
  %v2830 = vpop.permute.xlu0 %2829
  %2831 = vset.pattern.permute.xlu0 0
  %2832 = vperm.xlu0 %2831, %v2575
  %v2833 = vpop.permute.xlu0 %2832
  %2834 = vset.pattern.permute.xlu0 0
  %2835 = vperm.xlu0 %2834, %v2576
  %v2836 = vpop.permute.xlu0 %2835
  %2837 = vset.pattern.permute.xlu0 0
  %2838 = vperm.xlu0 %2837, %v2577
  %v2839 = vpop.permute.xlu0 %2838
  %2840 = vset.pattern.permute.xlu0 0
  %2841 = vperm.xlu0 %2840, %v2578
  %v2842 = vpop.permute.xlu0 %2841
  %2843 = vset.pattern.permute.xlu0 0
  %2844 = vperm.xlu0 %2843, %v2579
  %v2845 = vpop.permute.xlu0 %2844
  %2846 = vset.pattern.permute.xlu0 0
  %2847 = vperm.xlu0 %2846, %v2580
  %v2848 = vpop.permute.xlu0 %2847
  %2849 = vset.pattern.permute.xlu0 0
  %2850 = vperm.xlu0 %2849, %v2581
  %v2851 = vpop.permute.xlu0 %2850
  %2852 = vset.pattern.permute.xlu0 0
  %2853 = vperm.xlu0 %2852, %v2582
  %v2854 = vpop.permute.xlu0 %2853
  %2855 = vset.pattern.permute.xlu0 0
  %2856 = vperm.xlu0 %2855, %v2583
  %v2857 = vpop.permute.xlu0 %2856
  %2858 = vset.pattern.permute.xlu0 0
  %2859 = vperm.xlu0 %2858, %v2584
  %v2860 = vpop.permute.xlu0 %2859
  %2861 = vset.pattern.permute.xlu0 0
  %2862 = vperm.xlu0 %2861, %v2585
  %v2863 = vpop.permute.xlu0 %2862
  %2864 = vset.pattern.permute.xlu0 0
  %2865 = vperm.xlu0 %2864, %v2586
  %v2866 = vpop.permute.xlu0 %2865
  %2867 = vset.pattern.permute.xlu0 0
  %2868 = vperm.xlu0 %2867, %v2587
  %v2869 = vpop.permute.xlu0 %2868
  %2870 = vset.pattern.permute.xlu0 0
  %2871 = vperm.xlu0 %2870, %v2588
  %v2872 = vpop.permute.xlu0 %2871
  %2873 = vset.pattern.permute.xlu0 0
  %2874 = vperm.xlu0 %2873, %v2589
  %v2875 = vpop.permute.xlu0 %2874
  %2876 = vset.pattern.permute.xlu0 0
  %2877 = vperm.xlu0 %2876, %v2590
  %v2878 = vpop.permute.xlu0 %2877
  %2879 = vset.pattern.permute.xlu0 0
  %2880 = vperm.xlu0 %2879, %v2591
  %v2881 = vpop.permute.xlu0 %2880
  %2882 = vset.pattern.permute.xlu0 0
  %2883 = vperm.xlu0 %2882, %v2592
  %v2884 = vpop.permute.xlu0 %2883
  %2885 = vset.pattern.permute.xlu0 0
  %2886 = vperm.xlu0 %2885, %v2593
  %v2887 = vpop.permute.xlu0 %2886
  %2888 = vset.pattern.permute.xlu0 0
  %2889 = vperm.xlu0 %2888, %v2594
  %v2890 = vpop.permute.xlu0 %2889
  %2891 = vset.pattern.permute.xlu0 0
  %2892 = vperm.xlu0 %2891, %v2595
  %v2893 = vpop.permute.xlu0 %2892
  %2894 = vset.pattern.permute.xlu0 0
  %2895 = vperm.xlu0 %2894, %v2596
  %v2896 = vpop.permute.xlu0 %2895
  %2897 = vset.pattern.permute.xlu0 0
  %2898 = vperm.xlu0 %2897, %v2597
  %v2899 = vpop.permute.xlu0 %2898
  %2900 = vset.pattern.permute.xlu0 0
  %2901 = vperm.xlu0 %2900, %v2598
  %v2902 = vpop.permute.xlu0 %2901
  %2903 = vset.pattern.permute.xlu0 0
  %2904 = vperm.xlu0 %2903, %v2599
  %v2905 = vpop.permute.xlu0 %2904
  %2906 = vset.pattern.permute.xlu0 0
  %2907 = vperm.xlu0 %2906, %v2600
  %v2908 = vpop.permute.xlu0 %2907
  %2909 = vset.pattern.permute.xlu0 0
  %2910 = vperm.xlu0 %2909, %v2601
  %v2911 = vpop.permute.xlu0 %2910
  %2912 = vset.pattern.permute.xlu0 0
  %2913 = vperm.xlu0 %2912, %v2602
  %v2914 = vpop.permute.xlu0 %2913
  %2915 = vset.pattern.permute.xlu0 0
  %2916 = vperm.xlu0 %2915, %v2603
  %v2917 = vpop.permute.xlu0 %2916
  %2918 = vset.pattern.permute.xlu0 0
  %2919 = vperm.xlu0 %2918, %v2604
  %v2920 = vpop.permute.xlu0 %2919
  %2921 = vset.pattern.permute.xlu0 0
  %2922 = vperm.xlu0 %2921, %v2605
  %v2923 = vpop.permute.xlu0 %2922
  %2924 = vset.pattern.permute.xlu0 0
  %2925 = vperm.xlu0 %2924, %v2606
  %v2926 = vpop.permute.xlu0 %2925
  %v2927 = vlaneseq
  %v2928 = vshrl.u32 %v2927, 7
  %v2929 = vsub.s32 %v1054, %v2928
  %v2930 = vrot.slane %v2737, %v2929
  %v2931 = vlaneseq
  %v2932 = vshrl.u32 %v2931, 7
  %v2933 = vsub.s32 %v1059, %v2932
  %v2934 = vrot.slane %v2740, %v2933
  %v2935 = vsel %vm1064, %v2934, %v2930
  %v2936 = vlaneseq
  %v2937 = vshrl.u32 %v2936, 7
  %v2938 = vsub.s32 %v1066, %v2937
  %v2939 = vrot.slane %v2743, %v2938
  %v2940 = vsel %vm1071, %v2939, %v2935
  %v2941 = vlaneseq
  %v2942 = vshrl.u32 %v2941, 7
  %v2943 = vsub.s32 %v1073, %v2942
  %v2944 = vrot.slane %v2746, %v2943
  %v2945 = vsel %vm1078, %v2944, %v2940
  %v2946 = vlaneseq
  %v2947 = vshrl.u32 %v2946, 7
  %v2948 = vsub.s32 %v1080, %v2947
  %v2949 = vrot.slane %v2749, %v2948
  %v2950 = vsel %vm1085, %v2949, %v2945
  %v2951 = vlaneseq
  %v2952 = vshrl.u32 %v2951, 7
  %v2953 = vsub.s32 %v1087, %v2952
  %v2954 = vrot.slane %v2752, %v2953
  %v2955 = vsel %vm1092, %v2954, %v2950
  %v2956 = vlaneseq
  %v2957 = vshrl.u32 %v2956, 7
  %v2958 = vsub.s32 %v1094, %v2957
  %v2959 = vrot.slane %v2755, %v2958
  %v2960 = vsel %vm1099, %v2959, %v2955
  %v2961 = vlaneseq
  %v2962 = vshrl.u32 %v2961, 7
  %v2963 = vsub.s32 %v1101, %v2962
  %v2964 = vrot.slane %v2758, %v2963
  %v2965 = vsel %vm1106, %v2964, %v2960
  %v2966 = vlaneseq
  %v2967 = vshrl.u32 %v2966, 7
  %v2968 = vsub.s32 %v1054, %v2967
  %v2969 = vrot.slane %v2761, %v2968
  %v2970 = vlaneseq
  %v2971 = vshrl.u32 %v2970, 7
  %v2972 = vsub.s32 %v1059, %v2971
  %v2973 = vrot.slane %v2764, %v2972
  %v2974 = vsel %vm1064, %v2973, %v2969
  %v2975 = vlaneseq
  %v2976 = vshrl.u32 %v2975, 7
  %v2977 = vsub.s32 %v1066, %v2976
  %v2978 = vrot.slane %v2767, %v2977
  %v2979 = vsel %vm1071, %v2978, %v2974
  %v2980 = vlaneseq
  %v2981 = vshrl.u32 %v2980, 7
  %v2982 = vsub.s32 %v1073, %v2981
  %v2983 = vrot.slane %v2770, %v2982
  %v2984 = vsel %vm1078, %v2983, %v2979
  %v2985 = vlaneseq
  %v2986 = vshrl.u32 %v2985, 7
  %v2987 = vsub.s32 %v1080, %v2986
  %v2988 = vrot.slane %v2773, %v2987
  %v2989 = vsel %vm1085, %v2988, %v2984
  %v2990 = vlaneseq
  %v2991 = vshrl.u32 %v2990, 7
  %v2992 = vsub.s32 %v1087, %v2991
  %v2993 = vrot.slane %v2776, %v2992
  %v2994 = vsel %vm1092, %v2993, %v2989
  %v2995 = vlaneseq
  %v2996 = vshrl.u32 %v2995, 7
  %v2997 = vsub.s32 %v1094, %v2996
  %v2998 = vrot.slane %v2779, %v2997
  %v2999 = vsel %vm1099, %v2998, %v2994
  %v3000 = vlaneseq
  %v3001 = vshrl.u32 %v3000, 7
  %v3002 = vsub.s32 %v1101, %v3001
  %v3003 = vrot.slane %v2782, %v3002
  %v3004 = vsel %vm1106, %v3003, %v2999
  %v3005 = vlaneseq
  %v3006 = vshrl.u32 %v3005, 7
  %v3007 = vsub.s32 %v1054, %v3006
  %v3008 = vrot.slane %v2785, %v3007
  %v3009 = vlaneseq
  %v3010 = vshrl.u32 %v3009, 7
  %v3011 = vsub.s32 %v1059, %v3010
  %v3012 = vrot.slane %v2788, %v3011
  %v3013 = vsel %vm1064, %v3012, %v3008
  %v3014 = vlaneseq
  %v3015 = vshrl.u32 %v3014, 7
  %v3016 = vsub.s32 %v1066, %v3015
  %v3017 = vrot.slane %v2791, %v3016
  %v3018 = vsel %vm1071, %v3017, %v3013
  %v3019 = vlaneseq
  %v3020 = vshrl.u32 %v3019, 7
  %v3021 = vsub.s32 %v1073, %v3020
  %v3022 = vrot.slane %v2794, %v3021
  %v3023 = vsel %vm1078, %v3022, %v3018
  %v3024 = vlaneseq
  %v3025 = vshrl.u32 %v3024, 7
  %v3026 = vsub.s32 %v1080, %v3025
  %v3027 = vrot.slane %v2797, %v3026
  %v3028 = vsel %vm1085, %v3027, %v3023
  %v3029 = vlaneseq
  %v3030 = vshrl.u32 %v3029, 7
  %v3031 = vsub.s32 %v1087, %v3030
  %v3032 = vrot.slane %v2800, %v3031
  %v3033 = vsel %vm1092, %v3032, %v3028
  %v3034 = vlaneseq
  %v3035 = vshrl.u32 %v3034, 7
  %v3036 = vsub.s32 %v1094, %v3035
  %v3037 = vrot.slane %v2803, %v3036
  %v3038 = vsel %vm1099, %v3037, %v3033
  %v3039 = vlaneseq
  %v3040 = vshrl.u32 %v3039, 7
  %v3041 = vsub.s32 %v1101, %v3040
  %v3042 = vrot.slane %v2806, %v3041
  %v3043 = vsel %vm1106, %v3042, %v3038
  %v3044 = vlaneseq
  %v3045 = vshrl.u32 %v3044, 7
  %v3046 = vsub.s32 %v1054, %v3045
  %v3047 = vrot.slane %v2809, %v3046
  %v3048 = vlaneseq
  %v3049 = vshrl.u32 %v3048, 7
  %v3050 = vsub.s32 %v1059, %v3049
  %v3051 = vrot.slane %v2812, %v3050
  %v3052 = vsel %vm1064, %v3051, %v3047
  %v3053 = vlaneseq
  %v3054 = vshrl.u32 %v3053, 7
  %v3055 = vsub.s32 %v1066, %v3054
  %v3056 = vrot.slane %v2815, %v3055
  %v3057 = vsel %vm1071, %v3056, %v3052
  %v3058 = vlaneseq
  %v3059 = vshrl.u32 %v3058, 7
  %v3060 = vsub.s32 %v1073, %v3059
  %v3061 = vrot.slane %v2818, %v3060
  %v3062 = vsel %vm1078, %v3061, %v3057
  %v3063 = vlaneseq
  %v3064 = vshrl.u32 %v3063, 7
  %v3065 = vsub.s32 %v1080, %v3064
  %v3066 = vrot.slane %v2821, %v3065
  %v3067 = vsel %vm1085, %v3066, %v3062
  %v3068 = vlaneseq
  %v3069 = vshrl.u32 %v3068, 7
  %v3070 = vsub.s32 %v1087, %v3069
  %v3071 = vrot.slane %v2824, %v3070
  %v3072 = vsel %vm1092, %v3071, %v3067
  %v3073 = vlaneseq
  %v3074 = vshrl.u32 %v3073, 7
  %v3075 = vsub.s32 %v1094, %v3074
  %v3076 = vrot.slane %v2827, %v3075
  %v3077 = vsel %vm1099, %v3076, %v3072
  %v3078 = vlaneseq
  %v3079 = vshrl.u32 %v3078, 7
  %v3080 = vsub.s32 %v1101, %v3079
  %v3081 = vrot.slane %v2830, %v3080
  %v3082 = vsel %vm1106, %v3081, %v3077
  %v3083 = vlaneseq
  %v3084 = vshrl.u32 %v3083, 7
  %v3085 = vsub.s32 %v1054, %v3084
  %v3086 = vrot.slane %v2833, %v3085
  %v3087 = vlaneseq
  %v3088 = vshrl.u32 %v3087, 7
  %v3089 = vsub.s32 %v1059, %v3088
  %v3090 = vrot.slane %v2836, %v3089
  %v3091 = vsel %vm1064, %v3090, %v3086
  %v3092 = vlaneseq
  %v3093 = vshrl.u32 %v3092, 7
  %v3094 = vsub.s32 %v1066, %v3093
  %v3095 = vrot.slane %v2839, %v3094
  %v3096 = vsel %vm1071, %v3095, %v3091
  %v3097 = vlaneseq
  %v3098 = vshrl.u32 %v3097, 7
  %v3099 = vsub.s32 %v1073, %v3098
  %v3100 = vrot.slane %v2842, %v3099
  %v3101 = vsel %vm1078, %v3100, %v3096
  %v3102 = vlaneseq
  %v3103 = vshrl.u32 %v3102, 7
  %v3104 = vsub.s32 %v1080, %v3103
  %v3105 = vrot.slane %v2845, %v3104
  %v3106 = vsel %vm1085, %v3105, %v3101
  %v3107 = vlaneseq
  %v3108 = vshrl.u32 %v3107, 7
  %v3109 = vsub.s32 %v1087, %v3108
  %v3110 = vrot.slane %v2848, %v3109
  %v3111 = vsel %vm1092, %v3110, %v3106
  %v3112 = vlaneseq
  %v3113 = vshrl.u32 %v3112, 7
  %v3114 = vsub.s32 %v1094, %v3113
  %v3115 = vrot.slane %v2851, %v3114
  %v3116 = vsel %vm1099, %v3115, %v3111
  %v3117 = vlaneseq
  %v3118 = vshrl.u32 %v3117, 7
  %v3119 = vsub.s32 %v1101, %v3118
  %v3120 = vrot.slane %v2854, %v3119
  %v3121 = vsel %vm1106, %v3120, %v3116
  %v3122 = vlaneseq
  %v3123 = vshrl.u32 %v3122, 7
  %v3124 = vsub.s32 %v1054, %v3123
  %v3125 = vrot.slane %v2857, %v3124
  %v3126 = vlaneseq
  %v3127 = vshrl.u32 %v3126, 7
  %v3128 = vsub.s32 %v1059, %v3127
  %v3129 = vrot.slane %v2860, %v3128
  %v3130 = vsel %vm1064, %v3129, %v3125
  %v3131 = vlaneseq
  %v3132 = vshrl.u32 %v3131, 7
  %v3133 = vsub.s32 %v1066, %v3132
  %v3134 = vrot.slane %v2863, %v3133
  %v3135 = vsel %vm1071, %v3134, %v3130
  %v3136 = vlaneseq
  %v3137 = vshrl.u32 %v3136, 7
  %v3138 = vsub.s32 %v1073, %v3137
  %v3139 = vrot.slane %v2866, %v3138
  %v3140 = vsel %vm1078, %v3139, %v3135
  %v3141 = vlaneseq
  %v3142 = vshrl.u32 %v3141, 7
  %v3143 = vsub.s32 %v1080, %v3142
  %v3144 = vrot.slane %v2869, %v3143
  %v3145 = vsel %vm1085, %v3144, %v3140
  %v3146 = vlaneseq
  %v3147 = vshrl.u32 %v3146, 7
  %v3148 = vsub.s32 %v1087, %v3147
  %v3149 = vrot.slane %v2872, %v3148
  %v3150 = vsel %vm1092, %v3149, %v3145
  %v3151 = vlaneseq
  %v3152 = vshrl.u32 %v3151, 7
  %v3153 = vsub.s32 %v1094, %v3152
  %v3154 = vrot.slane %v2875, %v3153
  %v3155 = vsel %vm1099, %v3154, %v3150
  %v3156 = vlaneseq
  %v3157 = vshrl.u32 %v3156, 7
  %v3158 = vsub.s32 %v1101, %v3157
  %v3159 = vrot.slane %v2878, %v3158
  %v3160 = vsel %vm1106, %v3159, %v3155
  %v3161 = vlaneseq
  %v3162 = vshrl.u32 %v3161, 7
  %v3163 = vsub.s32 %v1054, %v3162
  %v3164 = vrot.slane %v2881, %v3163
  %v3165 = vlaneseq
  %v3166 = vshrl.u32 %v3165, 7
  %v3167 = vsub.s32 %v1059, %v3166
  %v3168 = vrot.slane %v2884, %v3167
  %v3169 = vsel %vm1064, %v3168, %v3164
  %v3170 = vlaneseq
  %v3171 = vshrl.u32 %v3170, 7
  %v3172 = vsub.s32 %v1066, %v3171
  %v3173 = vrot.slane %v2887, %v3172
  %v3174 = vsel %vm1071, %v3173, %v3169
  %v3175 = vlaneseq
  %v3176 = vshrl.u32 %v3175, 7
  %v3177 = vsub.s32 %v1073, %v3176
  %v3178 = vrot.slane %v2890, %v3177
  %v3179 = vsel %vm1078, %v3178, %v3174
  %v3180 = vlaneseq
  %v3181 = vshrl.u32 %v3180, 7
  %v3182 = vsub.s32 %v1080, %v3181
  %v3183 = vrot.slane %v2893, %v3182
  %v3184 = vsel %vm1085, %v3183, %v3179
  %v3185 = vlaneseq
  %v3186 = vshrl.u32 %v3185, 7
  %v3187 = vsub.s32 %v1087, %v3186
  %v3188 = vrot.slane %v2896, %v3187
  %v3189 = vsel %vm1092, %v3188, %v3184
  %v3190 = vlaneseq
  %v3191 = vshrl.u32 %v3190, 7
  %v3192 = vsub.s32 %v1094, %v3191
  %v3193 = vrot.slane %v2899, %v3192
  %v3194 = vsel %vm1099, %v3193, %v3189
  %v3195 = vlaneseq
  %v3196 = vshrl.u32 %v3195, 7
  %v3197 = vsub.s32 %v1101, %v3196
  %v3198 = vrot.slane %v2902, %v3197
  %v3199 = vsel %vm1106, %v3198, %v3194
  %v3200 = vlaneseq
  %v3201 = vshrl.u32 %v3200, 7
  %v3202 = vsub.s32 %v1054, %v3201
  %v3203 = vrot.slane %v2905, %v3202
  %v3204 = vlaneseq
  %v3205 = vshrl.u32 %v3204, 7
  %v3206 = vsub.s32 %v1059, %v3205
  %v3207 = vrot.slane %v2908, %v3206
  %v3208 = vsel %vm1064, %v3207, %v3203
  %v3209 = vlaneseq
  %v3210 = vshrl.u32 %v3209, 7
  %v3211 = vsub.s32 %v1066, %v3210
  %v3212 = vrot.slane %v2911, %v3211
  %v3213 = vsel %vm1071, %v3212, %v3208
  %v3214 = vlaneseq
  %v3215 = vshrl.u32 %v3214, 7
  %v3216 = vsub.s32 %v1073, %v3215
  %v3217 = vrot.slane %v2914, %v3216
  %v3218 = vsel %vm1078, %v3217, %v3213
  %v3219 = vlaneseq
  %v3220 = vshrl.u32 %v3219, 7
  %v3221 = vsub.s32 %v1080, %v3220
  %v3222 = vrot.slane %v2917, %v3221
  %v3223 = vsel %vm1085, %v3222, %v3218
  %v3224 = vlaneseq
  %v3225 = vshrl.u32 %v3224, 7
  %v3226 = vsub.s32 %v1087, %v3225
  %v3227 = vrot.slane %v2920, %v3226
  %v3228 = vsel %vm1092, %v3227, %v3223
  %v3229 = vlaneseq
  %v3230 = vshrl.u32 %v3229, 7
  %v3231 = vsub.s32 %v1094, %v3230
  %v3232 = vrot.slane %v2923, %v3231
  %v3233 = vsel %vm1099, %v3232, %v3228
  %v3234 = vlaneseq
  %v3235 = vshrl.u32 %v3234, 7
  %v3236 = vsub.s32 %v1101, %v3235
  %v3237 = vrot.slane %v2926, %v3236
  %v3238 = vsel %vm1106, %v3237, %v3233
  %v3239 = vsel %vm727, %v3004, %v2965
  %v3240 = vsel %vm730, %v3043, %v3239
  %v3241 = vsel %vm733, %v3082, %v3240
  %v3242 = vsel %vm736, %v3121, %v3241
  %v3243 = vsel %vm739, %v3160, %v3242
  %v3244 = vsel %vm742, %v3199, %v3243
  %v3245 = vsel %vm745, %v3238, %v3244
  %3247 = vmatprep.subr.bf16.mxu0 0
  %3248 = vmatpush1.bf16.msra.mxu0 %v2655
  %3249 = vmatprep.subr.bf16.mxu0 0
  %3250 = vmatpush1.bf16.msra.mxu0 %v2656
  %3251 = vmatprep.subr.bf16.mxu0 0
  %3252 = vmatpush1.bf16.msra.mxu0 %v2657
  %3253 = vmatprep.subr.bf16.mxu0 0
  %3254 = vmatpush1.bf16.msra.mxu0 %v2658
  %3255 = vmatprep.subr.bf16.mxu0 0
  %3256 = vmatpush1.bf16.msra.mxu0 %v2659
  %3257 = vmatprep.subr.bf16.mxu0 0
  %3258 = vmatpush1.bf16.msra.mxu0 %v2660
  %3259 = vmatprep.subr.bf16.mxu0 0
  %3260 = vmatpush1.bf16.msra.mxu0 %v2661
  %3261 = vmatprep.subr.bf16.mxu0 0
  %3262 = vmatpush1.bf16.msra.mxu0 %v2662
  %3263 = vmatprep.subr.bf16.mxu0 0
  %3264 = vmatpush1.bf16.msra.mxu0 0
  %3265 = vmatprep.subr.bf16.mxu0 0
  %3266 = vmatpush1.bf16.msra.mxu0 0
  %3267 = vmatprep.subr.bf16.mxu0 0
  %3268 = vmatpush1.bf16.msra.mxu0 0
  %3269 = vmatprep.subr.bf16.mxu0 0
  %3270 = vmatpush1.bf16.msra.mxu0 0
  %3271 = vmatprep.subr.bf16.mxu0 0
  %3272 = vmatpush1.bf16.msra.mxu0 0
  %3273 = vmatprep.subr.bf16.mxu0 0
  %3274 = vmatpush1.bf16.msra.mxu0 0
  %3275 = vmatprep.subr.bf16.mxu0 0
  %3276 = vmatpush1.bf16.msra.mxu0 0
  %3277 = vmatprep.subr.bf16.mxu0 0
  %3278 = vmatpush1.bf16.msra.mxu0 0
  %3279 = vmatprep.mubr.bf16.mxu0 0
  %3280 = vmatmul.mubr.bf16.gmra.mrb[0].mxu0 %v2621
  %v3281 = vpop.f32.mrb[0].mxu0
  %v3282 = vadd.f32 %v3245, %v3281
  %v3283 = vpop.f32.mrb[0].mxu0
  %v3284 = vpop.f32.mrb[0].mxu0
  %v3285 = vpop.f32.mrb[0].mxu0
  %3286 = vdwg.mxu0
  %v3287 = vld [vmem:[%s6 + $0x2] sm:$0x1]
  %v3288 = vlaneseq
  %v3289 = vshrl.u32 %v3288, 7
  %v3290 = vsub.s32 0, %v3289
  %v3291 = vrot.slane %v3287, %v3290
  %v3292 = vadd.f32 %v3282, %v3291
  %s3293 = scalar_lea.vmem %s9, 16
  %3294 = vst.msk [vmem:[%s3293] sm:$0xff] %vm200, %v3292
  %v3295 = vpack.c.bf16 %v3292, %v3292
  %s3296 = scalar_lea.vmem %s7, 64
  %v3297 = vld [vmem:[%s3296] sm:$0xf]
  %v3298 = vld [vmem:[%s3296 + $0x4] sm:$0xf]
  %v3299 = vld [vmem:[%s3296 + $0x8] sm:$0xf]
  %v3300 = vld [vmem:[%s3296 + $0xc] sm:$0xf]
  %v3301 = vld [vmem:[%s3296 + $0x10] sm:$0xf]
  %v3302 = vld [vmem:[%s3296 + $0x14] sm:$0xf]
  %v3303 = vld [vmem:[%s3296 + $0x18] sm:$0xf]
  %v3304 = vld [vmem:[%s3296 + $0x1c] sm:$0xf]
  %v3305 = vld [vmem:[%s8 + $0x2] sm:$0x1]
  %v3306 = vlaneseq
  %v3307 = vshrl.u32 %v3306, 7
  %v3308 = vsub.s32 0, %v3307
  %v3309 = vrot.slane %v3305, %v3308
  %v3318 = vunpack.c.l.b16 %v3297
  %v3319 = vunpack.c.l.b16 %v3298
  %v3320 = vunpack.c.l.b16 %v3299
  %v3321 = vunpack.c.l.b16 %v3300
  %v3322 = vunpack.c.l.b16 %v3301
  %v3323 = vunpack.c.l.b16 %v3302
  %v3324 = vunpack.c.l.b16 %v3303
  %v3325 = vunpack.c.l.b16 %v3304
  %v3326 = vpack.c.b16 %v3319, %v3318
  %v3327 = vpack.c.b16 %v3321, %v3320
  %v3328 = vpack.c.b16 %v3323, %v3322
  %v3329 = vpack.c.b16 %v3325, %v3324
  %v3335 = vsel %vm200, %v3295, 0
  %3337 = vmatprep.subr.bf16.mxu0 0
  %3338 = vmatpush1.bf16.msra.mxu0 %v3326
  %3339 = vmatprep.subr.bf16.mxu0 0
  %3340 = vmatpush1.bf16.msra.mxu0 %v3327
  %3341 = vmatprep.subr.bf16.mxu0 0
  %3342 = vmatpush1.bf16.msra.mxu0 %v3328
  %3343 = vmatprep.subr.bf16.mxu0 0
  %3344 = vmatpush1.bf16.msra.mxu0 %v3329
  %3345 = vmatprep.subr.bf16.mxu0 0
  %3346 = vmatpush1.bf16.msra.mxu0 0
  %3347 = vmatprep.subr.bf16.mxu0 0
  %3348 = vmatpush1.bf16.msra.mxu0 0
  %3349 = vmatprep.subr.bf16.mxu0 0
  %3350 = vmatpush1.bf16.msra.mxu0 0
  %3351 = vmatprep.subr.bf16.mxu0 0
  %3352 = vmatpush1.bf16.msra.mxu0 0
  %3353 = vmatprep.subr.bf16.mxu0 0
  %3354 = vmatpush1.bf16.msra.mxu0 0
  %3355 = vmatprep.subr.bf16.mxu0 0
  %3356 = vmatpush1.bf16.msra.mxu0 0
  %3357 = vmatprep.subr.bf16.mxu0 0
  %3358 = vmatpush1.bf16.msra.mxu0 0
  %3359 = vmatprep.subr.bf16.mxu0 0
  %3360 = vmatpush1.bf16.msra.mxu0 0
  %3361 = vmatprep.subr.bf16.mxu0 0
  %3362 = vmatpush1.bf16.msra.mxu0 0
  %3363 = vmatprep.subr.bf16.mxu0 0
  %3364 = vmatpush1.bf16.msra.mxu0 0
  %3365 = vmatprep.subr.bf16.mxu0 0
  %3366 = vmatpush1.bf16.msra.mxu0 0
  %3367 = vmatprep.subr.bf16.mxu0 0
  %3368 = vmatpush1.bf16.msra.mxu0 0
  %3369 = vmatprep.mubr.bf16.mxu0 0
  %3370 = vmatmul.mubr.bf16.gmra.mrb[0].mxu0 %v3335
  %v3371 = vpop.f32.mrb[0].mxu0
  %v3372 = vadd.f32 %v3309, %v3371
  %v3373 = vpop.f32.mrb[0].mxu0
  %v3374 = vpop.f32.mrb[0].mxu0
  %v3375 = vpop.f32.mrb[0].mxu0
  %3376 = vdwg.mxu0
  %s3377 = scalar_lea.vmem %s10, 16
  %3378 = vst.msk [vmem:[%s3377] sm:$0xff] %vm1517, %v3372
  %s3379 = scalar_lea.vmem %s4, 192
  %v3380 = vld [vmem:[%s3379] sm:$0xf]
  %v3381 = vld [vmem:[%s3379 + $0x4] sm:$0xf]
  %v3382 = vld [vmem:[%s3379 + $0x8] sm:$0xf]
  %v3383 = vld [vmem:[%s3379 + $0xc] sm:$0xf]
  %v3384 = vld [vmem:[%s3379 + $0x10] sm:$0xf]
  %v3385 = vld [vmem:[%s3379 + $0x14] sm:$0xf]
  %v3386 = vld [vmem:[%s3379 + $0x18] sm:$0xf]
  %v3387 = vld [vmem:[%s3379 + $0x1c] sm:$0xf]
  %v3388 = vld [vmem:[%s3379 + $0x20] sm:$0xf]
  %v3389 = vld [vmem:[%s3379 + $0x24] sm:$0xf]
  %v3390 = vld [vmem:[%s3379 + $0x28] sm:$0xf]
  %v3391 = vld [vmem:[%s3379 + $0x2c] sm:$0xf]
  %v3392 = vld [vmem:[%s3379 + $0x30] sm:$0xf]
  %v3393 = vld [vmem:[%s3379 + $0x34] sm:$0xf]
  %v3394 = vld [vmem:[%s3379 + $0x38] sm:$0xf]
  %v3395 = vld [vmem:[%s3379 + $0x3c] sm:$0xf]
  %v3396 = vld [vmem:[%s5 + $0x3] sm:$0x1]
  %v3397 = vlaneseq
  %v3398 = vshrl.u32 %v3397, 7
  %v3399 = vsub.s32 3, %v3398
  %v3400 = vrot.slane %v178, %v3399
  %v3401 = vlaneseq
  %v3402 = vshrl.u32 %v3401, 7
  %v3403 = vsub.s32 3, %v3402
  %v3404 = vrot.slane %v181, %v3403
  %v3405 = vlaneseq
  %v3406 = vshrl.u32 %v3405, 7
  %v3407 = vsub.s32 3, %v3406
  %v3408 = vrot.slane %v184, %v3407
  %v3409 = vlaneseq
  %v3410 = vshrl.u32 %v3409, 7
  %v3411 = vsub.s32 3, %v3410
  %v3412 = vrot.slane %v187, %v3411
  %v3413 = vlaneseq
  %v3414 = vshrl.u32 %v3413, 7
  %v3415 = vsub.s32 3, %v3414
  %v3416 = vrot.slane %v190, %v3415
  %v3417 = vlaneseq
  %v3418 = vshrl.u32 %v3417, 7
  %v3419 = vsub.s32 3, %v3418
  %v3420 = vrot.slane %v193, %v3419
  %v3421 = vlaneseq
  %v3422 = vshrl.u32 %v3421, 7
  %v3423 = vsub.s32 3, %v3422
  %v3424 = vrot.slane %v196, %v3423
  %v3425 = vlaneseq
  %v3426 = vshrl.u32 %v3425, 7
  %v3427 = vsub.s32 3, %v3426
  %v3428 = vrot.slane %v199, %v3427
  %v3429 = vlaneseq
  %v3430 = vshrl.u32 %v3429, 7
  %v3431 = vsub.s32 0, %v3430
  %v3432 = vrot.slane %v3396, %v3431
  %3435 = vbcast.lane.b32.xlu0 %v3432, 256
  %v3436 = vpop.permute.xlu0 %3435
  %s3438 = sor.u32 256, 8
  %3439 = vbcast.lane.b32.xlu0 %v3432, %s3438
  %v3440 = vpop.permute.xlu0 %3439
  %s3442 = sor.u32 256, 16
  %3443 = vbcast.lane.b32.xlu0 %v3432, %s3442
  %v3444 = vpop.permute.xlu0 %3443
  %s3446 = sor.u32 256, 24
  %3447 = vbcast.lane.b32.xlu0 %v3432, %s3446
  %v3448 = vpop.permute.xlu0 %3447
  %s3450 = sor.u32 256, 32
  %3451 = vbcast.lane.b32.xlu0 %v3432, %s3450
  %v3452 = vpop.permute.xlu0 %3451
  %s3454 = sor.u32 256, 40
  %3455 = vbcast.lane.b32.xlu0 %v3432, %s3454
  %v3456 = vpop.permute.xlu0 %3455
  %s3458 = sor.u32 256, 48
  %3459 = vbcast.lane.b32.xlu0 %v3432, %s3458
  %v3460 = vpop.permute.xlu0 %3459
  %s3462 = sor.u32 256, 56
  %3463 = vbcast.lane.b32.xlu0 %v3432, %s3462
  %v3464 = vpop.permute.xlu0 %3463
  %v3473 = vmul.f32 %v3400, %v3436
  %v3474 = vmul.f32 %v3400, %v3440
  %v3475 = vmul.f32 %v3400, %v3444
  %v3476 = vmul.f32 %v3400, %v3448
  %v3477 = vmul.f32 %v3400, %v3452
  %v3478 = vmul.f32 %v3400, %v3456
  %v3479 = vmul.f32 %v3400, %v3460
  %v3480 = vmul.f32 %v3400, %v3464
  %v3481 = vmul.f32 %v3404, %v3436
  %v3482 = vmul.f32 %v3404, %v3440
  %v3483 = vmul.f32 %v3404, %v3444
  %v3484 = vmul.f32 %v3404, %v3448
  %v3485 = vmul.f32 %v3404, %v3452
  %v3486 = vmul.f32 %v3404, %v3456
  %v3487 = vmul.f32 %v3404, %v3460
  %v3488 = vmul.f32 %v3404, %v3464
  %v3489 = vmul.f32 %v3408, %v3436
  %v3490 = vmul.f32 %v3408, %v3440
  %v3491 = vmul.f32 %v3408, %v3444
  %v3492 = vmul.f32 %v3408, %v3448
  %v3493 = vmul.f32 %v3408, %v3452
  %v3494 = vmul.f32 %v3408, %v3456
  %v3495 = vmul.f32 %v3408, %v3460
  %v3496 = vmul.f32 %v3408, %v3464
  %v3497 = vmul.f32 %v3412, %v3436
  %v3498 = vmul.f32 %v3412, %v3440
  %v3499 = vmul.f32 %v3412, %v3444
  %v3500 = vmul.f32 %v3412, %v3448
  %v3501 = vmul.f32 %v3412, %v3452
  %v3502 = vmul.f32 %v3412, %v3456
  %v3503 = vmul.f32 %v3412, %v3460
  %v3504 = vmul.f32 %v3412, %v3464
  %v3505 = vmul.f32 %v3416, %v3436
  %v3506 = vmul.f32 %v3416, %v3440
  %v3507 = vmul.f32 %v3416, %v3444
  %v3508 = vmul.f32 %v3416, %v3448
  %v3509 = vmul.f32 %v3416, %v3452
  %v3510 = vmul.f32 %v3416, %v3456
  %v3511 = vmul.f32 %v3416, %v3460
  %v3512 = vmul.f32 %v3416, %v3464
  %v3513 = vmul.f32 %v3420, %v3436
  %v3514 = vmul.f32 %v3420, %v3440
  %v3515 = vmul.f32 %v3420, %v3444
  %v3516 = vmul.f32 %v3420, %v3448
  %v3517 = vmul.f32 %v3420, %v3452
  %v3518 = vmul.f32 %v3420, %v3456
  %v3519 = vmul.f32 %v3420, %v3460
  %v3520 = vmul.f32 %v3420, %v3464
  %v3521 = vmul.f32 %v3424, %v3436
  %v3522 = vmul.f32 %v3424, %v3440
  %v3523 = vmul.f32 %v3424, %v3444
  %v3524 = vmul.f32 %v3424, %v3448
  %v3525 = vmul.f32 %v3424, %v3452
  %v3526 = vmul.f32 %v3424, %v3456
  %v3527 = vmul.f32 %v3424, %v3460
  %v3528 = vmul.f32 %v3424, %v3464
  %v3529 = vmul.f32 %v3428, %v3436
  %v3530 = vmul.f32 %v3428, %v3440
  %v3531 = vmul.f32 %v3428, %v3444
  %v3532 = vmul.f32 %v3428, %v3448
  %v3533 = vmul.f32 %v3428, %v3452
  %v3534 = vmul.f32 %v3428, %v3456
  %v3535 = vmul.f32 %v3428, %v3460
  %v3536 = vmul.f32 %v3428, %v3464
  %v3537 = vrot.slane %v718, 3
  %v3538 = vrot.slane %v719, 2
  %v3539 = vsel %vm727, %v3538, %v3537
  %v3540 = vrot.slane %v720, 1
  %v3541 = vsel %vm730, %v3540, %v3539
  %v3542 = vsel %vm733, %v721, %v3541
  %v3543 = vrot.slane %v722, 7
  %v3544 = vsel %vm736, %v3543, %v3542
  %v3545 = vrot.slane %v723, 6
  %v3546 = vsel %vm739, %v3545, %v3544
  %v3547 = vrot.slane %v724, 5
  %v3548 = vsel %vm742, %v3547, %v3546
  %v3549 = vrot.slane %v725, 4
  %v3550 = vsel %vm745, %v3549, %v3548
  %v3551 = vpack.c.b16 %v3550, %v3550
  %v3569 = vunpack.c.l.b16 %v3380
  %v3570 = vunpack.c.l.b16 %v3381
  %v3571 = vunpack.c.l.b16 %v3382
  %v3572 = vunpack.c.l.b16 %v3383
  %v3573 = vunpack.c.l.b16 %v3384
  %v3574 = vunpack.c.l.b16 %v3385
  %v3575 = vunpack.c.l.b16 %v3386
  %v3576 = vunpack.c.l.b16 %v3387
  %v3577 = vunpack.c.l.b16 %v3388
  %v3578 = vunpack.c.l.b16 %v3389
  %v3579 = vunpack.c.l.b16 %v3390
  %v3580 = vunpack.c.l.b16 %v3391
  %v3581 = vunpack.c.l.b16 %v3392
  %v3582 = vunpack.c.l.b16 %v3393
  %v3583 = vunpack.c.l.b16 %v3394
  %v3584 = vunpack.c.l.b16 %v3395
  %v3585 = vpack.c.b16 %v3570, %v3569
  %v3586 = vpack.c.b16 %v3572, %v3571
  %v3587 = vpack.c.b16 %v3574, %v3573
  %v3588 = vpack.c.b16 %v3576, %v3575
  %v3589 = vpack.c.b16 %v3578, %v3577
  %v3590 = vpack.c.b16 %v3580, %v3579
  %v3591 = vpack.c.b16 %v3582, %v3581
  %v3592 = vpack.c.b16 %v3584, %v3583
  %3665 = vset.pattern.permute.xlu0 0
  %3666 = vperm.xlu0 %3665, %v3473
  %v3667 = vpop.permute.xlu0 %3666
  %3668 = vset.pattern.permute.xlu0 0
  %3669 = vperm.xlu0 %3668, %v3474
  %v3670 = vpop.permute.xlu0 %3669
  %3671 = vset.pattern.permute.xlu0 0
  %3672 = vperm.xlu0 %3671, %v3475
  %v3673 = vpop.permute.xlu0 %3672
  %3674 = vset.pattern.permute.xlu0 0
  %3675 = vperm.xlu0 %3674, %v3476
  %v3676 = vpop.permute.xlu0 %3675
  %3677 = vset.pattern.permute.xlu0 0
  %3678 = vperm.xlu0 %3677, %v3477
  %v3679 = vpop.permute.xlu0 %3678
  %3680 = vset.pattern.permute.xlu0 0
  %3681 = vperm.xlu0 %3680, %v3478
  %v3682 = vpop.permute.xlu0 %3681
  %3683 = vset.pattern.permute.xlu0 0
  %3684 = vperm.xlu0 %3683, %v3479
  %v3685 = vpop.permute.xlu0 %3684
  %3686 = vset.pattern.permute.xlu0 0
  %3687 = vperm.xlu0 %3686, %v3480
  %v3688 = vpop.permute.xlu0 %3687
  %3689 = vset.pattern.permute.xlu0 0
  %3690 = vperm.xlu0 %3689, %v3481
  %v3691 = vpop.permute.xlu0 %3690
  %3692 = vset.pattern.permute.xlu0 0
  %3693 = vperm.xlu0 %3692, %v3482
  %v3694 = vpop.permute.xlu0 %3693
  %3695 = vset.pattern.permute.xlu0 0
  %3696 = vperm.xlu0 %3695, %v3483
  %v3697 = vpop.permute.xlu0 %3696
  %3698 = vset.pattern.permute.xlu0 0
  %3699 = vperm.xlu0 %3698, %v3484
  %v3700 = vpop.permute.xlu0 %3699
  %3701 = vset.pattern.permute.xlu0 0
  %3702 = vperm.xlu0 %3701, %v3485
  %v3703 = vpop.permute.xlu0 %3702
  %3704 = vset.pattern.permute.xlu0 0
  %3705 = vperm.xlu0 %3704, %v3486
  %v3706 = vpop.permute.xlu0 %3705
  %3707 = vset.pattern.permute.xlu0 0
  %3708 = vperm.xlu0 %3707, %v3487
  %v3709 = vpop.permute.xlu0 %3708
  %3710 = vset.pattern.permute.xlu0 0
  %3711 = vperm.xlu0 %3710, %v3488
  %v3712 = vpop.permute.xlu0 %3711
  %3713 = vset.pattern.permute.xlu0 0
  %3714 = vperm.xlu0 %3713, %v3489
  %v3715 = vpop.permute.xlu0 %3714
  %3716 = vset.pattern.permute.xlu0 0
  %3717 = vperm.xlu0 %3716, %v3490
  %v3718 = vpop.permute.xlu0 %3717
  %3719 = vset.pattern.permute.xlu0 0
  %3720 = vperm.xlu0 %3719, %v3491
  %v3721 = vpop.permute.xlu0 %3720
  %3722 = vset.pattern.permute.xlu0 0
  %3723 = vperm.xlu0 %3722, %v3492
  %v3724 = vpop.permute.xlu0 %3723
  %3725 = vset.pattern.permute.xlu0 0
  %3726 = vperm.xlu0 %3725, %v3493
  %v3727 = vpop.permute.xlu0 %3726
  %3728 = vset.pattern.permute.xlu0 0
  %3729 = vperm.xlu0 %3728, %v3494
  %v3730 = vpop.permute.xlu0 %3729
  %3731 = vset.pattern.permute.xlu0 0
  %3732 = vperm.xlu0 %3731, %v3495
  %v3733 = vpop.permute.xlu0 %3732
  %3734 = vset.pattern.permute.xlu0 0
  %3735 = vperm.xlu0 %3734, %v3496
  %v3736 = vpop.permute.xlu0 %3735
  %3737 = vset.pattern.permute.xlu0 0
  %3738 = vperm.xlu0 %3737, %v3497
  %v3739 = vpop.permute.xlu0 %3738
  %3740 = vset.pattern.permute.xlu0 0
  %3741 = vperm.xlu0 %3740, %v3498
  %v3742 = vpop.permute.xlu0 %3741
  %3743 = vset.pattern.permute.xlu0 0
  %3744 = vperm.xlu0 %3743, %v3499
  %v3745 = vpop.permute.xlu0 %3744
  %3746 = vset.pattern.permute.xlu0 0
  %3747 = vperm.xlu0 %3746, %v3500
  %v3748 = vpop.permute.xlu0 %3747
  %3749 = vset.pattern.permute.xlu0 0
  %3750 = vperm.xlu0 %3749, %v3501
  %v3751 = vpop.permute.xlu0 %3750
  %3752 = vset.pattern.permute.xlu0 0
  %3753 = vperm.xlu0 %3752, %v3502
  %v3754 = vpop.permute.xlu0 %3753
  %3755 = vset.pattern.permute.xlu0 0
  %3756 = vperm.xlu0 %3755, %v3503
  %v3757 = vpop.permute.xlu0 %3756
  %3758 = vset.pattern.permute.xlu0 0
  %3759 = vperm.xlu0 %3758, %v3504
  %v3760 = vpop.permute.xlu0 %3759
  %3761 = vset.pattern.permute.xlu0 0
  %3762 = vperm.xlu0 %3761, %v3505
  %v3763 = vpop.permute.xlu0 %3762
  %3764 = vset.pattern.permute.xlu0 0
  %3765 = vperm.xlu0 %3764, %v3506
  %v3766 = vpop.permute.xlu0 %3765
  %3767 = vset.pattern.permute.xlu0 0
  %3768 = vperm.xlu0 %3767, %v3507
  %v3769 = vpop.permute.xlu0 %3768
  %3770 = vset.pattern.permute.xlu0 0
  %3771 = vperm.xlu0 %3770, %v3508
  %v3772 = vpop.permute.xlu0 %3771
  %3773 = vset.pattern.permute.xlu0 0
  %3774 = vperm.xlu0 %3773, %v3509
  %v3775 = vpop.permute.xlu0 %3774
  %3776 = vset.pattern.permute.xlu0 0
  %3777 = vperm.xlu0 %3776, %v3510
  %v3778 = vpop.permute.xlu0 %3777
  %3779 = vset.pattern.permute.xlu0 0
  %3780 = vperm.xlu0 %3779, %v3511
  %v3781 = vpop.permute.xlu0 %3780
  %3782 = vset.pattern.permute.xlu0 0
  %3783 = vperm.xlu0 %3782, %v3512
  %v3784 = vpop.permute.xlu0 %3783
  %3785 = vset.pattern.permute.xlu0 0
  %3786 = vperm.xlu0 %3785, %v3513
  %v3787 = vpop.permute.xlu0 %3786
  %3788 = vset.pattern.permute.xlu0 0
  %3789 = vperm.xlu0 %3788, %v3514
  %v3790 = vpop.permute.xlu0 %3789
  %3791 = vset.pattern.permute.xlu0 0
  %3792 = vperm.xlu0 %3791, %v3515
  %v3793 = vpop.permute.xlu0 %3792
  %3794 = vset.pattern.permute.xlu0 0
  %3795 = vperm.xlu0 %3794, %v3516
  %v3796 = vpop.permute.xlu0 %3795
  %3797 = vset.pattern.permute.xlu0 0
  %3798 = vperm.xlu0 %3797, %v3517
  %v3799 = vpop.permute.xlu0 %3798
  %3800 = vset.pattern.permute.xlu0 0
  %3801 = vperm.xlu0 %3800, %v3518
  %v3802 = vpop.permute.xlu0 %3801
  %3803 = vset.pattern.permute.xlu0 0
  %3804 = vperm.xlu0 %3803, %v3519
  %v3805 = vpop.permute.xlu0 %3804
  %3806 = vset.pattern.permute.xlu0 0
  %3807 = vperm.xlu0 %3806, %v3520
  %v3808 = vpop.permute.xlu0 %3807
  %3809 = vset.pattern.permute.xlu0 0
  %3810 = vperm.xlu0 %3809, %v3521
  %v3811 = vpop.permute.xlu0 %3810
  %3812 = vset.pattern.permute.xlu0 0
  %3813 = vperm.xlu0 %3812, %v3522
  %v3814 = vpop.permute.xlu0 %3813
  %3815 = vset.pattern.permute.xlu0 0
  %3816 = vperm.xlu0 %3815, %v3523
  %v3817 = vpop.permute.xlu0 %3816
  %3818 = vset.pattern.permute.xlu0 0
  %3819 = vperm.xlu0 %3818, %v3524
  %v3820 = vpop.permute.xlu0 %3819
  %3821 = vset.pattern.permute.xlu0 0
  %3822 = vperm.xlu0 %3821, %v3525
  %v3823 = vpop.permute.xlu0 %3822
  %3824 = vset.pattern.permute.xlu0 0
  %3825 = vperm.xlu0 %3824, %v3526
  %v3826 = vpop.permute.xlu0 %3825
  %3827 = vset.pattern.permute.xlu0 0
  %3828 = vperm.xlu0 %3827, %v3527
  %v3829 = vpop.permute.xlu0 %3828
  %3830 = vset.pattern.permute.xlu0 0
  %3831 = vperm.xlu0 %3830, %v3528
  %v3832 = vpop.permute.xlu0 %3831
  %3833 = vset.pattern.permute.xlu0 0
  %3834 = vperm.xlu0 %3833, %v3529
  %v3835 = vpop.permute.xlu0 %3834
  %3836 = vset.pattern.permute.xlu0 0
  %3837 = vperm.xlu0 %3836, %v3530
  %v3838 = vpop.permute.xlu0 %3837
  %3839 = vset.pattern.permute.xlu0 0
  %3840 = vperm.xlu0 %3839, %v3531
  %v3841 = vpop.permute.xlu0 %3840
  %3842 = vset.pattern.permute.xlu0 0
  %3843 = vperm.xlu0 %3842, %v3532
  %v3844 = vpop.permute.xlu0 %3843
  %3845 = vset.pattern.permute.xlu0 0
  %3846 = vperm.xlu0 %3845, %v3533
  %v3847 = vpop.permute.xlu0 %3846
  %3848 = vset.pattern.permute.xlu0 0
  %3849 = vperm.xlu0 %3848, %v3534
  %v3850 = vpop.permute.xlu0 %3849
  %3851 = vset.pattern.permute.xlu0 0
  %3852 = vperm.xlu0 %3851, %v3535
  %v3853 = vpop.permute.xlu0 %3852
  %3854 = vset.pattern.permute.xlu0 0
  %3855 = vperm.xlu0 %3854, %v3536
  %v3856 = vpop.permute.xlu0 %3855
  %v3857 = vlaneseq
  %v3858 = vshrl.u32 %v3857, 7
  %v3859 = vsub.s32 %v1054, %v3858
  %v3860 = vrot.slane %v3667, %v3859
  %v3861 = vlaneseq
  %v3862 = vshrl.u32 %v3861, 7
  %v3863 = vsub.s32 %v1059, %v3862
  %v3864 = vrot.slane %v3670, %v3863
  %v3865 = vsel %vm1064, %v3864, %v3860
  %v3866 = vlaneseq
  %v3867 = vshrl.u32 %v3866, 7
  %v3868 = vsub.s32 %v1066, %v3867
  %v3869 = vrot.slane %v3673, %v3868
  %v3870 = vsel %vm1071, %v3869, %v3865
  %v3871 = vlaneseq
  %v3872 = vshrl.u32 %v3871, 7
  %v3873 = vsub.s32 %v1073, %v3872
  %v3874 = vrot.slane %v3676, %v3873
  %v3875 = vsel %vm1078, %v3874, %v3870
  %v3876 = vlaneseq
  %v3877 = vshrl.u32 %v3876, 7
  %v3878 = vsub.s32 %v1080, %v3877
  %v3879 = vrot.slane %v3679, %v3878
  %v3880 = vsel %vm1085, %v3879, %v3875
  %v3881 = vlaneseq
  %v3882 = vshrl.u32 %v3881, 7
  %v3883 = vsub.s32 %v1087, %v3882
  %v3884 = vrot.slane %v3682, %v3883
  %v3885 = vsel %vm1092, %v3884, %v3880
  %v3886 = vlaneseq
  %v3887 = vshrl.u32 %v3886, 7
  %v3888 = vsub.s32 %v1094, %v3887
  %v3889 = vrot.slane %v3685, %v3888
  %v3890 = vsel %vm1099, %v3889, %v3885
  %v3891 = vlaneseq
  %v3892 = vshrl.u32 %v3891, 7
  %v3893 = vsub.s32 %v1101, %v3892
  %v3894 = vrot.slane %v3688, %v3893
  %v3895 = vsel %vm1106, %v3894, %v3890
  %v3896 = vlaneseq
  %v3897 = vshrl.u32 %v3896, 7
  %v3898 = vsub.s32 %v1054, %v3897
  %v3899 = vrot.slane %v3691, %v3898
  %v3900 = vlaneseq
  %v3901 = vshrl.u32 %v3900, 7
  %v3902 = vsub.s32 %v1059, %v3901
  %v3903 = vrot.slane %v3694, %v3902
  %v3904 = vsel %vm1064, %v3903, %v3899
  %v3905 = vlaneseq
  %v3906 = vshrl.u32 %v3905, 7
  %v3907 = vsub.s32 %v1066, %v3906
  %v3908 = vrot.slane %v3697, %v3907
  %v3909 = vsel %vm1071, %v3908, %v3904
  %v3910 = vlaneseq
  %v3911 = vshrl.u32 %v3910, 7
  %v3912 = vsub.s32 %v1073, %v3911
  %v3913 = vrot.slane %v3700, %v3912
  %v3914 = vsel %vm1078, %v3913, %v3909
  %v3915 = vlaneseq
  %v3916 = vshrl.u32 %v3915, 7
  %v3917 = vsub.s32 %v1080, %v3916
  %v3918 = vrot.slane %v3703, %v3917
  %v3919 = vsel %vm1085, %v3918, %v3914
  %v3920 = vlaneseq
  %v3921 = vshrl.u32 %v3920, 7
  %v3922 = vsub.s32 %v1087, %v3921
  %v3923 = vrot.slane %v3706, %v3922
  %v3924 = vsel %vm1092, %v3923, %v3919
  %v3925 = vlaneseq
  %v3926 = vshrl.u32 %v3925, 7
  %v3927 = vsub.s32 %v1094, %v3926
  %v3928 = vrot.slane %v3709, %v3927
  %v3929 = vsel %vm1099, %v3928, %v3924
  %v3930 = vlaneseq
  %v3931 = vshrl.u32 %v3930, 7
  %v3932 = vsub.s32 %v1101, %v3931
  %v3933 = vrot.slane %v3712, %v3932
  %v3934 = vsel %vm1106, %v3933, %v3929
  %v3935 = vlaneseq
  %v3936 = vshrl.u32 %v3935, 7
  %v3937 = vsub.s32 %v1054, %v3936
  %v3938 = vrot.slane %v3715, %v3937
  %v3939 = vlaneseq
  %v3940 = vshrl.u32 %v3939, 7
  %v3941 = vsub.s32 %v1059, %v3940
  %v3942 = vrot.slane %v3718, %v3941
  %v3943 = vsel %vm1064, %v3942, %v3938
  %v3944 = vlaneseq
  %v3945 = vshrl.u32 %v3944, 7
  %v3946 = vsub.s32 %v1066, %v3945
  %v3947 = vrot.slane %v3721, %v3946
  %v3948 = vsel %vm1071, %v3947, %v3943
  %v3949 = vlaneseq
  %v3950 = vshrl.u32 %v3949, 7
  %v3951 = vsub.s32 %v1073, %v3950
  %v3952 = vrot.slane %v3724, %v3951
  %v3953 = vsel %vm1078, %v3952, %v3948
  %v3954 = vlaneseq
  %v3955 = vshrl.u32 %v3954, 7
  %v3956 = vsub.s32 %v1080, %v3955
  %v3957 = vrot.slane %v3727, %v3956
  %v3958 = vsel %vm1085, %v3957, %v3953
  %v3959 = vlaneseq
  %v3960 = vshrl.u32 %v3959, 7
  %v3961 = vsub.s32 %v1087, %v3960
  %v3962 = vrot.slane %v3730, %v3961
  %v3963 = vsel %vm1092, %v3962, %v3958
  %v3964 = vlaneseq
  %v3965 = vshrl.u32 %v3964, 7
  %v3966 = vsub.s32 %v1094, %v3965
  %v3967 = vrot.slane %v3733, %v3966
  %v3968 = vsel %vm1099, %v3967, %v3963
  %v3969 = vlaneseq
  %v3970 = vshrl.u32 %v3969, 7
  %v3971 = vsub.s32 %v1101, %v3970
  %v3972 = vrot.slane %v3736, %v3971
  %v3973 = vsel %vm1106, %v3972, %v3968
  %v3974 = vlaneseq
  %v3975 = vshrl.u32 %v3974, 7
  %v3976 = vsub.s32 %v1054, %v3975
  %v3977 = vrot.slane %v3739, %v3976
  %v3978 = vlaneseq
  %v3979 = vshrl.u32 %v3978, 7
  %v3980 = vsub.s32 %v1059, %v3979
  %v3981 = vrot.slane %v3742, %v3980
  %v3982 = vsel %vm1064, %v3981, %v3977
  %v3983 = vlaneseq
  %v3984 = vshrl.u32 %v3983, 7
  %v3985 = vsub.s32 %v1066, %v3984
  %v3986 = vrot.slane %v3745, %v3985
  %v3987 = vsel %vm1071, %v3986, %v3982
  %v3988 = vlaneseq
  %v3989 = vshrl.u32 %v3988, 7
  %v3990 = vsub.s32 %v1073, %v3989
  %v3991 = vrot.slane %v3748, %v3990
  %v3992 = vsel %vm1078, %v3991, %v3987
  %v3993 = vlaneseq
  %v3994 = vshrl.u32 %v3993, 7
  %v3995 = vsub.s32 %v1080, %v3994
  %v3996 = vrot.slane %v3751, %v3995
  %v3997 = vsel %vm1085, %v3996, %v3992
  %v3998 = vlaneseq
  %v3999 = vshrl.u32 %v3998, 7
  %v4000 = vsub.s32 %v1087, %v3999
  %v4001 = vrot.slane %v3754, %v4000
  %v4002 = vsel %vm1092, %v4001, %v3997
  %v4003 = vlaneseq
  %v4004 = vshrl.u32 %v4003, 7
  %v4005 = vsub.s32 %v1094, %v4004
  %v4006 = vrot.slane %v3757, %v4005
  %v4007 = vsel %vm1099, %v4006, %v4002
  %v4008 = vlaneseq
  %v4009 = vshrl.u32 %v4008, 7
  %v4010 = vsub.s32 %v1101, %v4009
  %v4011 = vrot.slane %v3760, %v4010
  %v4012 = vsel %vm1106, %v4011, %v4007
  %v4013 = vlaneseq
  %v4014 = vshrl.u32 %v4013, 7
  %v4015 = vsub.s32 %v1054, %v4014
  %v4016 = vrot.slane %v3763, %v4015
  %v4017 = vlaneseq
  %v4018 = vshrl.u32 %v4017, 7
  %v4019 = vsub.s32 %v1059, %v4018
  %v4020 = vrot.slane %v3766, %v4019
  %v4021 = vsel %vm1064, %v4020, %v4016
  %v4022 = vlaneseq
  %v4023 = vshrl.u32 %v4022, 7
  %v4024 = vsub.s32 %v1066, %v4023
  %v4025 = vrot.slane %v3769, %v4024
  %v4026 = vsel %vm1071, %v4025, %v4021
  %v4027 = vlaneseq
  %v4028 = vshrl.u32 %v4027, 7
  %v4029 = vsub.s32 %v1073, %v4028
  %v4030 = vrot.slane %v3772, %v4029
  %v4031 = vsel %vm1078, %v4030, %v4026
  %v4032 = vlaneseq
  %v4033 = vshrl.u32 %v4032, 7
  %v4034 = vsub.s32 %v1080, %v4033
  %v4035 = vrot.slane %v3775, %v4034
  %v4036 = vsel %vm1085, %v4035, %v4031
  %v4037 = vlaneseq
  %v4038 = vshrl.u32 %v4037, 7
  %v4039 = vsub.s32 %v1087, %v4038
  %v4040 = vrot.slane %v3778, %v4039
  %v4041 = vsel %vm1092, %v4040, %v4036
  %v4042 = vlaneseq
  %v4043 = vshrl.u32 %v4042, 7
  %v4044 = vsub.s32 %v1094, %v4043
  %v4045 = vrot.slane %v3781, %v4044
  %v4046 = vsel %vm1099, %v4045, %v4041
  %v4047 = vlaneseq
  %v4048 = vshrl.u32 %v4047, 7
  %v4049 = vsub.s32 %v1101, %v4048
  %v4050 = vrot.slane %v3784, %v4049
  %v4051 = vsel %vm1106, %v4050, %v4046
  %v4052 = vlaneseq
  %v4053 = vshrl.u32 %v4052, 7
  %v4054 = vsub.s32 %v1054, %v4053
  %v4055 = vrot.slane %v3787, %v4054
  %v4056 = vlaneseq
  %v4057 = vshrl.u32 %v4056, 7
  %v4058 = vsub.s32 %v1059, %v4057
  %v4059 = vrot.slane %v3790, %v4058
  %v4060 = vsel %vm1064, %v4059, %v4055
  %v4061 = vlaneseq
  %v4062 = vshrl.u32 %v4061, 7
  %v4063 = vsub.s32 %v1066, %v4062
  %v4064 = vrot.slane %v3793, %v4063
  %v4065 = vsel %vm1071, %v4064, %v4060
  %v4066 = vlaneseq
  %v4067 = vshrl.u32 %v4066, 7
  %v4068 = vsub.s32 %v1073, %v4067
  %v4069 = vrot.slane %v3796, %v4068
  %v4070 = vsel %vm1078, %v4069, %v4065
  %v4071 = vlaneseq
  %v4072 = vshrl.u32 %v4071, 7
  %v4073 = vsub.s32 %v1080, %v4072
  %v4074 = vrot.slane %v3799, %v4073
  %v4075 = vsel %vm1085, %v4074, %v4070
  %v4076 = vlaneseq
  %v4077 = vshrl.u32 %v4076, 7
  %v4078 = vsub.s32 %v1087, %v4077
  %v4079 = vrot.slane %v3802, %v4078
  %v4080 = vsel %vm1092, %v4079, %v4075
  %v4081 = vlaneseq
  %v4082 = vshrl.u32 %v4081, 7
  %v4083 = vsub.s32 %v1094, %v4082
  %v4084 = vrot.slane %v3805, %v4083
  %v4085 = vsel %vm1099, %v4084, %v4080
  %v4086 = vlaneseq
  %v4087 = vshrl.u32 %v4086, 7
  %v4088 = vsub.s32 %v1101, %v4087
  %v4089 = vrot.slane %v3808, %v4088
  %v4090 = vsel %vm1106, %v4089, %v4085
  %v4091 = vlaneseq
  %v4092 = vshrl.u32 %v4091, 7
  %v4093 = vsub.s32 %v1054, %v4092
  %v4094 = vrot.slane %v3811, %v4093
  %v4095 = vlaneseq
  %v4096 = vshrl.u32 %v4095, 7
  %v4097 = vsub.s32 %v1059, %v4096
  %v4098 = vrot.slane %v3814, %v4097
  %v4099 = vsel %vm1064, %v4098, %v4094
  %v4100 = vlaneseq
  %v4101 = vshrl.u32 %v4100, 7
  %v4102 = vsub.s32 %v1066, %v4101
  %v4103 = vrot.slane %v3817, %v4102
  %v4104 = vsel %vm1071, %v4103, %v4099
  %v4105 = vlaneseq
  %v4106 = vshrl.u32 %v4105, 7
  %v4107 = vsub.s32 %v1073, %v4106
  %v4108 = vrot.slane %v3820, %v4107
  %v4109 = vsel %vm1078, %v4108, %v4104
  %v4110 = vlaneseq
  %v4111 = vshrl.u32 %v4110, 7
  %v4112 = vsub.s32 %v1080, %v4111
  %v4113 = vrot.slane %v3823, %v4112
  %v4114 = vsel %vm1085, %v4113, %v4109
  %v4115 = vlaneseq
  %v4116 = vshrl.u32 %v4115, 7
  %v4117 = vsub.s32 %v1087, %v4116
  %v4118 = vrot.slane %v3826, %v4117
  %v4119 = vsel %vm1092, %v4118, %v4114
  %v4120 = vlaneseq
  %v4121 = vshrl.u32 %v4120, 7
  %v4122 = vsub.s32 %v1094, %v4121
  %v4123 = vrot.slane %v3829, %v4122
  %v4124 = vsel %vm1099, %v4123, %v4119
  %v4125 = vlaneseq
  %v4126 = vshrl.u32 %v4125, 7
  %v4127 = vsub.s32 %v1101, %v4126
  %v4128 = vrot.slane %v3832, %v4127
  %v4129 = vsel %vm1106, %v4128, %v4124
  %v4130 = vlaneseq
  %v4131 = vshrl.u32 %v4130, 7
  %v4132 = vsub.s32 %v1054, %v4131
  %v4133 = vrot.slane %v3835, %v4132
  %v4134 = vlaneseq
  %v4135 = vshrl.u32 %v4134, 7
  %v4136 = vsub.s32 %v1059, %v4135
  %v4137 = vrot.slane %v3838, %v4136
  %v4138 = vsel %vm1064, %v4137, %v4133
  %v4139 = vlaneseq
  %v4140 = vshrl.u32 %v4139, 7
  %v4141 = vsub.s32 %v1066, %v4140
  %v4142 = vrot.slane %v3841, %v4141
  %v4143 = vsel %vm1071, %v4142, %v4138
  %v4144 = vlaneseq
  %v4145 = vshrl.u32 %v4144, 7
  %v4146 = vsub.s32 %v1073, %v4145
  %v4147 = vrot.slane %v3844, %v4146
  %v4148 = vsel %vm1078, %v4147, %v4143
  %v4149 = vlaneseq
  %v4150 = vshrl.u32 %v4149, 7
  %v4151 = vsub.s32 %v1080, %v4150
  %v4152 = vrot.slane %v3847, %v4151
  %v4153 = vsel %vm1085, %v4152, %v4148
  %v4154 = vlaneseq
  %v4155 = vshrl.u32 %v4154, 7
  %v4156 = vsub.s32 %v1087, %v4155
  %v4157 = vrot.slane %v3850, %v4156
  %v4158 = vsel %vm1092, %v4157, %v4153
  %v4159 = vlaneseq
  %v4160 = vshrl.u32 %v4159, 7
  %v4161 = vsub.s32 %v1094, %v4160
  %v4162 = vrot.slane %v3853, %v4161
  %v4163 = vsel %vm1099, %v4162, %v4158
  %v4164 = vlaneseq
  %v4165 = vshrl.u32 %v4164, 7
  %v4166 = vsub.s32 %v1101, %v4165
  %v4167 = vrot.slane %v3856, %v4166
  %v4168 = vsel %vm1106, %v4167, %v4163
  %v4169 = vsel %vm727, %v3934, %v3895
  %v4170 = vsel %vm730, %v3973, %v4169
  %v4171 = vsel %vm733, %v4012, %v4170
  %v4172 = vsel %vm736, %v4051, %v4171
  %v4173 = vsel %vm739, %v4090, %v4172
  %v4174 = vsel %vm742, %v4129, %v4173
  %v4175 = vsel %vm745, %v4168, %v4174
  %4177 = vmatprep.subr.bf16.mxu0 0
  %4178 = vmatpush1.bf16.msra.mxu0 %v3585
  %4179 = vmatprep.subr.bf16.mxu0 0
  %4180 = vmatpush1.bf16.msra.mxu0 %v3586
  %4181 = vmatprep.subr.bf16.mxu0 0
  %4182 = vmatpush1.bf16.msra.mxu0 %v3587
  %4183 = vmatprep.subr.bf16.mxu0 0
  %4184 = vmatpush1.bf16.msra.mxu0 %v3588
  %4185 = vmatprep.subr.bf16.mxu0 0
  %4186 = vmatpush1.bf16.msra.mxu0 %v3589
  %4187 = vmatprep.subr.bf16.mxu0 0
  %4188 = vmatpush1.bf16.msra.mxu0 %v3590
  %4189 = vmatprep.subr.bf16.mxu0 0
  %4190 = vmatpush1.bf16.msra.mxu0 %v3591
  %4191 = vmatprep.subr.bf16.mxu0 0
  %4192 = vmatpush1.bf16.msra.mxu0 %v3592
  %4193 = vmatprep.subr.bf16.mxu0 0
  %4194 = vmatpush1.bf16.msra.mxu0 0
  %4195 = vmatprep.subr.bf16.mxu0 0
  %4196 = vmatpush1.bf16.msra.mxu0 0
  %4197 = vmatprep.subr.bf16.mxu0 0
  %4198 = vmatpush1.bf16.msra.mxu0 0
  %4199 = vmatprep.subr.bf16.mxu0 0
  %4200 = vmatpush1.bf16.msra.mxu0 0
  %4201 = vmatprep.subr.bf16.mxu0 0
  %4202 = vmatpush1.bf16.msra.mxu0 0
  %4203 = vmatprep.subr.bf16.mxu0 0
  %4204 = vmatpush1.bf16.msra.mxu0 0
  %4205 = vmatprep.subr.bf16.mxu0 0
  %4206 = vmatpush1.bf16.msra.mxu0 0
  %4207 = vmatprep.subr.bf16.mxu0 0
  %4208 = vmatpush1.bf16.msra.mxu0 0
  %4209 = vmatprep.mubr.bf16.mxu0 0
  %4210 = vmatmul.mubr.bf16.gmra.mrb[0].mxu0 %v3551
  %v4211 = vpop.f32.mrb[0].mxu0
  %v4212 = vadd.f32 %v4175, %v4211
  %v4213 = vpop.f32.mrb[0].mxu0
  %v4214 = vpop.f32.mrb[0].mxu0
  %v4215 = vpop.f32.mrb[0].mxu0
  %4216 = vdwg.mxu0
  %v4217 = vld [vmem:[%s6 + $0x3] sm:$0x1]
  %v4218 = vlaneseq
  %v4219 = vshrl.u32 %v4218, 7
  %v4220 = vsub.s32 0, %v4219
  %v4221 = vrot.slane %v4217, %v4220
  %v4222 = vadd.f32 %v4212, %v4221
  %s4223 = scalar_lea.vmem %s9, 24
  %4224 = vst.msk [vmem:[%s4223] sm:$0xff] %vm200, %v4222
  %v4225 = vpack.c.bf16 %v4222, %v4222
  %s4226 = scalar_lea.vmem %s7, 96
  %v4227 = vld [vmem:[%s4226] sm:$0xf]
  %v4228 = vld [vmem:[%s4226 + $0x4] sm:$0xf]
  %v4229 = vld [vmem:[%s4226 + $0x8] sm:$0xf]
  %v4230 = vld [vmem:[%s4226 + $0xc] sm:$0xf]
  %v4231 = vld [vmem:[%s4226 + $0x10] sm:$0xf]
  %v4232 = vld [vmem:[%s4226 + $0x14] sm:$0xf]
  %v4233 = vld [vmem:[%s4226 + $0x18] sm:$0xf]
  %v4234 = vld [vmem:[%s4226 + $0x1c] sm:$0xf]
  %v4235 = vld [vmem:[%s8 + $0x3] sm:$0x1]
  %v4236 = vlaneseq
  %v4237 = vshrl.u32 %v4236, 7
  %v4238 = vsub.s32 0, %v4237
  %v4239 = vrot.slane %v4235, %v4238
  %v4248 = vunpack.c.l.b16 %v4227
  %v4249 = vunpack.c.l.b16 %v4228
  %v4250 = vunpack.c.l.b16 %v4229
  %v4251 = vunpack.c.l.b16 %v4230
  %v4252 = vunpack.c.l.b16 %v4231
  %v4253 = vunpack.c.l.b16 %v4232
  %v4254 = vunpack.c.l.b16 %v4233
  %v4255 = vunpack.c.l.b16 %v4234
  %v4256 = vpack.c.b16 %v4249, %v4248
  %v4257 = vpack.c.b16 %v4251, %v4250
  %v4258 = vpack.c.b16 %v4253, %v4252
  %v4259 = vpack.c.b16 %v4255, %v4254
  %v4265 = vsel %vm200, %v4225, 0
  %4267 = vmatprep.subr.bf16.mxu0 0
  %4268 = vmatpush1.bf16.msra.mxu0 %v4256
  %4269 = vmatprep.subr.bf16.mxu0 0
  %4270 = vmatpush1.bf16.msra.mxu0 %v4257
  %4271 = vmatprep.subr.bf16.mxu0 0
  %4272 = vmatpush1.bf16.msra.mxu0 %v4258
  %4273 = vmatprep.subr.bf16.mxu0 0
  %4274 = vmatpush1.bf16.msra.mxu0 %v4259
  %4275 = vmatprep.subr.bf16.mxu0 0
  %4276 = vmatpush1.bf16.msra.mxu0 0
  %4277 = vmatprep.subr.bf16.mxu0 0
  %4278 = vmatpush1.bf16.msra.mxu0 0
  %4279 = vmatprep.subr.bf16.mxu0 0
  %4280 = vmatpush1.bf16.msra.mxu0 0
  %4281 = vmatprep.subr.bf16.mxu0 0
  %4282 = vmatpush1.bf16.msra.mxu0 0
  %4283 = vmatprep.subr.bf16.mxu0 0
  %4284 = vmatpush1.bf16.msra.mxu0 0
  %4285 = vmatprep.subr.bf16.mxu0 0
  %4286 = vmatpush1.bf16.msra.mxu0 0
  %4287 = vmatprep.subr.bf16.mxu0 0
  %4288 = vmatpush1.bf16.msra.mxu0 0
  %4289 = vmatprep.subr.bf16.mxu0 0
  %4290 = vmatpush1.bf16.msra.mxu0 0
  %4291 = vmatprep.subr.bf16.mxu0 0
  %4292 = vmatpush1.bf16.msra.mxu0 0
  %4293 = vmatprep.subr.bf16.mxu0 0
  %4294 = vmatpush1.bf16.msra.mxu0 0
  %4295 = vmatprep.subr.bf16.mxu0 0
  %4296 = vmatpush1.bf16.msra.mxu0 0
  %4297 = vmatprep.subr.bf16.mxu0 0
  %4298 = vmatpush1.bf16.msra.mxu0 0
  %4299 = vmatprep.mubr.bf16.mxu0 0
  %4300 = vmatmul.mubr.bf16.gmra.mrb[0].mxu0 %v4265
  %v4301 = vpop.f32.mrb[0].mxu0
  %v4302 = vadd.f32 %v4239, %v4301
  %v4303 = vpop.f32.mrb[0].mxu0
  %v4304 = vpop.f32.mrb[0].mxu0
  %v4305 = vpop.f32.mrb[0].mxu0
  %4306 = vdwg.mxu0
  %s4307 = scalar_lea.vmem %s10, 24
  %4308 = vst.msk [vmem:[%s4307] sm:$0xff] %vm1517, %v4302
  // Predicated region
  $region38: #{tpu_custom_call.1} parent=0 // pred_check
    _
  $region39: #{tpu_custom_call.1} parent=0 // pred_check_branch
    %4310 = sbr.rel (0) target = $region41
  $region40: #{tpu_custom_call.1} parent=0 // pred_region
    _
  $region41: #{tpu_custom_call.1} parent=0 // pred_fallthru
    _
  // Predicated region
  $region42: #{tpu_custom_call.1} parent=0 // pred_check
    _
  $region43: #{tpu_custom_call.1} parent=0 // pred_check_branch
    %4312 = sbr.rel (0) target = $region45
  $region44: #{tpu_custom_call.1} parent=0 // pred_region
    _
  $region45: #{tpu_custom_call.1} parent=0 // pred_fallthru
    _
  // Predicated region
  $region46: #{tpu_custom_call.1} parent=0 // pred_check
    _
  $region47: #{tpu_custom_call.1} parent=0 // pred_check_branch
    %4314 = sbr.rel (0) target = $region49
  $region48: #{tpu_custom_call.1} parent=0 // pred_region
    _
  $region49: #{tpu_custom_call.1} parent=0 // pred_fallthru
    _
  // Predicated region
  $region50: #{tpu_custom_call.1} parent=0 // pred_check
    _
  $region51: #{tpu_custom_call.1} parent=0 // pred_check_branch
    %4316 = sbr.rel (0) target = $region53
  $region52: #{tpu_custom_call.1} parent=0 // pred_region
    _
  $region53: #{tpu_custom_call.1} parent=0 // pred_fallthru
    _

</llo_original>
